<compile_context>
chip_gen: v5e
topology: v5e:2x2
jax: 0.10.0
libtpu: 0.0.40
codegen_flags: <defaults>
</compile_context>

<pallas_src>
import jax
import jax.numpy as jnp
from jax.experimental import pallas as pl
from jax.experimental.pallas import tpu as pltpu

X_DIM = 28 * 28        # 784
X_PAD = 7 * 128        # 896, lane-dense padded feature dim
H1, H2 = 512, 256
LS = 2
LS_PAD = 128           # lane-dense padded latent dim
BN_EPS = 1e-5


# ---------------------------------------------------------------------------
# Pallas kernel: full forward pass (6 matmuls, 4 batch-norms, relu/sigmoid)
# ---------------------------------------------------------------------------
def _ae_kernel(x_ref,
               w1_ref, b1_ref, g1_ref, be1_ref,
               w2_ref, b2_ref, g2_ref, be2_ref,
               w3_ref, b3_ref,
               w4_ref, b4_ref,
               w5_ref, b5_ref,
               w6_ref, b6_ref,
               o_ref):
    def linear(h, w_ref, b_ref):
        # h is f32, w is bf16 (promoted to f32 inside the MXU); f32 accumulation.
        return jnp.dot(h, w_ref[...], preferred_element_type=jnp.float32) + b_ref[...]

    def batchnorm(h, g_ref, b_ref):
        # Training-mode BN: biased batch variance, centered two-pass (matches PyTorch).
        mu = jnp.mean(h, axis=0, keepdims=True)
        c = h - mu
        var = jnp.mean(c * c, axis=0, keepdims=True)
        scale = g_ref[...] * jax.lax.rsqrt(var + BN_EPS)
        return c * scale + b_ref[...]

    x = x_ref[...]

    # ---- encoder ----
    h = batchnorm(jnp.maximum(linear(x, w1_ref, b1_ref), 0.0), g1_ref, be1_ref)
    h = batchnorm(jnp.maximum(linear(h, w2_ref, b2_ref), 0.0), g2_ref, be2_ref)
    z = linear(h, w3_ref, b3_ref)                      # latent (B, LS_PAD); pad lanes = 0

    # ---- decoder ----
    d = batchnorm(jnp.maximum(linear(z, w4_ref, b4_ref), 0.0), g2_ref, be2_ref)  # shared bn2
    d = batchnorm(jnp.maximum(linear(d, w5_ref, b5_ref), 0.0), g1_ref, be1_ref)  # shared bn1
    out = jax.nn.sigmoid(linear(d, w6_ref, b6_ref))

    o_ref[...] = out.astype(o_ref.dtype)


# ---------------------------------------------------------------------------
# Parameter preparation: zero-pad to lane-dense shapes, cast weights to bf16
# ---------------------------------------------------------------------------
def _pad_to(a, shape):
    return jnp.pad(a, [(0, s - d) for d, s in zip(a.shape, shape)])


def prepare_params(params):
    (w1, b1, g1, be1, w2, b2, g2, be2, w3, b3, w4, b4, w5, b5, w6, b6) = params
    w1p = _pad_to(w1, (X_PAD, H1)).astype(jnp.bfloat16)      # zero rows for padded x cols
    w2p = w2.astype(jnp.bfloat16)
    w3p = _pad_to(w3, (H2, LS_PAD)).astype(jnp.bfloat16)     # zero latent columns
    b3p = _pad_to(b3, (1, LS_PAD))
    w4p = _pad_to(w4, (LS_PAD, H2)).astype(jnp.bfloat16)     # zero rows for padded latent
    w5p = w5.astype(jnp.bfloat16)
    w6p = _pad_to(w6, (H1, X_PAD)).astype(jnp.bfloat16)      # zero output columns (sliced off)
    b6p = _pad_to(b6, (1, X_PAD))
    return (w1p, b1, g1, be1,
            w2p, b2, g2, be2,
            w3p, b3p,
            w4p, b4,
            w5p, b5,
            w6p, b6p)


# ---------------------------------------------------------------------------
# Wrapper
# ---------------------------------------------------------------------------
def autoencoder_forward(x, prepared_params):
    """x: (B, ...) flattened to (B, 784); returns (B, 784) float32."""
    B = x.shape[0]
    x2 = x.reshape(B, X_DIM).astype(jnp.float32)             # mirrors x.view(-1, 784)
    x2 = jnp.pad(x2, ((0, 0), (0, X_PAD - X_DIM)))           # lane-dense zero padding
    args = (x2,) + tuple(prepared_params)

    def full_spec(a):
        nd = a.ndim
        return pl.BlockSpec(a.shape, lambda i, nd=nd: (0,) * nd)

    out_pad = pl.pallas_call(
        _ae_kernel,
        out_shape=jax.ShapeDtypeStruct((B, X_PAD), jnp.float32),
        grid=(1,),
        in_specs=[full_spec(a) for a in args],
        out_specs=pl.BlockSpec((B, X_PAD), lambda i: (0, 0)),
        compiler_params=pltpu.CompilerParams(
            dimension_semantics=("arbitrary",),
        ),
    )(*args)
    return out_pad[:, :X_DIM]


# ---------------------------------------------------------------------------
# Deterministic parameter init (PyTorch-Linear-style uniform(-1/sqrt(fan_in), ...))
# ---------------------------------------------------------------------------
def init_params(key):
    dims = [(X_DIM, H1), (H1, H2), (H2, LS), (LS, H2), (H2, H1), (H1, X_DIM)]
    weights, biases = [], []
    for (fin, fout) in dims:
        key, kw, kb = jax.random.split(key, 3)
        bound = 1.0 / jnp.sqrt(jnp.float32(fin))
        weights.append(jax.random.uniform(kw, (fin, fout), jnp.float32, -bound, bound))
        biases.append(jax.random.uniform(kb, (1, fout), jnp.float32, -bound, bound))
    g1, be1 = jnp.ones((1, H1), jnp.float32), jnp.zeros((1, H1), jnp.float32)
    g2, be2 = jnp.ones((1, H2), jnp.float32), jnp.zeros((1, H2), jnp.float32)
    params = (
        weights[0], biases[0], g1, be1,
        weights[1], biases[1], g2, be2,
        weights[2], biases[2],
        weights[3], biases[3],
        weights[4], biases[4],
        weights[5], biases[5],
    )
    return params, key


# ---------------------------------------------------------------------------
# Pure-JAX reference (mirrors the intentional bf16 weight quantization)
# ---------------------------------------------------------------------------
def ref_forward(x, params):
    (w1, b1, g1, be1, w2, b2, g2, be2, w3, b3, w4, b4, w5, b5, w6, b6) = params
    x = x.reshape(x.shape[0], X_DIM).astype(jnp.float32)
    q = lambda w: w.astype(jnp.bfloat16).astype(jnp.float32)   # same weight storage as kernel

    def bn(h, g, b):
        mu = jnp.mean(h, axis=0, keepdims=True)
        var = jnp.mean(jnp.square(h - mu), axis=0, keepdims=True)
        return (h - mu) * jax.lax.rsqrt(var + BN_EPS) * g + b

    h = bn(jnp.maximum(x @ q(w1) + b1, 0.0), g1, be1)
    h = bn(jnp.maximum(h @ q(w2) + b2, 0.0), g2, be2)
    z = h @ q(w3) + b3
    d = bn(jnp.maximum(z @ q(w4) + b4, 0.0), g2, be2)
    d = bn(jnp.maximum(d @ q(w5) + b5, 0.0), g1, be1)
    return jax.nn.sigmoid(d @ q(w6) + b6)


if __name__ == "__main__":
    key = jax.random.PRNGKey(0)
    params, key = init_params(key)
    prepared = prepare_params(params)

    key, kx = jax.random.split(key)
    B = 8
    x = jax.random.uniform(kx, (B, X_DIM), jnp.float32)     # e.g. MNIST images, flattened

    out = autoencoder_forward(x, prepared)
    out = jax.block_until_ready(out)

    ref = ref_forward(x, params)
    assert out.shape == (B, X_DIM)
    assert bool(jnp.all(jnp.isfinite(out)))
    assert bool(jnp.allclose(out, ref, atol=2e-3, rtol=2e-3))
    print("KERNEL_OK")
</pallas_src>

<mosaic_0001>
module attributes {stable_mosaic.version = 11 : i64} {
  func.func @_ae_kernel(%arg0: i32, %arg1: memref<8x896xf32, #tpu.memory_space<vmem>>, %arg2: memref<896x512xbf16, #tpu.memory_space<vmem>>, %arg3: memref<1x512xf32, #tpu.memory_space<vmem>>, %arg4: memref<1x512xf32, #tpu.memory_space<vmem>>, %arg5: memref<1x512xf32, #tpu.memory_space<vmem>>, %arg6: memref<512x256xbf16, #tpu.memory_space<vmem>>, %arg7: memref<1x256xf32, #tpu.memory_space<vmem>>, %arg8: memref<1x256xf32, #tpu.memory_space<vmem>>, %arg9: memref<1x256xf32, #tpu.memory_space<vmem>>, %arg10: memref<256x128xbf16, #tpu.memory_space<vmem>>, %arg11: memref<1x128xf32, #tpu.memory_space<vmem>>, %arg12: memref<128x256xbf16, #tpu.memory_space<vmem>>, %arg13: memref<1x256xf32, #tpu.memory_space<vmem>>, %arg14: memref<256x512xbf16, #tpu.memory_space<vmem>>, %arg15: memref<1x512xf32, #tpu.memory_space<vmem>>, %arg16: memref<512x896xbf16, #tpu.memory_space<vmem>>, %arg17: memref<1x896xf32, #tpu.memory_space<vmem>>, %arg18: memref<8x896xf32, #tpu.memory_space<vmem>>) attributes {dimension_semantics = [#tpu.dimension_semantics<arbitrary>], iteration_bounds = array<i64: 1>, scalar_prefetch = 0 : i64, scratch_operands = 0 : i64, tpu.core_type = #tpu.core_type<tc>, window_params = [{pipeline_mode = #tpu.pipeline_mode<synchronous>, transform_indices = @transform_0, window_bounds = array<i64: 8, 896>}, {pipeline_mode = #tpu.pipeline_mode<synchronous>, transform_indices = @transform_1, window_bounds = array<i64: 896, 512>}, {pipeline_mode = #tpu.pipeline_mode<synchronous>, transform_indices = @transform_2, window_bounds = array<i64: 1, 512>}, {pipeline_mode = #tpu.pipeline_mode<synchronous>, transform_indices = @transform_3, window_bounds = array<i64: 1, 512>}, {pipeline_mode = #tpu.pipeline_mode<synchronous>, transform_indices = @transform_4, window_bounds = array<i64: 1, 512>}, {pipeline_mode = #tpu.pipeline_mode<synchronous>, transform_indices = @transform_5, window_bounds = array<i64: 512, 256>}, {pipeline_mode = #tpu.pipeline_mode<synchronous>, transform_indices = @transform_6, window_bounds = array<i64: 1, 256>}, {pipeline_mode = #tpu.pipeline_mode<synchronous>, transform_indices = @transform_7, window_bounds = array<i64: 1, 256>}, {pipeline_mode = #tpu.pipeline_mode<synchronous>, transform_indices = @transform_8, window_bounds = array<i64: 1, 256>}, {pipeline_mode = #tpu.pipeline_mode<synchronous>, transform_indices = @transform_9, window_bounds = array<i64: 256, 128>}, {pipeline_mode = #tpu.pipeline_mode<synchronous>, transform_indices = @transform_10, window_bounds = array<i64: 1, 128>}, {pipeline_mode = #tpu.pipeline_mode<synchronous>, transform_indices = @transform_11, window_bounds = array<i64: 128, 256>}, {pipeline_mode = #tpu.pipeline_mode<synchronous>, transform_indices = @transform_12, window_bounds = array<i64: 1, 256>}, {pipeline_mode = #tpu.pipeline_mode<synchronous>, transform_indices = @transform_13, window_bounds = array<i64: 256, 512>}, {pipeline_mode = #tpu.pipeline_mode<synchronous>, transform_indices = @transform_14, window_bounds = array<i64: 1, 512>}, {pipeline_mode = #tpu.pipeline_mode<synchronous>, transform_indices = @transform_15, window_bounds = array<i64: 512, 896>}, {pipeline_mode = #tpu.pipeline_mode<synchronous>, transform_indices = @transform_16, window_bounds = array<i64: 1, 896>}, {pipeline_mode = #tpu.pipeline_mode<synchronous>, transform_indices = @transform_17, window_bounds = array<i64: 8, 896>}]} {
    %c0 = arith.constant 0 : index
    %c0_0 = arith.constant 0 : index
    %0 = vector.load %arg1[%c0, %c0_0] : memref<8x896xf32, #tpu.memory_space<vmem>>, vector<8x896xf32>
    %c0_1 = arith.constant 0 : index
    %c0_2 = arith.constant 0 : index
    %1 = vector.load %arg2[%c0_1, %c0_2] : memref<896x512xbf16, #tpu.memory_space<vmem>>, vector<896x512xbf16>
    %cst = arith.constant dense<0.000000e+00> : vector<8x512xf32>
    %2 = tpu.matmul %0, %1, %cst {dimension_numbers = #tpu.dot_dimension_numbers<[1], [0], [0], [1], [0, 0, 1, 1], [], []>} : vector<8x896xf32>, vector<896x512xbf16>, vector<8x512xf32> -> vector<8x512xf32>
    %c0_3 = arith.constant 0 : index
    %c0_4 = arith.constant 0 : index
    %3 = vector.load %arg3[%c0_3, %c0_4] : memref<1x512xf32, #tpu.memory_space<vmem>>, vector<1x512xf32>
    %4 = vector.broadcast %3 : vector<1x512xf32> to vector<8x512xf32>
    %5 = arith.addf %2, %4 : vector<8x512xf32>
    %cst_5 = arith.constant 0.000000e+00 : f32
    %6 = vector.broadcast %cst_5 : f32 to vector<8x512xf32>
    %7 = arith.maximumf %5, %6 : vector<8x512xf32>
    %cst_6 = arith.constant dense<0.000000e+00> : vector<512xf32>
    %8 = vector.multi_reduction <add>, %7, %cst_6 [0] : vector<8x512xf32> to vector<512xf32>
    %9 = vector.shape_cast %8 : vector<512xf32> to vector<1x512xf32>
    %cst_7 = arith.constant 8.000000e+00 : f32
    %10 = vector.broadcast %cst_7 : f32 to vector<1x512xf32>
    %11 = arith.divf %9, %10 : vector<1x512xf32>
    %12 = vector.broadcast %11 : vector<1x512xf32> to vector<8x512xf32>
    %13 = arith.subf %7, %12 : vector<8x512xf32>
    %14 = arith.mulf %13, %13 : vector<8x512xf32>
    %cst_8 = arith.constant dense<0.000000e+00> : vector<512xf32>
    %15 = vector.multi_reduction <add>, %14, %cst_8 [0] : vector<8x512xf32> to vector<512xf32>
    %16 = vector.shape_cast %15 : vector<512xf32> to vector<1x512xf32>
    %cst_9 = arith.constant 8.000000e+00 : f32
    %17 = vector.broadcast %cst_9 : f32 to vector<1x512xf32>
    %18 = arith.divf %16, %17 : vector<1x512xf32>
    %c0_10 = arith.constant 0 : index
    %c0_11 = arith.constant 0 : index
    %19 = vector.load %arg4[%c0_10, %c0_11] : memref<1x512xf32, #tpu.memory_space<vmem>>, vector<1x512xf32>
    %cst_12 = arith.constant 9.99999974E-6 : f32
    %20 = vector.broadcast %cst_12 : f32 to vector<1x512xf32>
    %21 = arith.addf %18, %20 : vector<1x512xf32>
    %22 = math.rsqrt %21 : vector<1x512xf32>
    %23 = arith.mulf %19, %22 : vector<1x512xf32>
    %24 = vector.broadcast %23 : vector<1x512xf32> to vector<8x512xf32>
    %25 = arith.mulf %13, %24 : vector<8x512xf32>
    %c0_13 = arith.constant 0 : index
    %c0_14 = arith.constant 0 : index
    %26 = vector.load %arg5[%c0_13, %c0_14] : memref<1x512xf32, #tpu.memory_space<vmem>>, vector<1x512xf32>
    %27 = vector.broadcast %26 : vector<1x512xf32> to vector<8x512xf32>
    %28 = arith.addf %25, %27 : vector<8x512xf32>
    %c0_15 = arith.constant 0 : index
    %c0_16 = arith.constant 0 : index
    %29 = vector.load %arg6[%c0_15, %c0_16] : memref<512x256xbf16, #tpu.memory_space<vmem>>, vector<512x256xbf16>
    %cst_17 = arith.constant dense<0.000000e+00> : vector<8x256xf32>
    %30 = tpu.matmul %28, %29, %cst_17 {dimension_numbers = #tpu.dot_dimension_numbers<[1], [0], [0], [1], [0, 0, 1, 1], [], []>} : vector<8x512xf32>, vector<512x256xbf16>, vector<8x256xf32> -> vector<8x256xf32>
    %c0_18 = arith.constant 0 : index
    %c0_19 = arith.constant 0 : index
    %31 = vector.load %arg7[%c0_18, %c0_19] : memref<1x256xf32, #tpu.memory_space<vmem>>, vector<1x256xf32>
    %32 = vector.broadcast %31 : vector<1x256xf32> to vector<8x256xf32>
    %33 = arith.addf %30, %32 : vector<8x256xf32>
    %cst_20 = arith.constant 0.000000e+00 : f32
    %34 = vector.broadcast %cst_20 : f32 to vector<8x256xf32>
    %35 = arith.maximumf %33, %34 : vector<8x256xf32>
    %cst_21 = arith.constant dense<0.000000e+00> : vector<256xf32>
    %36 = vector.multi_reduction <add>, %35, %cst_21 [0] : vector<8x256xf32> to vector<256xf32>
    %37 = vector.shape_cast %36 : vector<256xf32> to vector<1x256xf32>
    %cst_22 = arith.constant 8.000000e+00 : f32
    %38 = vector.broadcast %cst_22 : f32 to vector<1x256xf32>
    %39 = arith.divf %37, %38 : vector<1x256xf32>
    %40 = vector.broadcast %39 : vector<1x256xf32> to vector<8x256xf32>
    %41 = arith.subf %35, %40 : vector<8x256xf32>
    %42 = arith.mulf %41, %41 : vector<8x256xf32>
    %cst_23 = arith.constant dense<0.000000e+00> : vector<256xf32>
    %43 = vector.multi_reduction <add>, %42, %cst_23 [0] : vector<8x256xf32> to vector<256xf32>
    %44 = vector.shape_cast %43 : vector<256xf32> to vector<1x256xf32>
    %cst_24 = arith.constant 8.000000e+00 : f32
    %45 = vector.broadcast %cst_24 : f32 to vector<1x256xf32>
    %46 = arith.divf %44, %45 : vector<1x256xf32>
    %c0_25 = arith.constant 0 : index
    %c0_26 = arith.constant 0 : index
    %47 = vector.load %arg8[%c0_25, %c0_26] : memref<1x256xf32, #tpu.memory_space<vmem>>, vector<1x256xf32>
    %cst_27 = arith.constant 9.99999974E-6 : f32
    %48 = vector.broadcast %cst_27 : f32 to vector<1x256xf32>
    %49 = arith.addf %46, %48 : vector<1x256xf32>
    %50 = math.rsqrt %49 : vector<1x256xf32>
    %51 = arith.mulf %47, %50 : vector<1x256xf32>
    %52 = vector.broadcast %51 : vector<1x256xf32> to vector<8x256xf32>
    %53 = arith.mulf %41, %52 : vector<8x256xf32>
    %c0_28 = arith.constant 0 : index
    %c0_29 = arith.constant 0 : index
    %54 = vector.load %arg9[%c0_28, %c0_29] : memref<1x256xf32, #tpu.memory_space<vmem>>, vector<1x256xf32>
    %55 = vector.broadcast %54 : vector<1x256xf32> to vector<8x256xf32>
    %56 = arith.addf %53, %55 : vector<8x256xf32>
    %c0_30 = arith.constant 0 : index
    %c0_31 = arith.constant 0 : index
    %57 = vector.load %arg10[%c0_30, %c0_31] : memref<256x128xbf16, #tpu.memory_space<vmem>>, vector<256x128xbf16>
    %cst_32 = arith.constant dense<0.000000e+00> : vector<8x128xf32>
    %58 = tpu.matmul %56, %57, %cst_32 {dimension_numbers = #tpu.dot_dimension_numbers<[1], [0], [0], [1], [0, 0, 1, 1], [], []>} : vector<8x256xf32>, vector<256x128xbf16>, vector<8x128xf32> -> vector<8x128xf32>
    %c0_33 = arith.constant 0 : index
    %c0_34 = arith.constant 0 : index
    %59 = vector.load %arg11[%c0_33, %c0_34] : memref<1x128xf32, #tpu.memory_space<vmem>>, vector<1x128xf32>
    %60 = vector.broadcast %59 : vector<1x128xf32> to vector<8x128xf32>
    %61 = arith.addf %58, %60 : vector<8x128xf32>
    %c0_35 = arith.constant 0 : index
    %c0_36 = arith.constant 0 : index
    %62 = vector.load %arg12[%c0_35, %c0_36] : memref<128x256xbf16, #tpu.memory_space<vmem>>, vector<128x256xbf16>
    %cst_37 = arith.constant dense<0.000000e+00> : vector<8x256xf32>
    %63 = tpu.matmul %61, %62, %cst_37 {dimension_numbers = #tpu.dot_dimension_numbers<[1], [0], [0], [1], [0, 0, 1, 1], [], []>} : vector<8x128xf32>, vector<128x256xbf16>, vector<8x256xf32> -> vector<8x256xf32>
    %c0_38 = arith.constant 0 : index
    %c0_39 = arith.constant 0 : index
    %64 = vector.load %arg13[%c0_38, %c0_39] : memref<1x256xf32, #tpu.memory_space<vmem>>, vector<1x256xf32>
    %65 = vector.broadcast %64 : vector<1x256xf32> to vector<8x256xf32>
    %66 = arith.addf %63, %65 : vector<8x256xf32>
    %cst_40 = arith.constant 0.000000e+00 : f32
    %67 = vector.broadcast %cst_40 : f32 to vector<8x256xf32>
    %68 = arith.maximumf %66, %67 : vector<8x256xf32>
    %cst_41 = arith.constant dense<0.000000e+00> : vector<256xf32>
    %69 = vector.multi_reduction <add>, %68, %cst_41 [0] : vector<8x256xf32> to vector<256xf32>
    %70 = vector.shape_cast %69 : vector<256xf32> to vector<1x256xf32>
    %cst_42 = arith.constant 8.000000e+00 : f32
    %71 = vector.broadcast %cst_42 : f32 to vector<1x256xf32>
    %72 = arith.divf %70, %71 : vector<1x256xf32>
    %73 = vector.broadcast %72 : vector<1x256xf32> to vector<8x256xf32>
    %74 = arith.subf %68, %73 : vector<8x256xf32>
    %75 = arith.mulf %74, %74 : vector<8x256xf32>
    %cst_43 = arith.constant dense<0.000000e+00> : vector<256xf32>
    %76 = vector.multi_reduction <add>, %75, %cst_43 [0] : vector<8x256xf32> to vector<256xf32>
    %77 = vector.shape_cast %76 : vector<256xf32> to vector<1x256xf32>
    %cst_44 = arith.constant 8.000000e+00 : f32
    %78 = vector.broadcast %cst_44 : f32 to vector<1x256xf32>
    %79 = arith.divf %77, %78 : vector<1x256xf32>
    %c0_45 = arith.constant 0 : index
    %c0_46 = arith.constant 0 : index
    %80 = vector.load %arg8[%c0_45, %c0_46] : memref<1x256xf32, #tpu.memory_space<vmem>>, vector<1x256xf32>
    %cst_47 = arith.constant 9.99999974E-6 : f32
    %81 = vector.broadcast %cst_47 : f32 to vector<1x256xf32>
    %82 = arith.addf %79, %81 : vector<1x256xf32>
    %83 = math.rsqrt %82 : vector<1x256xf32>
    %84 = arith.mulf %80, %83 : vector<1x256xf32>
    %85 = vector.broadcast %84 : vector<1x256xf32> to vector<8x256xf32>
    %86 = arith.mulf %74, %85 : vector<8x256xf32>
    %c0_48 = arith.constant 0 : index
    %c0_49 = arith.constant 0 : index
    %87 = vector.load %arg9[%c0_48, %c0_49] : memref<1x256xf32, #tpu.memory_space<vmem>>, vector<1x256xf32>
    %88 = vector.broadcast %87 : vector<1x256xf32> to vector<8x256xf32>
    %89 = arith.addf %86, %88 : vector<8x256xf32>
    %c0_50 = arith.constant 0 : index
    %c0_51 = arith.constant 0 : index
    %90 = vector.load %arg14[%c0_50, %c0_51] : memref<256x512xbf16, #tpu.memory_space<vmem>>, vector<256x512xbf16>
    %cst_52 = arith.constant dense<0.000000e+00> : vector<8x512xf32>
    %91 = tpu.matmul %89, %90, %cst_52 {dimension_numbers = #tpu.dot_dimension_numbers<[1], [0], [0], [1], [0, 0, 1, 1], [], []>} : vector<8x256xf32>, vector<256x512xbf16>, vector<8x512xf32> -> vector<8x512xf32>
    %c0_53 = arith.constant 0 : index
    %c0_54 = arith.constant 0 : index
    %92 = vector.load %arg15[%c0_53, %c0_54] : memref<1x512xf32, #tpu.memory_space<vmem>>, vector<1x512xf32>
    %93 = vector.broadcast %92 : vector<1x512xf32> to vector<8x512xf32>
    %94 = arith.addf %91, %93 : vector<8x512xf32>
    %cst_55 = arith.constant 0.000000e+00 : f32
    %95 = vector.broadcast %cst_55 : f32 to vector<8x512xf32>
    %96 = arith.maximumf %94, %95 : vector<8x512xf32>
    %cst_56 = arith.constant dense<0.000000e+00> : vector<512xf32>
    %97 = vector.multi_reduction <add>, %96, %cst_56 [0] : vector<8x512xf32> to vector<512xf32>
    %98 = vector.shape_cast %97 : vector<512xf32> to vector<1x512xf32>
    %cst_57 = arith.constant 8.000000e+00 : f32
    %99 = vector.broadcast %cst_57 : f32 to vector<1x512xf32>
    %100 = arith.divf %98, %99 : vector<1x512xf32>
    %101 = vector.broadcast %100 : vector<1x512xf32> to vector<8x512xf32>
    %102 = arith.subf %96, %101 : vector<8x512xf32>
    %103 = arith.mulf %102, %102 : vector<8x512xf32>
    %cst_58 = arith.constant dense<0.000000e+00> : vector<512xf32>
    %104 = vector.multi_reduction <add>, %103, %cst_58 [0] : vector<8x512xf32> to vector<512xf32>
    %105 = vector.shape_cast %104 : vector<512xf32> to vector<1x512xf32>
    %cst_59 = arith.constant 8.000000e+00 : f32
    %106 = vector.broadcast %cst_59 : f32 to vector<1x512xf32>
    %107 = arith.divf %105, %106 : vector<1x512xf32>
    %c0_60 = arith.constant 0 : index
    %c0_61 = arith.constant 0 : index
    %108 = vector.load %arg4[%c0_60, %c0_61] : memref<1x512xf32, #tpu.memory_space<vmem>>, vector<1x512xf32>
    %cst_62 = arith.constant 9.99999974E-6 : f32
    %109 = vector.broadcast %cst_62 : f32 to vector<1x512xf32>
    %110 = arith.addf %107, %109 : vector<1x512xf32>
    %111 = math.rsqrt %110 : vector<1x512xf32>
    %112 = arith.mulf %108, %111 : vector<1x512xf32>
    %113 = vector.broadcast %112 : vector<1x512xf32> to vector<8x512xf32>
    %114 = arith.mulf %102, %113 : vector<8x512xf32>
    %c0_63 = arith.constant 0 : index
    %c0_64 = arith.constant 0 : index
    %115 = vector.load %arg5[%c0_63, %c0_64] : memref<1x512xf32, #tpu.memory_space<vmem>>, vector<1x512xf32>
    %116 = vector.broadcast %115 : vector<1x512xf32> to vector<8x512xf32>
    %117 = arith.addf %114, %116 : vector<8x512xf32>
    %c0_65 = arith.constant 0 : index
    %c0_66 = arith.constant 0 : index
    %118 = vector.load %arg16[%c0_65, %c0_66] : memref<512x896xbf16, #tpu.memory_space<vmem>>, vector<512x896xbf16>
    %cst_67 = arith.constant dense<0.000000e+00> : vector<8x896xf32>
    %119 = tpu.matmul %117, %118, %cst_67 {dimension_numbers = #tpu.dot_dimension_numbers<[1], [0], [0], [1], [0, 0, 1, 1], [], []>} : vector<8x512xf32>, vector<512x896xbf16>, vector<8x896xf32> -> vector<8x896xf32>
    %c0_68 = arith.constant 0 : index
    %c0_69 = arith.constant 0 : index
    %120 = vector.load %arg17[%c0_68, %c0_69] : memref<1x896xf32, #tpu.memory_space<vmem>>, vector<1x896xf32>
    %121 = vector.broadcast %120 : vector<1x896xf32> to vector<8x896xf32>
    %122 = arith.addf %119, %121 : vector<8x896xf32>
    %123 = arith.negf %122 : vector<8x896xf32>
    %124 = math.exp %123 : vector<8x896xf32>
    %cst_70 = arith.constant 1.000000e+00 : f32
    %125 = vector.broadcast %cst_70 : f32 to vector<8x896xf32>
    %126 = arith.addf %125, %124 : vector<8x896xf32>
    %127 = arith.divf %125, %126 : vector<8x896xf32>
    %c0_71 = arith.constant 0 : index
    %c0_72 = arith.constant 0 : index
    %128 = vector.load %arg18[%c0_71, %c0_72] : memref<8x896xf32, #tpu.memory_space<vmem>>, vector<8x896xf32>
    tpu.vector_store %arg18[%c0_71, %c0_72], %127 {strides = array<i32>} : memref<8x896xf32, #tpu.memory_space<vmem>>, vector<8x896xf32>,
    return
  }
  func.func @transform_0(%arg0: i32) -> (i32, i32) {
    %c0_i32 = arith.constant 0 : i32
    %c0_i32_0 = arith.constant 0 : i32
    %c0_i32_1 = arith.constant 0 : i32
    return %c0_i32, %c0_i32_0 : i32, i32
  }
  func.func @transform_1(%arg0: i32) -> (i32, i32) {
    %c0_i32 = arith.constant 0 : i32
    %c0_i32_0 = arith.constant 0 : i32
    %c0_i32_1 = arith.constant 0 : i32
    return %c0_i32, %c0_i32_0 : i32, i32
  }
  func.func @transform_2(%arg0: i32) -> (i32, i32) {
    %c0_i32 = arith.constant 0 : i32
    %c0_i32_0 = arith.constant 0 : i32
    %c0_i32_1 = arith.constant 0 : i32
    return %c0_i32, %c0_i32_0 : i32, i32
  }
  func.func @transform_3(%arg0: i32) -> (i32, i32) {
    %c0_i32 = arith.constant 0 : i32
    %c0_i32_0 = arith.constant 0 : i32
    %c0_i32_1 = arith.constant 0 : i32
    return %c0_i32, %c0_i32_0 : i32, i32
  }
  func.func @transform_4(%arg0: i32) -> (i32, i32) {
    %c0_i32 = arith.constant 0 : i32
    %c0_i32_0 = arith.constant 0 : i32
    %c0_i32_1 = arith.constant 0 : i32
    return %c0_i32, %c0_i32_0 : i32, i32
  }
  func.func @transform_5(%arg0: i32) -> (i32, i32) {
    %c0_i32 = arith.constant 0 : i32
    %c0_i32_0 = arith.constant 0 : i32
    %c0_i32_1 = arith.constant 0 : i32
    return %c0_i32, %c0_i32_0 : i32, i32
  }
  func.func @transform_6(%arg0: i32) -> (i32, i32) {
    %c0_i32 = arith.constant 0 : i32
    %c0_i32_0 = arith.constant 0 : i32
    %c0_i32_1 = arith.constant 0 : i32
    return %c0_i32, %c0_i32_0 : i32, i32
  }
  func.func @transform_7(%arg0: i32) -> (i32, i32) {
    %c0_i32 = arith.constant 0 : i32
    %c0_i32_0 = arith.constant 0 : i32
    %c0_i32_1 = arith.constant 0 : i32
    return %c0_i32, %c0_i32_0 : i32, i32
  }
  func.func @transform_8(%arg0: i32) -> (i32, i32) {
    %c0_i32 = arith.constant 0 : i32
    %c0_i32_0 = arith.constant 0 : i32
    %c0_i32_1 = arith.constant 0 : i32
    return %c0_i32, %c0_i32_0 : i32, i32
  }
  func.func @transform_9(%arg0: i32) -> (i32, i32) {
    %c0_i32 = arith.constant 0 : i32
    %c0_i32_0 = arith.constant 0 : i32
    %c0_i32_1 = arith.constant 0 : i32
    return %c0_i32, %c0_i32_0 : i32, i32
  }
  func.func @transform_10(%arg0: i32) -> (i32, i32) {
    %c0_i32 = arith.constant 0 : i32
    %c0_i32_0 = arith.constant 0 : i32
    %c0_i32_1 = arith.constant 0 : i32
    return %c0_i32, %c0_i32_0 : i32, i32
  }
  func.func @transform_11(%arg0: i32) -> (i32, i32) {
    %c0_i32 = arith.constant 0 : i32
    %c0_i32_0 = arith.constant 0 : i32
    %c0_i32_1 = arith.constant 0 : i32
    return %c0_i32, %c0_i32_0 : i32, i32
  }
  func.func @transform_12(%arg0: i32) -> (i32, i32) {
    %c0_i32 = arith.constant 0 : i32
    %c0_i32_0 = arith.constant 0 : i32
    %c0_i32_1 = arith.constant 0 : i32
    return %c0_i32, %c0_i32_0 : i32, i32
  }
  func.func @transform_13(%arg0: i32) -> (i32, i32) {
    %c0_i32 = arith.constant 0 : i32
    %c0_i32_0 = arith.constant 0 : i32
    %c0_i32_1 = arith.constant 0 : i32
    return %c0_i32, %c0_i32_0 : i32, i32
  }
  func.func @transform_14(%arg0: i32) -> (i32, i32) {
    %c0_i32 = arith.constant 0 : i32
    %c0_i32_0 = arith.constant 0 : i32
    %c0_i32_1 = arith.constant 0 : i32
    return %c0_i32, %c0_i32_0 : i32, i32
  }
  func.func @transform_15(%arg0: i32) -> (i32, i32) {
    %c0_i32 = arith.constant 0 : i32
    %c0_i32_0 = arith.constant 0 : i32
    %c0_i32_1 = arith.constant 0 : i32
    return %c0_i32, %c0_i32_0 : i32, i32
  }
  func.func @transform_16(%arg0: i32) -> (i32, i32) {
    %c0_i32 = arith.constant 0 : i32
    %c0_i32_0 = arith.constant 0 : i32
    %c0_i32_1 = arith.constant 0 : i32
    return %c0_i32, %c0_i32_0 : i32, i32
  }
  func.func @transform_17(%arg0: i32) -> (i32, i32) {
    %c0_i32 = arith.constant 0 : i32
    %c0_i32_0 = arith.constant 0 : i32
    %c0_i32_1 = arith.constant 0 : i32
    return %c0_i32, %c0_i32_0 : i32, i32
  }
}

</mosaic_0001>

<llo_original>
// kernel: tpu_custom_call.1
$region0: #{tpu_custom_call.1}
  #allocation0 [shape = 'u32[]', space=smem, size = 0x4, offset = 0x4, fixed_abs, tag = 'smem constant byte address 0x4 - core index']
  #allocation1 [shape = 'u32[72,128]{1,0:T(1,128)}', space=vmem, size = 0x9000, scoped, tag = 'internal scratch']
  %s0 = inlined_call_operand.hbm [shape: f32[8,896], index: 0, kind: input, shape index: {}]
  %s1 = inlined_call_operand.hbm [shape: bf16[896,512], index: 1, kind: input, shape index: {}]
  %s2 = inlined_call_operand.hbm [shape: f32[1,512], index: 2, kind: input, shape index: {}]
  %s3 = inlined_call_operand.hbm [shape: f32[1,512], index: 3, kind: input, shape index: {}]
  %s4 = inlined_call_operand.hbm [shape: f32[1,512], index: 4, kind: input, shape index: {}]
  %s5 = inlined_call_operand.hbm [shape: bf16[512,256], index: 5, kind: input, shape index: {}]
  %s6 = inlined_call_operand.vmem [shape: f32[1,256], index: 6, kind: input, shape index: {}]
  %s7 = inlined_call_operand.hbm [shape: f32[1,256], index: 7, kind: input, shape index: {}]
  %s8 = inlined_call_operand.hbm [shape: f32[1,256], index: 8, kind: input, shape index: {}]
  %s9 = inlined_call_operand.hbm [shape: bf16[256,128], index: 9, kind: input, shape index: {}]
  %s10 = inlined_call_operand.vmem [shape: f32[1,128], index: 10, kind: input, shape index: {}]
  %s11 = inlined_call_operand.hbm [shape: bf16[128,256], index: 11, kind: input, shape index: {}]
  %s12 = inlined_call_operand.hbm [shape: f32[1,256], index: 12, kind: input, shape index: {}]
  %s13 = inlined_call_operand.hbm [shape: bf16[256,512], index: 13, kind: input, shape index: {}]
  %s14 = inlined_call_operand.vmem [shape: f32[1,512], index: 14, kind: input, shape index: {}]
  %s15 = inlined_call_operand.hbm [shape: bf16[512,896], index: 15, kind: input, shape index: {}]
  %s16 = inlined_call_operand.vmem [shape: f32[1,896], index: 16, kind: input, shape index: {}]
  %s17 = inlined_call_operand.hbm [shape: f32[8,896], index: 17, kind: output, shape index: {}]
  %s18 = sld [smem:[#allocation0]]
  $region130: #{tpu_custom_call.1} parent=0
    _
  %s20 = ssub.s32 1, %s18
  %s21 = scalar_select 0, %s20, %s18
  $region1: #{tpu_custom_call.1} parent=0
    #allocation2 [shape = 'u8[28672]{0}', space=vmem, size = 0x7000, scoped, tag = 'input window, operand 0, single buffered']
    #allocation3 [shape = 's32[1]{0}', space=sflag, size = 0x4, scoped, tag = 'scoped memory for tpu_custom_call.1']
    #allocation4 [shape = 's32[1]{0}', space=sflag, size = 0x4, scoped, tag = 'scoped memory for tpu_custom_call.1']
    #allocation5 [shape = 'u8[917504]{0}', space=vmem, size = 0xe0000, scoped, tag = 'input window, operand 1, single buffered']
    #allocation6 [shape = 's32[1]{0}', space=sflag, size = 0x4, scoped, tag = 'scoped memory for tpu_custom_call.1']
    #allocation7 [shape = 'u8[2048]{0}', space=vmem, size = 0x800, scoped, tag = 'input window, operand 2, single buffered']
    #allocation8 [shape = 'u8[2048]{0}', space=vmem, size = 0x800, scoped, tag = 'input window, operand 3, single buffered']
    #allocation9 [shape = 's32[1]{0}', space=sflag, size = 0x4, scoped, tag = 'scoped memory for tpu_custom_call.1']
    #allocation10 [shape = 'u8[2048]{0}', space=vmem, size = 0x800, scoped, tag = 'input window, operand 4, single buffered']
    #allocation11 [shape = 'u8[262144]{0}', space=vmem, size = 0x40000, scoped, tag = 'input window, operand 5, single buffered']
    #allocation12 [shape = 's32[1]{0}', space=sflag, size = 0x4, scoped, tag = 'scoped memory for tpu_custom_call.1']
    #allocation13 [shape = 'u8[1024]{0}', space=vmem, size = 0x400, scoped, tag = 'input window, operand 7, single buffered']
    #allocation14 [shape = 'u8[1024]{0}', space=vmem, size = 0x400, scoped, tag = 'input window, operand 8, single buffered']
    #allocation15 [shape = 's32[1]{0}', space=sflag, size = 0x4, scoped, tag = 'scoped memory for tpu_custom_call.1']
    #allocation16 [shape = 'u8[65536]{0}', space=vmem, size = 0x10000, scoped, tag = 'input window, operand 9, single buffered']
    #allocation17 [shape = 'u8[65536]{0}', space=vmem, size = 0x10000, scoped, tag = 'input window, operand 11, single buffered']
    #allocation18 [shape = 's32[1]{0}', space=sflag, size = 0x4, scoped, tag = 'scoped memory for tpu_custom_call.1']
    #allocation19 [shape = 'u8[1024]{0}', space=vmem, size = 0x400, scoped, tag = 'input window, operand 12, single buffered']
    #allocation20 [shape = 'u8[262144]{0}', space=vmem, size = 0x40000, scoped, tag = 'input window, operand 13, single buffered']
    #allocation21 [shape = 's32[1]{0}', space=sflag, size = 0x4, scoped, tag = 'scoped memory for tpu_custom_call.1']
    #allocation22 [shape = 'u8[917504]{0}', space=vmem, size = 0xe0000, scoped, tag = 'input window, operand 15, single buffered']
    #allocation23 [shape = 'u8[28672]{0}', space=vmem, size = 0x7000, scoped, tag = 'output window, operand 0, single buffered']
    %22 = vsyncpa [#allocation3], 0
    %23 = vsyncpa [#allocation6], 0
    %24 = vsyncpa [#allocation9], 0
    %25 = vsyncpa [#allocation12], 0
    %26 = vsyncpa [#allocation15], 0
    %27 = vsyncpa [#allocation18], 0
    %28 = vsyncpa [#allocation21], 0
    %29 = vsyncpa [#allocation4], 0
    // Predicated region
    $region2: #{tpu_custom_call.1} parent=1 // pred_check
      _
    $region3: #{tpu_custom_call.1} parent=1 // pred_check_branch
      %31 = sbr.rel (0) target = $region5
    $region4: #{tpu_custom_call.1} parent=1 // pred_region
      %33 = vsyncadd [#allocation3], 0
      %s35 = sshll.u32 %s0, 4
      %s36 = int_to_ptr.hbm [resolvable:$true] %s35
      %s37 = sshll.u32 [#allocation2], 4
      %s38 = int_to_ptr.vmem [resolvable:$true] %s37
      %40 = dma.hbm_to_vmem [thread:$0]  %s36, 896, %s38, [#allocation3]
    $region5: #{tpu_custom_call.1} parent=1 // pred_fallthru
      _
    // Predicated region
    $region6: #{tpu_custom_call.1} parent=1 // pred_check
      _
    $region7: #{tpu_custom_call.1} parent=1 // pred_check_branch
      %42 = sbr.rel (0) target = $region9
    $region8: #{tpu_custom_call.1} parent=1 // pred_region
      %44 = vsyncadd [#allocation6], 0
      %s45 = sshll.u32 %s1, 4
      %s46 = int_to_ptr.hbm [resolvable:$true] %s45
      %s47 = sshll.u32 [#allocation5], 4
      %s48 = int_to_ptr.vmem [resolvable:$true] %s47
      %53 = dma.hbm_to_vmem [thread:$0]  %s46, 28672, %s48, [#allocation6], 256, 256, 16
    $region9: #{tpu_custom_call.1} parent=1 // pred_fallthru
      _
    // Predicated region
    $region10: #{tpu_custom_call.1} parent=1 // pred_check
      _
    $region11: #{tpu_custom_call.1} parent=1 // pred_check_branch
      %55 = sbr.rel (0) target = $region13
    $region12: #{tpu_custom_call.1} parent=1 // pred_region
      %57 = vsyncadd [#allocation6], 0
      %s59 = sshll.u32 %s2, 4
      %s60 = int_to_ptr.hbm [resolvable:$true] %s59
      %s61 = sshll.u32 [#allocation7], 4
      %s62 = int_to_ptr.vmem [resolvable:$true] %s61
      %64 = dma.hbm_to_vmem [thread:$0]  %s60, 64, %s62, [#allocation6]
    $region13: #{tpu_custom_call.1} parent=1 // pred_fallthru
      _
    // Predicated region
    $region14: #{tpu_custom_call.1} parent=1 // pred_check
      _
    $region15: #{tpu_custom_call.1} parent=1 // pred_check_branch
      %66 = sbr.rel (0) target = $region17
    $region16: #{tpu_custom_call.1} parent=1 // pred_region
      %68 = vsyncadd [#allocation9], 0
      %s70 = sshll.u32 %s3, 4
      %s71 = int_to_ptr.hbm [resolvable:$true] %s70
      %s72 = sshll.u32 [#allocation8], 4
      %s73 = int_to_ptr.vmem [resolvable:$true] %s72
      %75 = dma.hbm_to_vmem [thread:$0]  %s71, 64, %s73, [#allocation9]
    $region17: #{tpu_custom_call.1} parent=1 // pred_fallthru
      _
    // Predicated region
    $region18: #{tpu_custom_call.1} parent=1 // pred_check
      _
    $region19: #{tpu_custom_call.1} parent=1 // pred_check_branch
      %77 = sbr.rel (0) target = $region21
    $region20: #{tpu_custom_call.1} parent=1 // pred_region
      %79 = vsyncadd [#allocation9], 0
      %s81 = sshll.u32 %s4, 4
      %s82 = int_to_ptr.hbm [resolvable:$true] %s81
      %s83 = sshll.u32 [#allocation10], 4
      %s84 = int_to_ptr.vmem [resolvable:$true] %s83
      %86 = dma.hbm_to_vmem [thread:$0]  %s82, 64, %s84, [#allocation9]
    $region21: #{tpu_custom_call.1} parent=1 // pred_fallthru
      _
    // Predicated region
    $region22: #{tpu_custom_call.1} parent=1 // pred_check
      _
    $region23: #{tpu_custom_call.1} parent=1 // pred_check_branch
      %88 = sbr.rel (0) target = $region25
    $region24: #{tpu_custom_call.1} parent=1 // pred_region
      %90 = vsyncadd [#allocation12], 0
      %s91 = sshll.u32 %s5, 4
      %s92 = int_to_ptr.hbm [resolvable:$true] %s91
      %s93 = sshll.u32 [#allocation11], 4
      %s94 = int_to_ptr.vmem [resolvable:$true] %s93
      %99 = dma.hbm_to_vmem [thread:$0]  %s92, 8192, %s94, [#allocation12], 128, 128, 8
    $region25: #{tpu_custom_call.1} parent=1 // pred_fallthru
      _
    // Predicated region
    $region26: #{tpu_custom_call.1} parent=1 // pred_check
      _
    $region27: #{tpu_custom_call.1} parent=1 // pred_check_branch
      %101 = sbr.rel (0) target = $region29
    $region28: #{tpu_custom_call.1} parent=1 // pred_region
      _
    $region29: #{tpu_custom_call.1} parent=1 // pred_fallthru
      _
    // Predicated region
    $region30: #{tpu_custom_call.1} parent=1 // pred_check
      _
    $region31: #{tpu_custom_call.1} parent=1 // pred_check_branch
      %103 = sbr.rel (0) target = $region33
    $region32: #{tpu_custom_call.1} parent=1 // pred_region
      %105 = vsyncadd [#allocation12], 0
      %s107 = sshll.u32 %s7, 4
      %s108 = int_to_ptr.hbm [resolvable:$true] %s107
      %s109 = sshll.u32 [#allocation13], 4
      %s110 = int_to_ptr.vmem [resolvable:$true] %s109
      %112 = dma.hbm_to_vmem [thread:$0]  %s108, 32, %s110, [#allocation12]
    $region33: #{tpu_custom_call.1} parent=1 // pred_fallthru
      _
    // Predicated region
    $region34: #{tpu_custom_call.1} parent=1 // pred_check
      _
    $region35: #{tpu_custom_call.1} parent=1 // pred_check_branch
      %114 = sbr.rel (0) target = $region37
    $region36: #{tpu_custom_call.1} parent=1 // pred_region
      %116 = vsyncadd [#allocation15], 0
      %s118 = sshll.u32 %s8, 4
      %s119 = int_to_ptr.hbm [resolvable:$true] %s118
      %s120 = sshll.u32 [#allocation14], 4
      %s121 = int_to_ptr.vmem [resolvable:$true] %s120
      %123 = dma.hbm_to_vmem [thread:$0]  %s119, 32, %s121, [#allocation15]
    $region37: #{tpu_custom_call.1} parent=1 // pred_fallthru
      _
    // Predicated region
    $region38: #{tpu_custom_call.1} parent=1 // pred_check
      _
    $region39: #{tpu_custom_call.1} parent=1 // pred_check_branch
      %125 = sbr.rel (0) target = $region41
    $region40: #{tpu_custom_call.1} parent=1 // pred_region
      %127 = vsyncadd [#allocation15], 0
      %s128 = sshll.u32 %s9, 4
      %s129 = int_to_ptr.hbm [resolvable:$true] %s128
      %s130 = sshll.u32 [#allocation16], 4
      %s131 = int_to_ptr.vmem [resolvable:$true] %s130
      %136 = dma.hbm_to_vmem [thread:$0]  %s129, 2048, %s131, [#allocation15], 64, 64, 4
    $region41: #{tpu_custom_call.1} parent=1 // pred_fallthru
      _
    // Predicated region
    $region42: #{tpu_custom_call.1} parent=1 // pred_check
      _
    $region43: #{tpu_custom_call.1} parent=1 // pred_check_branch
      %138 = sbr.rel (0) target = $region45
    $region44: #{tpu_custom_call.1} parent=1 // pred_region
      _
    $region45: #{tpu_custom_call.1} parent=1 // pred_fallthru
      _
    // Predicated region
    $region46: #{tpu_custom_call.1} parent=1 // pred_check
      _
    $region47: #{tpu_custom_call.1} parent=1 // pred_check_branch
      %140 = sbr.rel (0) target = $region49
    $region48: #{tpu_custom_call.1} parent=1 // pred_region
      %142 = vsyncadd [#allocation18], 0
      %s143 = sshll.u32 %s11, 4
      %s144 = int_to_ptr.hbm [resolvable:$true] %s143
      %s145 = sshll.u32 [#allocation17], 4
      %s146 = int_to_ptr.vmem [resolvable:$true] %s145
      %151 = dma.hbm_to_vmem [thread:$0]  %s144, 2048, %s146, [#allocation18], 128, 128, 8
    $region49: #{tpu_custom_call.1} parent=1 // pred_fallthru
      _
    // Predicated region
    $region50: #{tpu_custom_call.1} parent=1 // pred_check
      _
    $region51: #{tpu_custom_call.1} parent=1 // pred_check_branch
      %153 = sbr.rel (0) target = $region53
    $region52: #{tpu_custom_call.1} parent=1 // pred_region
      %155 = vsyncadd [#allocation18], 0
      %s157 = sshll.u32 %s12, 4
      %s158 = int_to_ptr.hbm [resolvable:$true] %s157
      %s159 = sshll.u32 [#allocation19], 4
      %s160 = int_to_ptr.vmem [resolvable:$true] %s159
      %162 = dma.hbm_to_vmem [thread:$0]  %s158, 32, %s160, [#allocation18]
    $region53: #{tpu_custom_call.1} parent=1 // pred_fallthru
      _
    // Predicated region
    $region54: #{tpu_custom_call.1} parent=1 // pred_check
      _
    $region55: #{tpu_custom_call.1} parent=1 // pred_check_branch
      %164 = sbr.rel (0) target = $region57
    $region56: #{tpu_custom_call.1} parent=1 // pred_region
      %166 = vsyncadd [#allocation21], 0
      %s167 = sshll.u32 %s13, 4
      %s168 = int_to_ptr.hbm [resolvable:$true] %s167
      %s169 = sshll.u32 [#allocation20], 4
      %s170 = int_to_ptr.vmem [resolvable:$true] %s169
      %175 = dma.hbm_to_vmem [thread:$0]  %s168, 8192, %s170, [#allocation21], 256, 256, 16
    $region57: #{tpu_custom_call.1} parent=1 // pred_fallthru
      _
    // Predicated region
    $region58: #{tpu_custom_call.1} parent=1 // pred_check
      _
    $region59: #{tpu_custom_call.1} parent=1 // pred_check_branch
      %177 = sbr.rel (0) target = $region61
    $region60: #{tpu_custom_call.1} parent=1 // pred_region
      _
    $region61: #{tpu_custom_call.1} parent=1 // pred_fallthru
      _
    // Predicated region
    $region62: #{tpu_custom_call.1} parent=1 // pred_check
      _
    $region63: #{tpu_custom_call.1} parent=1 // pred_check_branch
      %179 = sbr.rel (0) target = $region65
    $region64: #{tpu_custom_call.1} parent=1 // pred_region
      %181 = vsyncadd [#allocation21], 0
      %s182 = sshll.u32 %s15, 4
      %s183 = int_to_ptr.hbm [resolvable:$true] %s182
      %s184 = sshll.u32 [#allocation22], 4
      %s185 = int_to_ptr.vmem [resolvable:$true] %s184
      %190 = dma.hbm_to_vmem [thread:$0]  %s183, 28672, %s185, [#allocation21], 448, 448, 28
    $region65: #{tpu_custom_call.1} parent=1 // pred_fallthru
      _
    // Predicated region
    $region66: #{tpu_custom_call.1} parent=1 // pred_check
      _
    $region67: #{tpu_custom_call.1} parent=1 // pred_check_branch
      %192 = sbr.rel (0) target = $region69
    $region68: #{tpu_custom_call.1} parent=1 // pred_region
      _
    $region69: #{tpu_custom_call.1} parent=1 // pred_fallthru
      _
    // Predicated region
    $region70: #{tpu_custom_call.1} parent=1 // pred_check
      _
    $region71: #{tpu_custom_call.1} parent=1 // pred_check_branch
      %194 = sbr.rel (0) target = $region73
    $region72: #{tpu_custom_call.1} parent=1 // pred_region
      %196 = dma.done [#allocation3], 896
    $region73: #{tpu_custom_call.1} parent=1 // pred_fallthru
      _
    // Predicated region
    $region74: #{tpu_custom_call.1} parent=1 // pred_check
      _
    $region75: #{tpu_custom_call.1} parent=1 // pred_check_branch
      %198 = sbr.rel (0) target = $region77
    $region76: #{tpu_custom_call.1} parent=1 // pred_region
      %200 = dma.done [#allocation6], 28672
    $region77: #{tpu_custom_call.1} parent=1 // pred_fallthru
      _
    // Predicated region
    $region78: #{tpu_custom_call.1} parent=1 // pred_check
      _
    $region79: #{tpu_custom_call.1} parent=1 // pred_check_branch
      %202 = sbr.rel (0) target = $region81
    $region80: #{tpu_custom_call.1} parent=1 // pred_region
      %204 = dma.done [#allocation6], 64
    $region81: #{tpu_custom_call.1} parent=1 // pred_fallthru
      _
    // Predicated region
    $region82: #{tpu_custom_call.1} parent=1 // pred_check
      _
    $region83: #{tpu_custom_call.1} parent=1 // pred_check_branch
      %206 = sbr.rel (0) target = $region85
    $region84: #{tpu_custom_call.1} parent=1 // pred_region
      %208 = dma.done [#allocation9], 64
    $region85: #{tpu_custom_call.1} parent=1 // pred_fallthru
      _
    // Predicated region
    $region86: #{tpu_custom_call.1} parent=1 // pred_check
      _
    $region87: #{tpu_custom_call.1} parent=1 // pred_check_branch
      %210 = sbr.rel (0) target = $region89
    $region88: #{tpu_custom_call.1} parent=1 // pred_region
      %212 = dma.done [#allocation9], 64
    $region89: #{tpu_custom_call.1} parent=1 // pred_fallthru
      _
    // Predicated region
    $region90: #{tpu_custom_call.1} parent=1 // pred_check
      _
    $region91: #{tpu_custom_call.1} parent=1 // pred_check_branch
      %214 = sbr.rel (0) target = $region93
    $region92: #{tpu_custom_call.1} parent=1 // pred_region
      %216 = dma.done [#allocation12], 8192
    $region93: #{tpu_custom_call.1} parent=1 // pred_fallthru
      _
    // Predicated region
    $region94: #{tpu_custom_call.1} parent=1 // pred_check
      _
    $region95: #{tpu_custom_call.1} parent=1 // pred_check_branch
      %218 = sbr.rel (0) target = $region97
    $region96: #{tpu_custom_call.1} parent=1 // pred_region
      %220 = dma.done [#allocation12], 32
    $region97: #{tpu_custom_call.1} parent=1 // pred_fallthru
      _
    // Predicated region
    $region98: #{tpu_custom_call.1} parent=1 // pred_check
      _
    $region99: #{tpu_custom_call.1} parent=1 // pred_check_branch
      %222 = sbr.rel (0) target = $region101
    $region100: #{tpu_custom_call.1} parent=1 // pred_region
      %224 = dma.done [#allocation15], 32
    $region101: #{tpu_custom_call.1} parent=1 // pred_fallthru
      _
    // Predicated region
    $region102: #{tpu_custom_call.1} parent=1 // pred_check
      _
    $region103: #{tpu_custom_call.1} parent=1 // pred_check_branch
      %226 = sbr.rel (0) target = $region105
    $region104: #{tpu_custom_call.1} parent=1 // pred_region
      %228 = dma.done [#allocation15], 2048
    $region105: #{tpu_custom_call.1} parent=1 // pred_fallthru
      _
    // Predicated region
    $region106: #{tpu_custom_call.1} parent=1 // pred_check
      _
    $region107: #{tpu_custom_call.1} parent=1 // pred_check_branch
      %230 = sbr.rel (0) target = $region109
    $region108: #{tpu_custom_call.1} parent=1 // pred_region
      %232 = dma.done [#allocation18], 2048
    $region109: #{tpu_custom_call.1} parent=1 // pred_fallthru
      _
    // Predicated region
    $region110: #{tpu_custom_call.1} parent=1 // pred_check
      _
    $region111: #{tpu_custom_call.1} parent=1 // pred_check_branch
      %234 = sbr.rel (0) target = $region113
    $region112: #{tpu_custom_call.1} parent=1 // pred_region
      %236 = dma.done [#allocation18], 32
    $region113: #{tpu_custom_call.1} parent=1 // pred_fallthru
      _
    // Predicated region
    $region114: #{tpu_custom_call.1} parent=1 // pred_check
      _
    $region115: #{tpu_custom_call.1} parent=1 // pred_check_branch
      %238 = sbr.rel (0) target = $region117
    $region116: #{tpu_custom_call.1} parent=1 // pred_region
      %240 = dma.done [#allocation21], 8192
    $region117: #{tpu_custom_call.1} parent=1 // pred_fallthru
      _
    // Predicated region
    $region118: #{tpu_custom_call.1} parent=1 // pred_check
      _
    $region119: #{tpu_custom_call.1} parent=1 // pred_check_branch
      %242 = sbr.rel (0) target = $region121
    $region120: #{tpu_custom_call.1} parent=1 // pred_region
      %244 = dma.done [#allocation21], 28672
    $region121: #{tpu_custom_call.1} parent=1 // pred_fallthru
      _
    %v245 = vld [vmem:[#allocation2] sm:$0xff]
    %v246 = vld [vmem:[#allocation2 + $0x8] sm:$0xff]
    %v247 = vld [vmem:[#allocation2 + $0x10] sm:$0xff]
    %v248 = vld [vmem:[#allocation2 + $0x18] sm:$0xff]
    %v249 = vld [vmem:[#allocation2 + $0x20] sm:$0xff]
    %v250 = vld [vmem:[#allocation2 + $0x28] sm:$0xff]
    %v251 = vld [vmem:[#allocation2 + $0x30] sm:$0xff]
    %v252 = vld [vmem:[#allocation5] sm:$0xff]
    %v253 = vld [vmem:[#allocation5 + $0x8] sm:$0xff]
    %v254 = vld [vmem:[#allocation5 + $0x10] sm:$0xff]
    %v255 = vld [vmem:[#allocation5 + $0x18] sm:$0xff]
    %v256 = vld [vmem:[#allocation5 + $0x20] sm:$0xff]
    %v257 = vld [vmem:[#allocation5 + $0x28] sm:$0xff]
    %v258 = vld [vmem:[#allocation5 + $0x30] sm:$0xff]
    %v259 = vld [vmem:[#allocation5 + $0x38] sm:$0xff]
    %v260 = vld [vmem:[#allocation5 + $0x40] sm:$0xff]
    %v261 = vld [vmem:[#allocation5 + $0x48] sm:$0xff]
    %v262 = vld [vmem:[#allocation5 + $0x50] sm:$0xff]
    %v263 = vld [vmem:[#allocation5 + $0x58] sm:$0xff]
    %v264 = vld [vmem:[#allocation5 + $0x60] sm:$0xff]
    %v265 = vld [vmem:[#allocation5 + $0x68] sm:$0xff]
    %v266 = vld [vmem:[#allocation5 + $0x70] sm:$0xff]
    %v267 = vld [vmem:[#allocation5 + $0x78] sm:$0xff]
    %v268 = vld [vmem:[#allocation5 + $0x80] sm:$0xff]
    %v269 = vld [vmem:[#allocation5 + $0x88] sm:$0xff]
    %v270 = vld [vmem:[#allocation5 + $0x90] sm:$0xff]
    %v271 = vld [vmem:[#allocation5 + $0x98] sm:$0xff]
    %v272 = vld [vmem:[#allocation5 + $0xa0] sm:$0xff]
    %v273 = vld [vmem:[#allocation5 + $0xa8] sm:$0xff]
    %v274 = vld [vmem:[#allocation5 + $0xb0] sm:$0xff]
    %v275 = vld [vmem:[#allocation5 + $0xb8] sm:$0xff]
    %v276 = vld [vmem:[#allocation5 + $0xc0] sm:$0xff]
    %v277 = vld [vmem:[#allocation5 + $0xc8] sm:$0xff]
    %v278 = vld [vmem:[#allocation5 + $0xd0] sm:$0xff]
    %v279 = vld [vmem:[#allocation5 + $0xd8] sm:$0xff]
    %v280 = vld [vmem:[#allocation5 + $0xe0] sm:$0xff]
    %v281 = vld [vmem:[#allocation5 + $0xe8] sm:$0xff]
    %v282 = vld [vmem:[#allocation5 + $0xf0] sm:$0xff]
    %v283 = vld [vmem:[#allocation5 + $0xf8] sm:$0xff]
    %v284 = vld [vmem:[#allocation5 + $0x100] sm:$0xff]
    %v285 = vld [vmem:[#allocation5 + $0x108] sm:$0xff]
    %v286 = vld [vmem:[#allocation5 + $0x110] sm:$0xff]
    %v287 = vld [vmem:[#allocation5 + $0x118] sm:$0xff]
    %v288 = vld [vmem:[#allocation5 + $0x120] sm:$0xff]
    %v289 = vld [vmem:[#allocation5 + $0x128] sm:$0xff]
    %v290 = vld [vmem:[#allocation5 + $0x130] sm:$0xff]
    %v291 = vld [vmem:[#allocation5 + $0x138] sm:$0xff]
    %v292 = vld [vmem:[#allocation5 + $0x140] sm:$0xff]
    %v293 = vld [vmem:[#allocation5 + $0x148] sm:$0xff]
    %v294 = vld [vmem:[#allocation5 + $0x150] sm:$0xff]
    %v295 = vld [vmem:[#allocation5 + $0x158] sm:$0xff]
    %v296 = vld [vmem:[#allocation5 + $0x160] sm:$0xff]
    %v297 = vld [vmem:[#allocation5 + $0x168] sm:$0xff]
    %v298 = vld [vmem:[#allocation5 + $0x170] sm:$0xff]
    %v299 = vld [vmem:[#allocation5 + $0x178] sm:$0xff]
    %v300 = vld [vmem:[#allocation5 + $0x180] sm:$0xff]
    %v301 = vld [vmem:[#allocation5 + $0x188] sm:$0xff]
    %v302 = vld [vmem:[#allocation5 + $0x190] sm:$0xff]
    %v303 = vld [vmem:[#allocation5 + $0x198] sm:$0xff]
    %v304 = vld [vmem:[#allocation5 + $0x1a0] sm:$0xff]
    %v305 = vld [vmem:[#allocation5 + $0x1a8] sm:$0xff]
    %v306 = vld [vmem:[#allocation5 + $0x1b0] sm:$0xff]
    %v307 = vld [vmem:[#allocation5 + $0x1b8] sm:$0xff]
    %v308 = vld [vmem:[#allocation5 + $0x1c0] sm:$0xff]
    %v309 = vld [vmem:[#allocation5 + $0x1c8] sm:$0xff]
    %v310 = vld [vmem:[#allocation5 + $0x1d0] sm:$0xff]
    %v311 = vld [vmem:[#allocation5 + $0x1d8] sm:$0xff]
    %v312 = vld [vmem:[#allocation5 + $0x1e0] sm:$0xff]
    %v313 = vld [vmem:[#allocation5 + $0x1e8] sm:$0xff]
    %v314 = vld [vmem:[#allocation5 + $0x1f0] sm:$0xff]
    %v315 = vld [vmem:[#allocation5 + $0x1f8] sm:$0xff]
    %v316 = vld [vmem:[#allocation5 + $0x200] sm:$0xff]
    %v317 = vld [vmem:[#allocation5 + $0x208] sm:$0xff]
    %v318 = vld [vmem:[#allocation5 + $0x210] sm:$0xff]
    %v319 = vld [vmem:[#allocation5 + $0x218] sm:$0xff]
    %v320 = vld [vmem:[#allocation5 + $0x220] sm:$0xff]
    %v321 = vld [vmem:[#allocation5 + $0x228] sm:$0xff]
    %v322 = vld [vmem:[#allocation5 + $0x230] sm:$0xff]
    %v323 = vld [vmem:[#allocation5 + $0x238] sm:$0xff]
    %v324 = vld [vmem:[#allocation5 + $0x240] sm:$0xff]
    %v325 = vld [vmem:[#allocation5 + $0x248] sm:$0xff]
    %v326 = vld [vmem:[#allocation5 + $0x250] sm:$0xff]
    %v327 = vld [vmem:[#allocation5 + $0x258] sm:$0xff]
    %v328 = vld [vmem:[#allocation5 + $0x260] sm:$0xff]
    %v329 = vld [vmem:[#allocation5 + $0x268] sm:$0xff]
    %v330 = vld [vmem:[#allocation5 + $0x270] sm:$0xff]
    %v331 = vld [vmem:[#allocation5 + $0x278] sm:$0xff]
    %v332 = vld [vmem:[#allocation5 + $0x280] sm:$0xff]
    %v333 = vld [vmem:[#allocation5 + $0x288] sm:$0xff]
    %v334 = vld [vmem:[#allocation5 + $0x290] sm:$0xff]
    %v335 = vld [vmem:[#allocation5 + $0x298] sm:$0xff]
    %v336 = vld [vmem:[#allocation5 + $0x2a0] sm:$0xff]
    %v337 = vld [vmem:[#allocation5 + $0x2a8] sm:$0xff]
    %v338 = vld [vmem:[#allocation5 + $0x2b0] sm:$0xff]
    %v339 = vld [vmem:[#allocation5 + $0x2b8] sm:$0xff]
    %v340 = vld [vmem:[#allocation5 + $0x2c0] sm:$0xff]
    %v341 = vld [vmem:[#allocation5 + $0x2c8] sm:$0xff]
    %v342 = vld [vmem:[#allocation5 + $0x2d0] sm:$0xff]
    %v343 = vld [vmem:[#allocation5 + $0x2d8] sm:$0xff]
    %v344 = vld [vmem:[#allocation5 + $0x2e0] sm:$0xff]
    %v345 = vld [vmem:[#allocation5 + $0x2e8] sm:$0xff]
    %v346 = vld [vmem:[#allocation5 + $0x2f0] sm:$0xff]
    %v347 = vld [vmem:[#allocation5 + $0x2f8] sm:$0xff]
    %v348 = vld [vmem:[#allocation5 + $0x300] sm:$0xff]
    %v349 = vld [vmem:[#allocation5 + $0x308] sm:$0xff]
    %v350 = vld [vmem:[#allocation5 + $0x310] sm:$0xff]
    %v351 = vld [vmem:[#allocation5 + $0x318] sm:$0xff]
    %v352 = vld [vmem:[#allocation5 + $0x320] sm:$0xff]
    %v353 = vld [vmem:[#allocation5 + $0x328] sm:$0xff]
    %v354 = vld [vmem:[#allocation5 + $0x330] sm:$0xff]
    %v355 = vld [vmem:[#allocation5 + $0x338] sm:$0xff]
    %v356 = vld [vmem:[#allocation5 + $0x340] sm:$0xff]
    %v357 = vld [vmem:[#allocation5 + $0x348] sm:$0xff]
    %v358 = vld [vmem:[#allocation5 + $0x350] sm:$0xff]
    %v359 = vld [vmem:[#allocation5 + $0x358] sm:$0xff]
    %v360 = vld [vmem:[#allocation5 + $0x360] sm:$0xff]
    %v361 = vld [vmem:[#allocation5 + $0x368] sm:$0xff]
    %v362 = vld [vmem:[#allocation5 + $0x370] sm:$0xff]
    %v363 = vld [vmem:[#allocation5 + $0x378] sm:$0xff]
    %v364 = vld [vmem:[#allocation5 + $0x380] sm:$0xff]
    %v365 = vld [vmem:[#allocation5 + $0x388] sm:$0xff]
    %v366 = vld [vmem:[#allocation5 + $0x390] sm:$0xff]
    %v367 = vld [vmem:[#allocation5 + $0x398] sm:$0xff]
    %v368 = vld [vmem:[#allocation5 + $0x3a0] sm:$0xff]
    %v369 = vld [vmem:[#allocation5 + $0x3a8] sm:$0xff]
    %v370 = vld [vmem:[#allocation5 + $0x3b0] sm:$0xff]
    %v371 = vld [vmem:[#allocation5 + $0x3b8] sm:$0xff]
    %v372 = vld [vmem:[#allocation5 + $0x3c0] sm:$0xff]
    %v373 = vld [vmem:[#allocation5 + $0x3c8] sm:$0xff]
    %v374 = vld [vmem:[#allocation5 + $0x3d0] sm:$0xff]
    %v375 = vld [vmem:[#allocation5 + $0x3d8] sm:$0xff]
    %v376 = vld [vmem:[#allocation5 + $0x3e0] sm:$0xff]
    %v377 = vld [vmem:[#allocation5 + $0x3e8] sm:$0xff]
    %v378 = vld [vmem:[#allocation5 + $0x3f0] sm:$0xff]
    %v379 = vld [vmem:[#allocation5 + $0x3f8] sm:$0xff]
    %v380 = vld [vmem:[#allocation5 + $0x400] sm:$0xff]
    %v381 = vld [vmem:[#allocation5 + $0x408] sm:$0xff]
    %v382 = vld [vmem:[#allocation5 + $0x410] sm:$0xff]
    %v383 = vld [vmem:[#allocation5 + $0x418] sm:$0xff]
    %v384 = vld [vmem:[#allocation5 + $0x420] sm:$0xff]
    %v385 = vld [vmem:[#allocation5 + $0x428] sm:$0xff]
    %v386 = vld [vmem:[#allocation5 + $0x430] sm:$0xff]
    %v387 = vld [vmem:[#allocation5 + $0x438] sm:$0xff]
    %v388 = vld [vmem:[#allocation5 + $0x440] sm:$0xff]
    %v389 = vld [vmem:[#allocation5 + $0x448] sm:$0xff]
    %v390 = vld [vmem:[#allocation5 + $0x450] sm:$0xff]
    %v391 = vld [vmem:[#allocation5 + $0x458] sm:$0xff]
    %v392 = vld [vmem:[#allocation5 + $0x460] sm:$0xff]
    %v393 = vld [vmem:[#allocation5 + $0x468] sm:$0xff]
    %v394 = vld [vmem:[#allocation5 + $0x470] sm:$0xff]
    %v395 = vld [vmem:[#allocation5 + $0x478] sm:$0xff]
    %v396 = vld [vmem:[#allocation5 + $0x480] sm:$0xff]
    %v397 = vld [vmem:[#allocation5 + $0x488] sm:$0xff]
    %v398 = vld [vmem:[#allocation5 + $0x490] sm:$0xff]
    %v399 = vld [vmem:[#allocation5 + $0x498] sm:$0xff]
    %v400 = vld [vmem:[#allocation5 + $0x4a0] sm:$0xff]
    %v401 = vld [vmem:[#allocation5 + $0x4a8] sm:$0xff]
    %v402 = vld [vmem:[#allocation5 + $0x4b0] sm:$0xff]
    %v403 = vld [vmem:[#allocation5 + $0x4b8] sm:$0xff]
    %v404 = vld [vmem:[#allocation5 + $0x4c0] sm:$0xff]
    %v405 = vld [vmem:[#allocation5 + $0x4c8] sm:$0xff]
    %v406 = vld [vmem:[#allocation5 + $0x4d0] sm:$0xff]
    %v407 = vld [vmem:[#allocation5 + $0x4d8] sm:$0xff]
    %v408 = vld [vmem:[#allocation5 + $0x4e0] sm:$0xff]
    %v409 = vld [vmem:[#allocation5 + $0x4e8] sm:$0xff]
    %v410 = vld [vmem:[#allocation5 + $0x4f0] sm:$0xff]
    %v411 = vld [vmem:[#allocation5 + $0x4f8] sm:$0xff]
    %v412 = vld [vmem:[#allocation5 + $0x500] sm:$0xff]
    %v413 = vld [vmem:[#allocation5 + $0x508] sm:$0xff]
    %v414 = vld [vmem:[#allocation5 + $0x510] sm:$0xff]
    %v415 = vld [vmem:[#allocation5 + $0x518] sm:$0xff]
    %v416 = vld [vmem:[#allocation5 + $0x520] sm:$0xff]
    %v417 = vld [vmem:[#allocation5 + $0x528] sm:$0xff]
    %v418 = vld [vmem:[#allocation5 + $0x530] sm:$0xff]
    %v419 = vld [vmem:[#allocation5 + $0x538] sm:$0xff]
    %v420 = vld [vmem:[#allocation5 + $0x540] sm:$0xff]
    %v421 = vld [vmem:[#allocation5 + $0x548] sm:$0xff]
    %v422 = vld [vmem:[#allocation5 + $0x550] sm:$0xff]
    %v423 = vld [vmem:[#allocation5 + $0x558] sm:$0xff]
    %v424 = vld [vmem:[#allocation5 + $0x560] sm:$0xff]
    %v425 = vld [vmem:[#allocation5 + $0x568] sm:$0xff]
    %v426 = vld [vmem:[#allocation5 + $0x570] sm:$0xff]
    %v427 = vld [vmem:[#allocation5 + $0x578] sm:$0xff]
    %v428 = vld [vmem:[#allocation5 + $0x580] sm:$0xff]
    %v429 = vld [vmem:[#allocation5 + $0x588] sm:$0xff]
    %v430 = vld [vmem:[#allocation5 + $0x590] sm:$0xff]
    %v431 = vld [vmem:[#allocation5 + $0x598] sm:$0xff]
    %v432 = vld [vmem:[#allocation5 + $0x5a0] sm:$0xff]
    %v433 = vld [vmem:[#allocation5 + $0x5a8] sm:$0xff]
    %v434 = vld [vmem:[#allocation5 + $0x5b0] sm:$0xff]
    %v435 = vld [vmem:[#allocation5 + $0x5b8] sm:$0xff]
    %v436 = vld [vmem:[#allocation5 + $0x5c0] sm:$0xff]
    %v437 = vld [vmem:[#allocation5 + $0x5c8] sm:$0xff]
    %v438 = vld [vmem:[#allocation5 + $0x5d0] sm:$0xff]
    %v439 = vld [vmem:[#allocation5 + $0x5d8] sm:$0xff]
    %v440 = vld [vmem:[#allocation5 + $0x5e0] sm:$0xff]
    %v441 = vld [vmem:[#allocation5 + $0x5e8] sm:$0xff]
    %v442 = vld [vmem:[#allocation5 + $0x5f0] sm:$0xff]
    %v443 = vld [vmem:[#allocation5 + $0x5f8] sm:$0xff]
    %v444 = vld [vmem:[#allocation5 + $0x600] sm:$0xff]
    %v445 = vld [vmem:[#allocation5 + $0x608] sm:$0xff]
    %v446 = vld [vmem:[#allocation5 + $0x610] sm:$0xff]
    %v447 = vld [vmem:[#allocation5 + $0x618] sm:$0xff]
    %v448 = vld [vmem:[#allocation5 + $0x620] sm:$0xff]
    %v449 = vld [vmem:[#allocation5 + $0x628] sm:$0xff]
    %v450 = vld [vmem:[#allocation5 + $0x630] sm:$0xff]
    %v451 = vld [vmem:[#allocation5 + $0x638] sm:$0xff]
    %v452 = vld [vmem:[#allocation5 + $0x640] sm:$0xff]
    %v453 = vld [vmem:[#allocation5 + $0x648] sm:$0xff]
    %v454 = vld [vmem:[#allocation5 + $0x650] sm:$0xff]
    %v455 = vld [vmem:[#allocation5 + $0x658] sm:$0xff]
    %v456 = vld [vmem:[#allocation5 + $0x660] sm:$0xff]
    %v457 = vld [vmem:[#allocation5 + $0x668] sm:$0xff]
    %v458 = vld [vmem:[#allocation5 + $0x670] sm:$0xff]
    %v459 = vld [vmem:[#allocation5 + $0x678] sm:$0xff]
    %v460 = vld [vmem:[#allocation5 + $0x680] sm:$0xff]
    %v461 = vld [vmem:[#allocation5 + $0x688] sm:$0xff]
    %v462 = vld [vmem:[#allocation5 + $0x690] sm:$0xff]
    %v463 = vld [vmem:[#allocation5 + $0x698] sm:$0xff]
    %v464 = vld [vmem:[#allocation5 + $0x6a0] sm:$0xff]
    %v465 = vld [vmem:[#allocation5 + $0x6a8] sm:$0xff]
    %v466 = vld [vmem:[#allocation5 + $0x6b0] sm:$0xff]
    %v467 = vld [vmem:[#allocation5 + $0x6b8] sm:$0xff]
    %v468 = vld [vmem:[#allocation5 + $0x6c0] sm:$0xff]
    %v469 = vld [vmem:[#allocation5 + $0x6c8] sm:$0xff]
    %v470 = vld [vmem:[#allocation5 + $0x6d0] sm:$0xff]
    %v471 = vld [vmem:[#allocation5 + $0x6d8] sm:$0xff]
    %v472 = vld [vmem:[#allocation5 + $0x6e0] sm:$0xff]
    %v473 = vld [vmem:[#allocation5 + $0x6e8] sm:$0xff]
    %v474 = vld [vmem:[#allocation5 + $0x6f0] sm:$0xff]
    %v475 = vld [vmem:[#allocation5 + $0x6f8] sm:$0xff]
    %v476 = vld [vmem:[#allocation7] sm:$0xf]
    %v478 = vperm.slane %v476, 0
    %v479 = vperm.slane %v476, 1
    %v480 = vperm.slane %v476, 2
    %v481 = vperm.slane %v476, 3
    %v710 = vunpack.c.l.b16 %v252
    %v711 = vunpack.c.h.b16 %v252
    %v712 = vunpack.c.l.b16 %v253
    %v713 = vunpack.c.h.b16 %v253
    %v714 = vunpack.c.l.b16 %v254
    %v715 = vunpack.c.h.b16 %v254
    %v716 = vunpack.c.l.b16 %v255
    %v717 = vunpack.c.h.b16 %v255
    %v718 = vunpack.c.l.b16 %v256
    %v719 = vunpack.c.h.b16 %v256
    %v720 = vunpack.c.l.b16 %v257
    %v721 = vunpack.c.h.b16 %v257
    %v722 = vunpack.c.l.b16 %v258
    %v723 = vunpack.c.h.b16 %v258
    %v724 = vunpack.c.l.b16 %v259
    %v725 = vunpack.c.h.b16 %v259
    %v726 = vunpack.c.l.b16 %v260
    %v727 = vunpack.c.h.b16 %v260
    %v728 = vunpack.c.l.b16 %v261
    %v729 = vunpack.c.h.b16 %v261
    %v730 = vunpack.c.l.b16 %v262
    %v731 = vunpack.c.h.b16 %v262
    %v732 = vunpack.c.l.b16 %v263
    %v733 = vunpack.c.h.b16 %v263
    %v734 = vunpack.c.l.b16 %v264
    %v735 = vunpack.c.h.b16 %v264
    %v736 = vunpack.c.l.b16 %v265
    %v737 = vunpack.c.h.b16 %v265
    %v738 = vunpack.c.l.b16 %v266
    %v739 = vunpack.c.h.b16 %v266
    %v740 = vunpack.c.l.b16 %v267
    %v741 = vunpack.c.h.b16 %v267
    %v742 = vunpack.c.l.b16 %v268
    %v743 = vunpack.c.h.b16 %v268
    %v744 = vunpack.c.l.b16 %v269
    %v745 = vunpack.c.h.b16 %v269
    %v746 = vunpack.c.l.b16 %v270
    %v747 = vunpack.c.h.b16 %v270
    %v748 = vunpack.c.l.b16 %v271
    %v749 = vunpack.c.h.b16 %v271
    %v750 = vunpack.c.l.b16 %v272
    %v751 = vunpack.c.h.b16 %v272
    %v752 = vunpack.c.l.b16 %v273
    %v753 = vunpack.c.h.b16 %v273
    %v754 = vunpack.c.l.b16 %v274
    %v755 = vunpack.c.h.b16 %v274
    %v756 = vunpack.c.l.b16 %v275
    %v757 = vunpack.c.h.b16 %v275
    %v758 = vunpack.c.l.b16 %v276
    %v759 = vunpack.c.h.b16 %v276
    %v760 = vunpack.c.l.b16 %v277
    %v761 = vunpack.c.h.b16 %v277
    %v762 = vunpack.c.l.b16 %v278
    %v763 = vunpack.c.h.b16 %v278
    %v764 = vunpack.c.l.b16 %v279
    %v765 = vunpack.c.h.b16 %v279
    %v766 = vunpack.c.l.b16 %v280
    %v767 = vunpack.c.h.b16 %v280
    %v768 = vunpack.c.l.b16 %v281
    %v769 = vunpack.c.h.b16 %v281
    %v770 = vunpack.c.l.b16 %v282
    %v771 = vunpack.c.h.b16 %v282
    %v772 = vunpack.c.l.b16 %v283
    %v773 = vunpack.c.h.b16 %v283
    %v774 = vunpack.c.l.b16 %v284
    %v775 = vunpack.c.h.b16 %v284
    %v776 = vunpack.c.l.b16 %v285
    %v777 = vunpack.c.h.b16 %v285
    %v778 = vunpack.c.l.b16 %v286
    %v779 = vunpack.c.h.b16 %v286
    %v780 = vunpack.c.l.b16 %v287
    %v781 = vunpack.c.h.b16 %v287
    %v782 = vunpack.c.l.b16 %v288
    %v783 = vunpack.c.h.b16 %v288
    %v784 = vunpack.c.l.b16 %v289
    %v785 = vunpack.c.h.b16 %v289
    %v786 = vunpack.c.l.b16 %v290
    %v787 = vunpack.c.h.b16 %v290
    %v788 = vunpack.c.l.b16 %v291
    %v789 = vunpack.c.h.b16 %v291
    %v790 = vunpack.c.l.b16 %v292
    %v791 = vunpack.c.h.b16 %v292
    %v792 = vunpack.c.l.b16 %v293
    %v793 = vunpack.c.h.b16 %v293
    %v794 = vunpack.c.l.b16 %v294
    %v795 = vunpack.c.h.b16 %v294
    %v796 = vunpack.c.l.b16 %v295
    %v797 = vunpack.c.h.b16 %v295
    %v798 = vunpack.c.l.b16 %v296
    %v799 = vunpack.c.h.b16 %v296
    %v800 = vunpack.c.l.b16 %v297
    %v801 = vunpack.c.h.b16 %v297
    %v802 = vunpack.c.l.b16 %v298
    %v803 = vunpack.c.h.b16 %v298
    %v804 = vunpack.c.l.b16 %v299
    %v805 = vunpack.c.h.b16 %v299
    %v806 = vunpack.c.l.b16 %v300
    %v807 = vunpack.c.h.b16 %v300
    %v808 = vunpack.c.l.b16 %v301
    %v809 = vunpack.c.h.b16 %v301
    %v810 = vunpack.c.l.b16 %v302
    %v811 = vunpack.c.h.b16 %v302
    %v812 = vunpack.c.l.b16 %v303
    %v813 = vunpack.c.h.b16 %v303
    %v814 = vunpack.c.l.b16 %v304
    %v815 = vunpack.c.h.b16 %v304
    %v816 = vunpack.c.l.b16 %v305
    %v817 = vunpack.c.h.b16 %v305
    %v818 = vunpack.c.l.b16 %v306
    %v819 = vunpack.c.h.b16 %v306
    %v820 = vunpack.c.l.b16 %v307
    %v821 = vunpack.c.h.b16 %v307
    %v822 = vunpack.c.l.b16 %v308
    %v823 = vunpack.c.h.b16 %v308
    %v824 = vunpack.c.l.b16 %v309
    %v825 = vunpack.c.h.b16 %v309
    %v826 = vunpack.c.l.b16 %v310
    %v827 = vunpack.c.h.b16 %v310
    %v828 = vunpack.c.l.b16 %v311
    %v829 = vunpack.c.h.b16 %v311
    %v830 = vunpack.c.l.b16 %v312
    %v831 = vunpack.c.h.b16 %v312
    %v832 = vunpack.c.l.b16 %v313
    %v833 = vunpack.c.h.b16 %v313
    %v834 = vunpack.c.l.b16 %v314
    %v835 = vunpack.c.h.b16 %v314
    %v836 = vunpack.c.l.b16 %v315
    %v837 = vunpack.c.h.b16 %v315
    %v838 = vunpack.c.l.b16 %v316
    %v839 = vunpack.c.h.b16 %v316
    %v840 = vunpack.c.l.b16 %v317
    %v841 = vunpack.c.h.b16 %v317
    %v842 = vunpack.c.l.b16 %v318
    %v843 = vunpack.c.h.b16 %v318
    %v844 = vunpack.c.l.b16 %v319
    %v845 = vunpack.c.h.b16 %v319
    %v846 = vunpack.c.l.b16 %v320
    %v847 = vunpack.c.h.b16 %v320
    %v848 = vunpack.c.l.b16 %v321
    %v849 = vunpack.c.h.b16 %v321
    %v850 = vunpack.c.l.b16 %v322
    %v851 = vunpack.c.h.b16 %v322
    %v852 = vunpack.c.l.b16 %v323
    %v853 = vunpack.c.h.b16 %v323
    %v854 = vunpack.c.l.b16 %v324
    %v855 = vunpack.c.h.b16 %v324
    %v856 = vunpack.c.l.b16 %v325
    %v857 = vunpack.c.h.b16 %v325
    %v858 = vunpack.c.l.b16 %v326
    %v859 = vunpack.c.h.b16 %v326
    %v860 = vunpack.c.l.b16 %v327
    %v861 = vunpack.c.h.b16 %v327
    %v862 = vunpack.c.l.b16 %v328
    %v863 = vunpack.c.h.b16 %v328
    %v864 = vunpack.c.l.b16 %v329
    %v865 = vunpack.c.h.b16 %v329
    %v866 = vunpack.c.l.b16 %v330
    %v867 = vunpack.c.h.b16 %v330
    %v868 = vunpack.c.l.b16 %v331
    %v869 = vunpack.c.h.b16 %v331
    %v870 = vunpack.c.l.b16 %v332
    %v871 = vunpack.c.h.b16 %v332
    %v872 = vunpack.c.l.b16 %v333
    %v873 = vunpack.c.h.b16 %v333
    %v874 = vunpack.c.l.b16 %v334
    %v875 = vunpack.c.h.b16 %v334
    %v876 = vunpack.c.l.b16 %v335
    %v877 = vunpack.c.h.b16 %v335
    %v878 = vunpack.c.l.b16 %v336
    %v879 = vunpack.c.h.b16 %v336
    %v880 = vunpack.c.l.b16 %v337
    %v881 = vunpack.c.h.b16 %v337
    %v882 = vunpack.c.l.b16 %v338
    %v883 = vunpack.c.h.b16 %v338
    %v884 = vunpack.c.l.b16 %v339
    %v885 = vunpack.c.h.b16 %v339
    %v886 = vunpack.c.l.b16 %v340
    %v887 = vunpack.c.h.b16 %v340
    %v888 = vunpack.c.l.b16 %v341
    %v889 = vunpack.c.h.b16 %v341
    %v890 = vunpack.c.l.b16 %v342
    %v891 = vunpack.c.h.b16 %v342
    %v892 = vunpack.c.l.b16 %v343
    %v893 = vunpack.c.h.b16 %v343
    %v894 = vunpack.c.l.b16 %v344
    %v895 = vunpack.c.h.b16 %v344
    %v896 = vunpack.c.l.b16 %v345
    %v897 = vunpack.c.h.b16 %v345
    %v898 = vunpack.c.l.b16 %v346
    %v899 = vunpack.c.h.b16 %v346
    %v900 = vunpack.c.l.b16 %v347
    %v901 = vunpack.c.h.b16 %v347
    %v902 = vunpack.c.l.b16 %v348
    %v903 = vunpack.c.h.b16 %v348
    %v904 = vunpack.c.l.b16 %v349
    %v905 = vunpack.c.h.b16 %v349
    %v906 = vunpack.c.l.b16 %v350
    %v907 = vunpack.c.h.b16 %v350
    %v908 = vunpack.c.l.b16 %v351
    %v909 = vunpack.c.h.b16 %v351
    %v910 = vunpack.c.l.b16 %v352
    %v911 = vunpack.c.h.b16 %v352
    %v912 = vunpack.c.l.b16 %v353
    %v913 = vunpack.c.h.b16 %v353
    %v914 = vunpack.c.l.b16 %v354
    %v915 = vunpack.c.h.b16 %v354
    %v916 = vunpack.c.l.b16 %v355
    %v917 = vunpack.c.h.b16 %v355
    %v918 = vunpack.c.l.b16 %v356
    %v919 = vunpack.c.h.b16 %v356
    %v920 = vunpack.c.l.b16 %v357
    %v921 = vunpack.c.h.b16 %v357
    %v922 = vunpack.c.l.b16 %v358
    %v923 = vunpack.c.h.b16 %v358
    %v924 = vunpack.c.l.b16 %v359
    %v925 = vunpack.c.h.b16 %v359
    %v926 = vunpack.c.l.b16 %v360
    %v927 = vunpack.c.h.b16 %v360
    %v928 = vunpack.c.l.b16 %v361
    %v929 = vunpack.c.h.b16 %v361
    %v930 = vunpack.c.l.b16 %v362
    %v931 = vunpack.c.h.b16 %v362
    %v932 = vunpack.c.l.b16 %v363
    %v933 = vunpack.c.h.b16 %v363
    %v934 = vunpack.c.l.b16 %v364
    %v935 = vunpack.c.h.b16 %v364
    %v936 = vunpack.c.l.b16 %v365
    %v937 = vunpack.c.h.b16 %v365
    %v938 = vunpack.c.l.b16 %v366
    %v939 = vunpack.c.h.b16 %v366
    %v940 = vunpack.c.l.b16 %v367
    %v941 = vunpack.c.h.b16 %v367
    %v942 = vunpack.c.l.b16 %v368
    %v943 = vunpack.c.h.b16 %v368
    %v944 = vunpack.c.l.b16 %v369
    %v945 = vunpack.c.h.b16 %v369
    %v946 = vunpack.c.l.b16 %v370
    %v947 = vunpack.c.h.b16 %v370
    %v948 = vunpack.c.l.b16 %v371
    %v949 = vunpack.c.h.b16 %v371
    %v950 = vunpack.c.l.b16 %v372
    %v951 = vunpack.c.h.b16 %v372
    %v952 = vunpack.c.l.b16 %v373
    %v953 = vunpack.c.h.b16 %v373
    %v954 = vunpack.c.l.b16 %v374
    %v955 = vunpack.c.h.b16 %v374
    %v956 = vunpack.c.l.b16 %v375
    %v957 = vunpack.c.h.b16 %v375
    %v958 = vunpack.c.l.b16 %v376
    %v959 = vunpack.c.h.b16 %v376
    %v960 = vunpack.c.l.b16 %v377
    %v961 = vunpack.c.h.b16 %v377
    %v962 = vunpack.c.l.b16 %v378
    %v963 = vunpack.c.h.b16 %v378
    %v964 = vunpack.c.l.b16 %v379
    %v965 = vunpack.c.h.b16 %v379
    %v966 = vunpack.c.l.b16 %v380
    %v967 = vunpack.c.h.b16 %v380
    %v968 = vunpack.c.l.b16 %v381
    %v969 = vunpack.c.h.b16 %v381
    %v970 = vunpack.c.l.b16 %v382
    %v971 = vunpack.c.h.b16 %v382
    %v972 = vunpack.c.l.b16 %v383
    %v973 = vunpack.c.h.b16 %v383
    %v974 = vunpack.c.l.b16 %v384
    %v975 = vunpack.c.h.b16 %v384
    %v976 = vunpack.c.l.b16 %v385
    %v977 = vunpack.c.h.b16 %v385
    %v978 = vunpack.c.l.b16 %v386
    %v979 = vunpack.c.h.b16 %v386
    %v980 = vunpack.c.l.b16 %v387
    %v981 = vunpack.c.h.b16 %v387
    %v982 = vunpack.c.l.b16 %v388
    %v983 = vunpack.c.h.b16 %v388
    %v984 = vunpack.c.l.b16 %v389
    %v985 = vunpack.c.h.b16 %v389
    %v986 = vunpack.c.l.b16 %v390
    %v987 = vunpack.c.h.b16 %v390
    %v988 = vunpack.c.l.b16 %v391
    %v989 = vunpack.c.h.b16 %v391
    %v990 = vunpack.c.l.b16 %v392
    %v991 = vunpack.c.h.b16 %v392
    %v992 = vunpack.c.l.b16 %v393
    %v993 = vunpack.c.h.b16 %v393
    %v994 = vunpack.c.l.b16 %v394
    %v995 = vunpack.c.h.b16 %v394
    %v996 = vunpack.c.l.b16 %v395
    %v997 = vunpack.c.h.b16 %v395
    %v998 = vunpack.c.l.b16 %v396
    %v999 = vunpack.c.h.b16 %v396
    %v1000 = vunpack.c.l.b16 %v397
    %v1001 = vunpack.c.h.b16 %v397
    %v1002 = vunpack.c.l.b16 %v398
    %v1003 = vunpack.c.h.b16 %v398
    %v1004 = vunpack.c.l.b16 %v399
    %v1005 = vunpack.c.h.b16 %v399
    %v1006 = vunpack.c.l.b16 %v400
    %v1007 = vunpack.c.h.b16 %v400
    %v1008 = vunpack.c.l.b16 %v401
    %v1009 = vunpack.c.h.b16 %v401
    %v1010 = vunpack.c.l.b16 %v402
    %v1011 = vunpack.c.h.b16 %v402
    %v1012 = vunpack.c.l.b16 %v403
    %v1013 = vunpack.c.h.b16 %v403
    %v1014 = vunpack.c.l.b16 %v404
    %v1015 = vunpack.c.h.b16 %v404
    %v1016 = vunpack.c.l.b16 %v405
    %v1017 = vunpack.c.h.b16 %v405
    %v1018 = vunpack.c.l.b16 %v406
    %v1019 = vunpack.c.h.b16 %v406
    %v1020 = vunpack.c.l.b16 %v407
    %v1021 = vunpack.c.h.b16 %v407
    %v1022 = vunpack.c.l.b16 %v408
    %v1023 = vunpack.c.h.b16 %v408
    %v1024 = vunpack.c.l.b16 %v409
    %v1025 = vunpack.c.h.b16 %v409
    %v1026 = vunpack.c.l.b16 %v410
    %v1027 = vunpack.c.h.b16 %v410
    %v1028 = vunpack.c.l.b16 %v411
    %v1029 = vunpack.c.h.b16 %v411
    %v1030 = vunpack.c.l.b16 %v412
    %v1031 = vunpack.c.h.b16 %v412
    %v1032 = vunpack.c.l.b16 %v413
    %v1033 = vunpack.c.h.b16 %v413
    %v1034 = vunpack.c.l.b16 %v414
    %v1035 = vunpack.c.h.b16 %v414
    %v1036 = vunpack.c.l.b16 %v415
    %v1037 = vunpack.c.h.b16 %v415
    %v1038 = vunpack.c.l.b16 %v416
    %v1039 = vunpack.c.h.b16 %v416
    %v1040 = vunpack.c.l.b16 %v417
    %v1041 = vunpack.c.h.b16 %v417
    %v1042 = vunpack.c.l.b16 %v418
    %v1043 = vunpack.c.h.b16 %v418
    %v1044 = vunpack.c.l.b16 %v419
    %v1045 = vunpack.c.h.b16 %v419
    %v1046 = vunpack.c.l.b16 %v420
    %v1047 = vunpack.c.h.b16 %v420
    %v1048 = vunpack.c.l.b16 %v421
    %v1049 = vunpack.c.h.b16 %v421
    %v1050 = vunpack.c.l.b16 %v422
    %v1051 = vunpack.c.h.b16 %v422
    %v1052 = vunpack.c.l.b16 %v423
    %v1053 = vunpack.c.h.b16 %v423
    %v1054 = vunpack.c.l.b16 %v424
    %v1055 = vunpack.c.h.b16 %v424
    %v1056 = vunpack.c.l.b16 %v425
    %v1057 = vunpack.c.h.b16 %v425
    %v1058 = vunpack.c.l.b16 %v426
    %v1059 = vunpack.c.h.b16 %v426
    %v1060 = vunpack.c.l.b16 %v427
    %v1061 = vunpack.c.h.b16 %v427
    %v1062 = vunpack.c.l.b16 %v428
    %v1063 = vunpack.c.h.b16 %v428
    %v1064 = vunpack.c.l.b16 %v429
    %v1065 = vunpack.c.h.b16 %v429
    %v1066 = vunpack.c.l.b16 %v430
    %v1067 = vunpack.c.h.b16 %v430
    %v1068 = vunpack.c.l.b16 %v431
    %v1069 = vunpack.c.h.b16 %v431
    %v1070 = vunpack.c.l.b16 %v432
    %v1071 = vunpack.c.h.b16 %v432
    %v1072 = vunpack.c.l.b16 %v433
    %v1073 = vunpack.c.h.b16 %v433
    %v1074 = vunpack.c.l.b16 %v434
    %v1075 = vunpack.c.h.b16 %v434
    %v1076 = vunpack.c.l.b16 %v435
    %v1077 = vunpack.c.h.b16 %v435
    %v1078 = vunpack.c.l.b16 %v436
    %v1079 = vunpack.c.h.b16 %v436
    %v1080 = vunpack.c.l.b16 %v437
    %v1081 = vunpack.c.h.b16 %v437
    %v1082 = vunpack.c.l.b16 %v438
    %v1083 = vunpack.c.h.b16 %v438
    %v1084 = vunpack.c.l.b16 %v439
    %v1085 = vunpack.c.h.b16 %v439
    %v1086 = vunpack.c.l.b16 %v440
    %v1087 = vunpack.c.h.b16 %v440
    %v1088 = vunpack.c.l.b16 %v441
    %v1089 = vunpack.c.h.b16 %v441
    %v1090 = vunpack.c.l.b16 %v442
    %v1091 = vunpack.c.h.b16 %v442
    %v1092 = vunpack.c.l.b16 %v443
    %v1093 = vunpack.c.h.b16 %v443
    %v1094 = vunpack.c.l.b16 %v444
    %v1095 = vunpack.c.h.b16 %v444
    %v1096 = vunpack.c.l.b16 %v445
    %v1097 = vunpack.c.h.b16 %v445
    %v1098 = vunpack.c.l.b16 %v446
    %v1099 = vunpack.c.h.b16 %v446
    %v1100 = vunpack.c.l.b16 %v447
    %v1101 = vunpack.c.h.b16 %v447
    %v1102 = vunpack.c.l.b16 %v448
    %v1103 = vunpack.c.h.b16 %v448
    %v1104 = vunpack.c.l.b16 %v449
    %v1105 = vunpack.c.h.b16 %v449
    %v1106 = vunpack.c.l.b16 %v450
    %v1107 = vunpack.c.h.b16 %v450
    %v1108 = vunpack.c.l.b16 %v451
    %v1109 = vunpack.c.h.b16 %v451
    %v1110 = vunpack.c.l.b16 %v452
    %v1111 = vunpack.c.h.b16 %v452
    %v1112 = vunpack.c.l.b16 %v453
    %v1113 = vunpack.c.h.b16 %v453
    %v1114 = vunpack.c.l.b16 %v454
    %v1115 = vunpack.c.h.b16 %v454
    %v1116 = vunpack.c.l.b16 %v455
    %v1117 = vunpack.c.h.b16 %v455
    %v1118 = vunpack.c.l.b16 %v456
    %v1119 = vunpack.c.h.b16 %v456
    %v1120 = vunpack.c.l.b16 %v457
    %v1121 = vunpack.c.h.b16 %v457
    %v1122 = vunpack.c.l.b16 %v458
    %v1123 = vunpack.c.h.b16 %v458
    %v1124 = vunpack.c.l.b16 %v459
    %v1125 = vunpack.c.h.b16 %v459
    %v1126 = vunpack.c.l.b16 %v460
    %v1127 = vunpack.c.h.b16 %v460
    %v1128 = vunpack.c.l.b16 %v461
    %v1129 = vunpack.c.h.b16 %v461
    %v1130 = vunpack.c.l.b16 %v462
    %v1131 = vunpack.c.h.b16 %v462
    %v1132 = vunpack.c.l.b16 %v463
    %v1133 = vunpack.c.h.b16 %v463
    %v1134 = vunpack.c.l.b16 %v464
    %v1135 = vunpack.c.h.b16 %v464
    %v1136 = vunpack.c.l.b16 %v465
    %v1137 = vunpack.c.h.b16 %v465
    %v1138 = vunpack.c.l.b16 %v466
    %v1139 = vunpack.c.h.b16 %v466
    %v1140 = vunpack.c.l.b16 %v467
    %v1141 = vunpack.c.h.b16 %v467
    %v1142 = vunpack.c.l.b16 %v468
    %v1143 = vunpack.c.h.b16 %v468
    %v1144 = vunpack.c.l.b16 %v469
    %v1145 = vunpack.c.h.b16 %v469
    %v1146 = vunpack.c.l.b16 %v470
    %v1147 = vunpack.c.h.b16 %v470
    %v1148 = vunpack.c.l.b16 %v471
    %v1149 = vunpack.c.h.b16 %v471
    %v1150 = vunpack.c.l.b16 %v472
    %v1151 = vunpack.c.h.b16 %v472
    %v1152 = vunpack.c.l.b16 %v473
    %v1153 = vunpack.c.h.b16 %v473
    %v1154 = vunpack.c.l.b16 %v474
    %v1155 = vunpack.c.h.b16 %v474
    %v1156 = vunpack.c.l.b16 %v475
    %v1157 = vunpack.c.h.b16 %v475
    %v1158 = vpack.c.b16 %v714, %v710
    %v1159 = vpack.c.b16 %v715, %v711
    %v1160 = vpack.c.b16 %v716, %v712
    %v1161 = vpack.c.b16 %v717, %v713
    %v1162 = vpack.c.b16 %v722, %v718
    %v1163 = vpack.c.b16 %v723, %v719
    %v1164 = vpack.c.b16 %v724, %v720
    %v1165 = vpack.c.b16 %v725, %v721
    %v1166 = vpack.c.b16 %v730, %v726
    %v1167 = vpack.c.b16 %v731, %v727
    %v1168 = vpack.c.b16 %v732, %v728
    %v1169 = vpack.c.b16 %v733, %v729
    %v1170 = vpack.c.b16 %v738, %v734
    %v1171 = vpack.c.b16 %v739, %v735
    %v1172 = vpack.c.b16 %v740, %v736
    %v1173 = vpack.c.b16 %v741, %v737
    %v1174 = vpack.c.b16 %v746, %v742
    %v1175 = vpack.c.b16 %v747, %v743
    %v1176 = vpack.c.b16 %v748, %v744
    %v1177 = vpack.c.b16 %v749, %v745
    %v1178 = vpack.c.b16 %v754, %v750
    %v1179 = vpack.c.b16 %v755, %v751
    %v1180 = vpack.c.b16 %v756, %v752
    %v1181 = vpack.c.b16 %v757, %v753
    %v1182 = vpack.c.b16 %v762, %v758
    %v1183 = vpack.c.b16 %v763, %v759
    %v1184 = vpack.c.b16 %v764, %v760
    %v1185 = vpack.c.b16 %v765, %v761
    %v1186 = vpack.c.b16 %v770, %v766
    %v1187 = vpack.c.b16 %v771, %v767
    %v1188 = vpack.c.b16 %v772, %v768
    %v1189 = vpack.c.b16 %v773, %v769
    %v1190 = vpack.c.b16 %v778, %v774
    %v1191 = vpack.c.b16 %v779, %v775
    %v1192 = vpack.c.b16 %v780, %v776
    %v1193 = vpack.c.b16 %v781, %v777
    %v1194 = vpack.c.b16 %v786, %v782
    %v1195 = vpack.c.b16 %v787, %v783
    %v1196 = vpack.c.b16 %v788, %v784
    %v1197 = vpack.c.b16 %v789, %v785
    %v1198 = vpack.c.b16 %v794, %v790
    %v1199 = vpack.c.b16 %v795, %v791
    %v1200 = vpack.c.b16 %v796, %v792
    %v1201 = vpack.c.b16 %v797, %v793
    %v1202 = vpack.c.b16 %v802, %v798
    %v1203 = vpack.c.b16 %v803, %v799
    %v1204 = vpack.c.b16 %v804, %v800
    %v1205 = vpack.c.b16 %v805, %v801
    %v1206 = vpack.c.b16 %v810, %v806
    %v1207 = vpack.c.b16 %v811, %v807
    %v1208 = vpack.c.b16 %v812, %v808
    %v1209 = vpack.c.b16 %v813, %v809
    %v1210 = vpack.c.b16 %v818, %v814
    %v1211 = vpack.c.b16 %v819, %v815
    %v1212 = vpack.c.b16 %v820, %v816
    %v1213 = vpack.c.b16 %v821, %v817
    %v1214 = vpack.c.b16 %v826, %v822
    %v1215 = vpack.c.b16 %v827, %v823
    %v1216 = vpack.c.b16 %v828, %v824
    %v1217 = vpack.c.b16 %v829, %v825
    %v1218 = vpack.c.b16 %v834, %v830
    %v1219 = vpack.c.b16 %v835, %v831
    %v1220 = vpack.c.b16 %v836, %v832
    %v1221 = vpack.c.b16 %v837, %v833
    %v1222 = vpack.c.b16 %v842, %v838
    %v1223 = vpack.c.b16 %v843, %v839
    %v1224 = vpack.c.b16 %v844, %v840
    %v1225 = vpack.c.b16 %v845, %v841
    %v1226 = vpack.c.b16 %v850, %v846
    %v1227 = vpack.c.b16 %v851, %v847
    %v1228 = vpack.c.b16 %v852, %v848
    %v1229 = vpack.c.b16 %v853, %v849
    %v1230 = vpack.c.b16 %v858, %v854
    %v1231 = vpack.c.b16 %v859, %v855
    %v1232 = vpack.c.b16 %v860, %v856
    %v1233 = vpack.c.b16 %v861, %v857
    %v1234 = vpack.c.b16 %v866, %v862
    %v1235 = vpack.c.b16 %v867, %v863
    %v1236 = vpack.c.b16 %v868, %v864
    %v1237 = vpack.c.b16 %v869, %v865
    %v1238 = vpack.c.b16 %v874, %v870
    %v1239 = vpack.c.b16 %v875, %v871
    %v1240 = vpack.c.b16 %v876, %v872
    %v1241 = vpack.c.b16 %v877, %v873
    %v1242 = vpack.c.b16 %v882, %v878
    %v1243 = vpack.c.b16 %v883, %v879
    %v1244 = vpack.c.b16 %v884, %v880
    %v1245 = vpack.c.b16 %v885, %v881
    %v1246 = vpack.c.b16 %v890, %v886
    %v1247 = vpack.c.b16 %v891, %v887
    %v1248 = vpack.c.b16 %v892, %v888
    %v1249 = vpack.c.b16 %v893, %v889
    %v1250 = vpack.c.b16 %v898, %v894
    %v1251 = vpack.c.b16 %v899, %v895
    %v1252 = vpack.c.b16 %v900, %v896
    %v1253 = vpack.c.b16 %v901, %v897
    %v1254 = vpack.c.b16 %v906, %v902
    %v1255 = vpack.c.b16 %v907, %v903
    %v1256 = vpack.c.b16 %v908, %v904
    %v1257 = vpack.c.b16 %v909, %v905
    %v1258 = vpack.c.b16 %v914, %v910
    %v1259 = vpack.c.b16 %v915, %v911
    %v1260 = vpack.c.b16 %v916, %v912
    %v1261 = vpack.c.b16 %v917, %v913
    %v1262 = vpack.c.b16 %v922, %v918
    %v1263 = vpack.c.b16 %v923, %v919
    %v1264 = vpack.c.b16 %v924, %v920
    %v1265 = vpack.c.b16 %v925, %v921
    %v1266 = vpack.c.b16 %v930, %v926
    %v1267 = vpack.c.b16 %v931, %v927
    %v1268 = vpack.c.b16 %v932, %v928
    %v1269 = vpack.c.b16 %v933, %v929
    %v1270 = vpack.c.b16 %v938, %v934
    %v1271 = vpack.c.b16 %v939, %v935
    %v1272 = vpack.c.b16 %v940, %v936
    %v1273 = vpack.c.b16 %v941, %v937
    %v1274 = vpack.c.b16 %v946, %v942
    %v1275 = vpack.c.b16 %v947, %v943
    %v1276 = vpack.c.b16 %v948, %v944
    %v1277 = vpack.c.b16 %v949, %v945
    %v1278 = vpack.c.b16 %v954, %v950
    %v1279 = vpack.c.b16 %v955, %v951
    %v1280 = vpack.c.b16 %v956, %v952
    %v1281 = vpack.c.b16 %v957, %v953
    %v1282 = vpack.c.b16 %v962, %v958
    %v1283 = vpack.c.b16 %v963, %v959
    %v1284 = vpack.c.b16 %v964, %v960
    %v1285 = vpack.c.b16 %v965, %v961
    %v1286 = vpack.c.b16 %v970, %v966
    %v1287 = vpack.c.b16 %v971, %v967
    %v1288 = vpack.c.b16 %v972, %v968
    %v1289 = vpack.c.b16 %v973, %v969
    %v1290 = vpack.c.b16 %v978, %v974
    %v1291 = vpack.c.b16 %v979, %v975
    %v1292 = vpack.c.b16 %v980, %v976
    %v1293 = vpack.c.b16 %v981, %v977
    %v1294 = vpack.c.b16 %v986, %v982
    %v1295 = vpack.c.b16 %v987, %v983
    %v1296 = vpack.c.b16 %v988, %v984
    %v1297 = vpack.c.b16 %v989, %v985
    %v1298 = vpack.c.b16 %v994, %v990
    %v1299 = vpack.c.b16 %v995, %v991
    %v1300 = vpack.c.b16 %v996, %v992
    %v1301 = vpack.c.b16 %v997, %v993
    %v1302 = vpack.c.b16 %v1002, %v998
    %v1303 = vpack.c.b16 %v1003, %v999
    %v1304 = vpack.c.b16 %v1004, %v1000
    %v1305 = vpack.c.b16 %v1005, %v1001
    %v1306 = vpack.c.b16 %v1010, %v1006
    %v1307 = vpack.c.b16 %v1011, %v1007
    %v1308 = vpack.c.b16 %v1012, %v1008
    %v1309 = vpack.c.b16 %v1013, %v1009
    %v1310 = vpack.c.b16 %v1018, %v1014
    %v1311 = vpack.c.b16 %v1019, %v1015
    %v1312 = vpack.c.b16 %v1020, %v1016
    %v1313 = vpack.c.b16 %v1021, %v1017
    %v1314 = vpack.c.b16 %v1026, %v1022
    %v1315 = vpack.c.b16 %v1027, %v1023
    %v1316 = vpack.c.b16 %v1028, %v1024
    %v1317 = vpack.c.b16 %v1029, %v1025
    %v1318 = vpack.c.b16 %v1034, %v1030
    %v1319 = vpack.c.b16 %v1035, %v1031
    %v1320 = vpack.c.b16 %v1036, %v1032
    %v1321 = vpack.c.b16 %v1037, %v1033
    %v1322 = vpack.c.b16 %v1042, %v1038
    %v1323 = vpack.c.b16 %v1043, %v1039
    %v1324 = vpack.c.b16 %v1044, %v1040
    %v1325 = vpack.c.b16 %v1045, %v1041
    %v1326 = vpack.c.b16 %v1050, %v1046
    %v1327 = vpack.c.b16 %v1051, %v1047
    %v1328 = vpack.c.b16 %v1052, %v1048
    %v1329 = vpack.c.b16 %v1053, %v1049
    %v1330 = vpack.c.b16 %v1058, %v1054
    %v1331 = vpack.c.b16 %v1059, %v1055
    %v1332 = vpack.c.b16 %v1060, %v1056
    %v1333 = vpack.c.b16 %v1061, %v1057
    %v1334 = vpack.c.b16 %v1066, %v1062
    %v1335 = vpack.c.b16 %v1067, %v1063
    %v1336 = vpack.c.b16 %v1068, %v1064
    %v1337 = vpack.c.b16 %v1069, %v1065
    %v1338 = vpack.c.b16 %v1074, %v1070
    %v1339 = vpack.c.b16 %v1075, %v1071
    %v1340 = vpack.c.b16 %v1076, %v1072
    %v1341 = vpack.c.b16 %v1077, %v1073
    %v1342 = vpack.c.b16 %v1082, %v1078
    %v1343 = vpack.c.b16 %v1083, %v1079
    %v1344 = vpack.c.b16 %v1084, %v1080
    %v1345 = vpack.c.b16 %v1085, %v1081
    %v1346 = vpack.c.b16 %v1090, %v1086
    %v1347 = vpack.c.b16 %v1091, %v1087
    %v1348 = vpack.c.b16 %v1092, %v1088
    %v1349 = vpack.c.b16 %v1093, %v1089
    %v1350 = vpack.c.b16 %v1098, %v1094
    %v1351 = vpack.c.b16 %v1099, %v1095
    %v1352 = vpack.c.b16 %v1100, %v1096
    %v1353 = vpack.c.b16 %v1101, %v1097
    %v1354 = vpack.c.b16 %v1106, %v1102
    %v1355 = vpack.c.b16 %v1107, %v1103
    %v1356 = vpack.c.b16 %v1108, %v1104
    %v1357 = vpack.c.b16 %v1109, %v1105
    %v1358 = vpack.c.b16 %v1114, %v1110
    %v1359 = vpack.c.b16 %v1115, %v1111
    %v1360 = vpack.c.b16 %v1116, %v1112
    %v1361 = vpack.c.b16 %v1117, %v1113
    %v1362 = vpack.c.b16 %v1122, %v1118
    %v1363 = vpack.c.b16 %v1123, %v1119
    %v1364 = vpack.c.b16 %v1124, %v1120
    %v1365 = vpack.c.b16 %v1125, %v1121
    %v1366 = vpack.c.b16 %v1130, %v1126
    %v1367 = vpack.c.b16 %v1131, %v1127
    %v1368 = vpack.c.b16 %v1132, %v1128
    %v1369 = vpack.c.b16 %v1133, %v1129
    %v1370 = vpack.c.b16 %v1138, %v1134
    %v1371 = vpack.c.b16 %v1139, %v1135
    %v1372 = vpack.c.b16 %v1140, %v1136
    %v1373 = vpack.c.b16 %v1141, %v1137
    %v1374 = vpack.c.b16 %v1146, %v1142
    %v1375 = vpack.c.b16 %v1147, %v1143
    %v1376 = vpack.c.b16 %v1148, %v1144
    %v1377 = vpack.c.b16 %v1149, %v1145
    %v1378 = vpack.c.b16 %v1154, %v1150
    %v1379 = vpack.c.b16 %v1155, %v1151
    %v1380 = vpack.c.b16 %v1156, %v1152
    %v1381 = vpack.c.b16 %v1157, %v1153
    %1606 = vmatpush.bf16.msra.mxu0 %v1186
    %1607 = vmatpush.bf16.msra.mxu0 %v1182
    %1608 = vmatpush.bf16.msra.mxu0 %v1178
    %1609 = vmatpush.bf16.msra.mxu0 %v1174
    %1610 = vmatpush.bf16.msra.mxu0 %v1170
    %1611 = vmatpush.bf16.msra.mxu0 %v1166
    %1612 = vmatpush.bf16.msra.mxu0 %v1162
    %1613 = vmatpush.bf16.msra.mxu0 %v1158
    %1614 = vmatmul.f32.gmra.mxu0 %v245
    %v1615 = vpop.f32.mrf.mxu0
    %v1616 = vadd.f32 %v478, %v1615
    %1617 = vdwg.mxu0
    %1618 = vmatpush.bf16.msra.mxu0 %v1218
    %1619 = vmatpush.bf16.msra.mxu0 %v1214
    %1620 = vmatpush.bf16.msra.mxu0 %v1210
    %1621 = vmatpush.bf16.msra.mxu0 %v1206
    %1622 = vmatpush.bf16.msra.mxu0 %v1202
    %1623 = vmatpush.bf16.msra.mxu0 %v1198
    %1624 = vmatpush.bf16.msra.mxu0 %v1194
    %1625 = vmatpush.bf16.msra.mxu0 %v1190
    %1626 = vmatmul.f32.gmra.mxu0 %v246
    %v1627 = vpop.f32.mrf.mxu0
    %v1628 = vadd.f32 %v1616, %v1627
    %1629 = vdwg.mxu0
    %1630 = vmatpush.bf16.msra.mxu0 %v1250
    %1631 = vmatpush.bf16.msra.mxu0 %v1246
    %1632 = vmatpush.bf16.msra.mxu0 %v1242
    %1633 = vmatpush.bf16.msra.mxu0 %v1238
    %1634 = vmatpush.bf16.msra.mxu0 %v1234
    %1635 = vmatpush.bf16.msra.mxu0 %v1230
    %1636 = vmatpush.bf16.msra.mxu0 %v1226
    %1637 = vmatpush.bf16.msra.mxu0 %v1222
    %1638 = vmatmul.f32.gmra.mxu0 %v247
    %v1639 = vpop.f32.mrf.mxu0
    %v1640 = vadd.f32 %v1628, %v1639
    %1641 = vdwg.mxu0
    %1642 = vmatpush.bf16.msra.mxu0 %v1282
    %1643 = vmatpush.bf16.msra.mxu0 %v1278
    %1644 = vmatpush.bf16.msra.mxu0 %v1274
    %1645 = vmatpush.bf16.msra.mxu0 %v1270
    %1646 = vmatpush.bf16.msra.mxu0 %v1266
    %1647 = vmatpush.bf16.msra.mxu0 %v1262
    %1648 = vmatpush.bf16.msra.mxu0 %v1258
    %1649 = vmatpush.bf16.msra.mxu0 %v1254
    %1650 = vmatmul.f32.gmra.mxu0 %v248
    %v1651 = vpop.f32.mrf.mxu0
    %v1652 = vadd.f32 %v1640, %v1651
    %1653 = vdwg.mxu0
    %1654 = vmatpush.bf16.msra.mxu0 %v1314
    %1655 = vmatpush.bf16.msra.mxu0 %v1310
    %1656 = vmatpush.bf16.msra.mxu0 %v1306
    %1657 = vmatpush.bf16.msra.mxu0 %v1302
    %1658 = vmatpush.bf16.msra.mxu0 %v1298
    %1659 = vmatpush.bf16.msra.mxu0 %v1294
    %1660 = vmatpush.bf16.msra.mxu0 %v1290
    %1661 = vmatpush.bf16.msra.mxu0 %v1286
    %1662 = vmatmul.f32.gmra.mxu0 %v249
    %v1663 = vpop.f32.mrf.mxu0
    %v1664 = vadd.f32 %v1652, %v1663
    %1665 = vdwg.mxu0
    %1666 = vmatpush.bf16.msra.mxu0 %v1346
    %1667 = vmatpush.bf16.msra.mxu0 %v1342
    %1668 = vmatpush.bf16.msra.mxu0 %v1338
    %1669 = vmatpush.bf16.msra.mxu0 %v1334
    %1670 = vmatpush.bf16.msra.mxu0 %v1330
    %1671 = vmatpush.bf16.msra.mxu0 %v1326
    %1672 = vmatpush.bf16.msra.mxu0 %v1322
    %1673 = vmatpush.bf16.msra.mxu0 %v1318
    %1674 = vmatmul.f32.gmra.mxu0 %v250
    %v1675 = vpop.f32.mrf.mxu0
    %v1676 = vadd.f32 %v1664, %v1675
    %1677 = vdwg.mxu0
    %1678 = vmatpush.bf16.msra.mxu0 %v1378
    %1679 = vmatpush.bf16.msra.mxu0 %v1374
    %1680 = vmatpush.bf16.msra.mxu0 %v1370
    %1681 = vmatpush.bf16.msra.mxu0 %v1366
    %1682 = vmatpush.bf16.msra.mxu0 %v1362
    %1683 = vmatpush.bf16.msra.mxu0 %v1358
    %1684 = vmatpush.bf16.msra.mxu0 %v1354
    %1685 = vmatpush.bf16.msra.mxu0 %v1350
    %1686 = vmatmul.f32.gmra.mxu0 %v251
    %v1687 = vpop.f32.mrf.mxu0
    %v1688 = vadd.f32 %v1676, %v1687
    %1689 = vdwg.mxu0
    %1690 = vmatpush.bf16.msra.mxu0 %v1187
    %1691 = vmatpush.bf16.msra.mxu0 %v1183
    %1692 = vmatpush.bf16.msra.mxu0 %v1179
    %1693 = vmatpush.bf16.msra.mxu0 %v1175
    %1694 = vmatpush.bf16.msra.mxu0 %v1171
    %1695 = vmatpush.bf16.msra.mxu0 %v1167
    %1696 = vmatpush.bf16.msra.mxu0 %v1163
    %1697 = vmatpush.bf16.msra.mxu0 %v1159
    %1698 = vmatmul.f32.gmra.mxu0 %v245
    %v1699 = vpop.f32.mrf.mxu0
    %v1700 = vadd.f32 %v479, %v1699
    %1701 = vdwg.mxu0
    %1702 = vmatpush.bf16.msra.mxu0 %v1219
    %1703 = vmatpush.bf16.msra.mxu0 %v1215
    %1704 = vmatpush.bf16.msra.mxu0 %v1211
    %1705 = vmatpush.bf16.msra.mxu0 %v1207
    %1706 = vmatpush.bf16.msra.mxu0 %v1203
    %1707 = vmatpush.bf16.msra.mxu0 %v1199
    %1708 = vmatpush.bf16.msra.mxu0 %v1195
    %1709 = vmatpush.bf16.msra.mxu0 %v1191
    %1710 = vmatmul.f32.gmra.mxu0 %v246
    %v1711 = vpop.f32.mrf.mxu0
    %v1712 = vadd.f32 %v1700, %v1711
    %1713 = vdwg.mxu0
    %1714 = vmatpush.bf16.msra.mxu0 %v1251
    %1715 = vmatpush.bf16.msra.mxu0 %v1247
    %1716 = vmatpush.bf16.msra.mxu0 %v1243
    %1717 = vmatpush.bf16.msra.mxu0 %v1239
    %1718 = vmatpush.bf16.msra.mxu0 %v1235
    %1719 = vmatpush.bf16.msra.mxu0 %v1231
    %1720 = vmatpush.bf16.msra.mxu0 %v1227
    %1721 = vmatpush.bf16.msra.mxu0 %v1223
    %1722 = vmatmul.f32.gmra.mxu0 %v247
    %v1723 = vpop.f32.mrf.mxu0
    %v1724 = vadd.f32 %v1712, %v1723
    %1725 = vdwg.mxu0
    %1726 = vmatpush.bf16.msra.mxu0 %v1283
    %1727 = vmatpush.bf16.msra.mxu0 %v1279
    %1728 = vmatpush.bf16.msra.mxu0 %v1275
    %1729 = vmatpush.bf16.msra.mxu0 %v1271
    %1730 = vmatpush.bf16.msra.mxu0 %v1267
    %1731 = vmatpush.bf16.msra.mxu0 %v1263
    %1732 = vmatpush.bf16.msra.mxu0 %v1259
    %1733 = vmatpush.bf16.msra.mxu0 %v1255
    %1734 = vmatmul.f32.gmra.mxu0 %v248
    %v1735 = vpop.f32.mrf.mxu0
    %v1736 = vadd.f32 %v1724, %v1735
    %1737 = vdwg.mxu0
    %1738 = vmatpush.bf16.msra.mxu0 %v1315
    %1739 = vmatpush.bf16.msra.mxu0 %v1311
    %1740 = vmatpush.bf16.msra.mxu0 %v1307
    %1741 = vmatpush.bf16.msra.mxu0 %v1303
    %1742 = vmatpush.bf16.msra.mxu0 %v1299
    %1743 = vmatpush.bf16.msra.mxu0 %v1295
    %1744 = vmatpush.bf16.msra.mxu0 %v1291
    %1745 = vmatpush.bf16.msra.mxu0 %v1287
    %1746 = vmatmul.f32.gmra.mxu0 %v249
    %v1747 = vpop.f32.mrf.mxu0
    %v1748 = vadd.f32 %v1736, %v1747
    %1749 = vdwg.mxu0
    %1750 = vmatpush.bf16.msra.mxu0 %v1347
    %1751 = vmatpush.bf16.msra.mxu0 %v1343
    %1752 = vmatpush.bf16.msra.mxu0 %v1339
    %1753 = vmatpush.bf16.msra.mxu0 %v1335
    %1754 = vmatpush.bf16.msra.mxu0 %v1331
    %1755 = vmatpush.bf16.msra.mxu0 %v1327
    %1756 = vmatpush.bf16.msra.mxu0 %v1323
    %1757 = vmatpush.bf16.msra.mxu0 %v1319
    %1758 = vmatmul.f32.gmra.mxu0 %v250
    %v1759 = vpop.f32.mrf.mxu0
    %v1760 = vadd.f32 %v1748, %v1759
    %1761 = vdwg.mxu0
    %1762 = vmatpush.bf16.msra.mxu0 %v1379
    %1763 = vmatpush.bf16.msra.mxu0 %v1375
    %1764 = vmatpush.bf16.msra.mxu0 %v1371
    %1765 = vmatpush.bf16.msra.mxu0 %v1367
    %1766 = vmatpush.bf16.msra.mxu0 %v1363
    %1767 = vmatpush.bf16.msra.mxu0 %v1359
    %1768 = vmatpush.bf16.msra.mxu0 %v1355
    %1769 = vmatpush.bf16.msra.mxu0 %v1351
    %1770 = vmatmul.f32.gmra.mxu0 %v251
    %v1771 = vpop.f32.mrf.mxu0
    %v1772 = vadd.f32 %v1760, %v1771
    %1773 = vdwg.mxu0
    %1774 = vmatpush.bf16.msra.mxu0 %v1188
    %1775 = vmatpush.bf16.msra.mxu0 %v1184
    %1776 = vmatpush.bf16.msra.mxu0 %v1180
    %1777 = vmatpush.bf16.msra.mxu0 %v1176
    %1778 = vmatpush.bf16.msra.mxu0 %v1172
    %1779 = vmatpush.bf16.msra.mxu0 %v1168
    %1780 = vmatpush.bf16.msra.mxu0 %v1164
    %1781 = vmatpush.bf16.msra.mxu0 %v1160
    %1782 = vmatmul.f32.gmra.mxu0 %v245
    %v1783 = vpop.f32.mrf.mxu0
    %v1784 = vadd.f32 %v480, %v1783
    %1785 = vdwg.mxu0
    %1786 = vmatpush.bf16.msra.mxu0 %v1220
    %1787 = vmatpush.bf16.msra.mxu0 %v1216
    %1788 = vmatpush.bf16.msra.mxu0 %v1212
    %1789 = vmatpush.bf16.msra.mxu0 %v1208
    %1790 = vmatpush.bf16.msra.mxu0 %v1204
    %1791 = vmatpush.bf16.msra.mxu0 %v1200
    %1792 = vmatpush.bf16.msra.mxu0 %v1196
    %1793 = vmatpush.bf16.msra.mxu0 %v1192
    %1794 = vmatmul.f32.gmra.mxu0 %v246
    %v1795 = vpop.f32.mrf.mxu0
    %v1796 = vadd.f32 %v1784, %v1795
    %1797 = vdwg.mxu0
    %1798 = vmatpush.bf16.msra.mxu0 %v1252
    %1799 = vmatpush.bf16.msra.mxu0 %v1248
    %1800 = vmatpush.bf16.msra.mxu0 %v1244
    %1801 = vmatpush.bf16.msra.mxu0 %v1240
    %1802 = vmatpush.bf16.msra.mxu0 %v1236
    %1803 = vmatpush.bf16.msra.mxu0 %v1232
    %1804 = vmatpush.bf16.msra.mxu0 %v1228
    %1805 = vmatpush.bf16.msra.mxu0 %v1224
    %1806 = vmatmul.f32.gmra.mxu0 %v247
    %v1807 = vpop.f32.mrf.mxu0
    %v1808 = vadd.f32 %v1796, %v1807
    %1809 = vdwg.mxu0
    %1810 = vmatpush.bf16.msra.mxu0 %v1284
    %1811 = vmatpush.bf16.msra.mxu0 %v1280
    %1812 = vmatpush.bf16.msra.mxu0 %v1276
    %1813 = vmatpush.bf16.msra.mxu0 %v1272
    %1814 = vmatpush.bf16.msra.mxu0 %v1268
    %1815 = vmatpush.bf16.msra.mxu0 %v1264
    %1816 = vmatpush.bf16.msra.mxu0 %v1260
    %1817 = vmatpush.bf16.msra.mxu0 %v1256
    %1818 = vmatmul.f32.gmra.mxu0 %v248
    %v1819 = vpop.f32.mrf.mxu0
    %v1820 = vadd.f32 %v1808, %v1819
    %1821 = vdwg.mxu0
    %1822 = vmatpush.bf16.msra.mxu0 %v1316
    %1823 = vmatpush.bf16.msra.mxu0 %v1312
    %1824 = vmatpush.bf16.msra.mxu0 %v1308
    %1825 = vmatpush.bf16.msra.mxu0 %v1304
    %1826 = vmatpush.bf16.msra.mxu0 %v1300
    %1827 = vmatpush.bf16.msra.mxu0 %v1296
    %1828 = vmatpush.bf16.msra.mxu0 %v1292
    %1829 = vmatpush.bf16.msra.mxu0 %v1288
    %1830 = vmatmul.f32.gmra.mxu0 %v249
    %v1831 = vpop.f32.mrf.mxu0
    %v1832 = vadd.f32 %v1820, %v1831
    %1833 = vdwg.mxu0
    %1834 = vmatpush.bf16.msra.mxu0 %v1348
    %1835 = vmatpush.bf16.msra.mxu0 %v1344
    %1836 = vmatpush.bf16.msra.mxu0 %v1340
    %1837 = vmatpush.bf16.msra.mxu0 %v1336
    %1838 = vmatpush.bf16.msra.mxu0 %v1332
    %1839 = vmatpush.bf16.msra.mxu0 %v1328
    %1840 = vmatpush.bf16.msra.mxu0 %v1324
    %1841 = vmatpush.bf16.msra.mxu0 %v1320
    %1842 = vmatmul.f32.gmra.mxu0 %v250
    %v1843 = vpop.f32.mrf.mxu0
    %v1844 = vadd.f32 %v1832, %v1843
    %1845 = vdwg.mxu0
    %1846 = vmatpush.bf16.msra.mxu0 %v1380
    %1847 = vmatpush.bf16.msra.mxu0 %v1376
    %1848 = vmatpush.bf16.msra.mxu0 %v1372
    %1849 = vmatpush.bf16.msra.mxu0 %v1368
    %1850 = vmatpush.bf16.msra.mxu0 %v1364
    %1851 = vmatpush.bf16.msra.mxu0 %v1360
    %1852 = vmatpush.bf16.msra.mxu0 %v1356
    %1853 = vmatpush.bf16.msra.mxu0 %v1352
    %1854 = vmatmul.f32.gmra.mxu0 %v251
    %v1855 = vpop.f32.mrf.mxu0
    %v1856 = vadd.f32 %v1844, %v1855
    %1857 = vdwg.mxu0
    %1858 = vmatpush.bf16.msra.mxu0 %v1189
    %1859 = vmatpush.bf16.msra.mxu0 %v1185
    %1860 = vmatpush.bf16.msra.mxu0 %v1181
    %1861 = vmatpush.bf16.msra.mxu0 %v1177
    %1862 = vmatpush.bf16.msra.mxu0 %v1173
    %1863 = vmatpush.bf16.msra.mxu0 %v1169
    %1864 = vmatpush.bf16.msra.mxu0 %v1165
    %1865 = vmatpush.bf16.msra.mxu0 %v1161
    %1866 = vmatmul.f32.gmra.mxu0 %v245
    %v1867 = vpop.f32.mrf.mxu0
    %v1868 = vadd.f32 %v481, %v1867
    %1869 = vdwg.mxu0
    %1870 = vmatpush.bf16.msra.mxu0 %v1221
    %1871 = vmatpush.bf16.msra.mxu0 %v1217
    %1872 = vmatpush.bf16.msra.mxu0 %v1213
    %1873 = vmatpush.bf16.msra.mxu0 %v1209
    %1874 = vmatpush.bf16.msra.mxu0 %v1205
    %1875 = vmatpush.bf16.msra.mxu0 %v1201
    %1876 = vmatpush.bf16.msra.mxu0 %v1197
    %1877 = vmatpush.bf16.msra.mxu0 %v1193
    %1878 = vmatmul.f32.gmra.mxu0 %v246
    %v1879 = vpop.f32.mrf.mxu0
    %v1880 = vadd.f32 %v1868, %v1879
    %1881 = vdwg.mxu0
    %1882 = vmatpush.bf16.msra.mxu0 %v1253
    %1883 = vmatpush.bf16.msra.mxu0 %v1249
    %1884 = vmatpush.bf16.msra.mxu0 %v1245
    %1885 = vmatpush.bf16.msra.mxu0 %v1241
    %1886 = vmatpush.bf16.msra.mxu0 %v1237
    %1887 = vmatpush.bf16.msra.mxu0 %v1233
    %1888 = vmatpush.bf16.msra.mxu0 %v1229
    %1889 = vmatpush.bf16.msra.mxu0 %v1225
    %1890 = vmatmul.f32.gmra.mxu0 %v247
    %v1891 = vpop.f32.mrf.mxu0
    %v1892 = vadd.f32 %v1880, %v1891
    %1893 = vdwg.mxu0
    %1894 = vmatpush.bf16.msra.mxu0 %v1285
    %1895 = vmatpush.bf16.msra.mxu0 %v1281
    %1896 = vmatpush.bf16.msra.mxu0 %v1277
    %1897 = vmatpush.bf16.msra.mxu0 %v1273
    %1898 = vmatpush.bf16.msra.mxu0 %v1269
    %1899 = vmatpush.bf16.msra.mxu0 %v1265
    %1900 = vmatpush.bf16.msra.mxu0 %v1261
    %1901 = vmatpush.bf16.msra.mxu0 %v1257
    %1902 = vmatmul.f32.gmra.mxu0 %v248
    %v1903 = vpop.f32.mrf.mxu0
    %v1904 = vadd.f32 %v1892, %v1903
    %1905 = vdwg.mxu0
    %1906 = vmatpush.bf16.msra.mxu0 %v1317
    %1907 = vmatpush.bf16.msra.mxu0 %v1313
    %1908 = vmatpush.bf16.msra.mxu0 %v1309
    %1909 = vmatpush.bf16.msra.mxu0 %v1305
    %1910 = vmatpush.bf16.msra.mxu0 %v1301
    %1911 = vmatpush.bf16.msra.mxu0 %v1297
    %1912 = vmatpush.bf16.msra.mxu0 %v1293
    %1913 = vmatpush.bf16.msra.mxu0 %v1289
    %1914 = vmatmul.f32.gmra.mxu0 %v249
    %v1915 = vpop.f32.mrf.mxu0
    %v1916 = vadd.f32 %v1904, %v1915
    %1917 = vdwg.mxu0
    %1918 = vmatpush.bf16.msra.mxu0 %v1349
    %1919 = vmatpush.bf16.msra.mxu0 %v1345
    %1920 = vmatpush.bf16.msra.mxu0 %v1341
    %1921 = vmatpush.bf16.msra.mxu0 %v1337
    %1922 = vmatpush.bf16.msra.mxu0 %v1333
    %1923 = vmatpush.bf16.msra.mxu0 %v1329
    %1924 = vmatpush.bf16.msra.mxu0 %v1325
    %1925 = vmatpush.bf16.msra.mxu0 %v1321
    %1926 = vmatmul.f32.gmra.mxu0 %v250
    %v1927 = vpop.f32.mrf.mxu0
    %v1928 = vadd.f32 %v1916, %v1927
    %1929 = vdwg.mxu0
    %1930 = vmatpush.bf16.msra.mxu0 %v1381
    %1931 = vmatpush.bf16.msra.mxu0 %v1377
    %1932 = vmatpush.bf16.msra.mxu0 %v1373
    %1933 = vmatpush.bf16.msra.mxu0 %v1369
    %1934 = vmatpush.bf16.msra.mxu0 %v1365
    %1935 = vmatpush.bf16.msra.mxu0 %v1361
    %1936 = vmatpush.bf16.msra.mxu0 %v1357
    %1937 = vmatpush.bf16.msra.mxu0 %v1353
    %1938 = vmatmul.f32.gmra.mxu0 %v251
    %v1939 = vpop.f32.mrf.mxu0
    %v1940 = vadd.f32 %v1928, %v1939
    %1941 = vdwg.mxu0
    %v1942 = vmax.f32 %v1688, 0.0
    %v1943 = vmax.f32 %v1772, 0.0
    %v1944 = vmax.f32 %v1856, 0.0
    %v1945 = vmax.f32 %v1940, 0.0
    %v1946 = vrot.slane %v1942, 4
    %v1947 = vadd.f32 %v1942, %v1946
    %v1948 = vrot.slane %v1947, 2
    %v1949 = vadd.f32 %v1947, %v1948
    %v1950 = vrot.slane %v1949, 1
    %v1951 = vadd.f32 %v1949, %v1950
    %v1952 = vrot.slane %v1943, 4
    %v1953 = vadd.f32 %v1943, %v1952
    %v1954 = vrot.slane %v1953, 2
    %v1955 = vadd.f32 %v1953, %v1954
    %v1956 = vrot.slane %v1955, 1
    %v1957 = vadd.f32 %v1955, %v1956
    %v1958 = vrot.slane %v1944, 4
    %v1959 = vadd.f32 %v1944, %v1958
    %v1960 = vrot.slane %v1959, 2
    %v1961 = vadd.f32 %v1959, %v1960
    %v1962 = vrot.slane %v1961, 1
    %v1963 = vadd.f32 %v1961, %v1962
    %v1964 = vrot.slane %v1945, 4
    %v1965 = vadd.f32 %v1945, %v1964
    %v1966 = vrot.slane %v1965, 2
    %v1967 = vadd.f32 %v1965, %v1966
    %v1968 = vrot.slane %v1967, 1
    %v1969 = vadd.f32 %v1967, %v1968
    %v1970 = vrcp.pop 8.0
    %v1971 = vmul.f32 8.0, %v1970
    %v1972 = vsub.f32 1.0, %v1971
    %v1973 = vmul.f32 %v1970, %v1972
    %v1974 = vadd.f32 %v1970, %v1973
    %vm1975 = vweird.f32 %v1970
    %v1976 = vsel %vm1975, %v1970, %v1974
    %v1977 = vmul.f32 %v1951, %v1976
    %v1978 = vmul.f32 %v1957, %v1976
    %v1979 = vmul.f32 %v1963, %v1976
    %v1980 = vmul.f32 %v1969, %v1976
    %v1981 = vsub.f32 %v1942, %v1977
    %v1982 = vsub.f32 %v1943, %v1978
    %v1983 = vsub.f32 %v1944, %v1979
    %v1984 = vsub.f32 %v1945, %v1980
    %v1985 = vmul.f32 %v1981, %v1981
    %v1986 = vmul.f32 %v1982, %v1982
    %v1987 = vmul.f32 %v1983, %v1983
    %v1988 = vmul.f32 %v1984, %v1984
    %v1989 = vrot.slane %v1985, 4
    %v1990 = vadd.f32 %v1985, %v1989
    %v1991 = vrot.slane %v1990, 2
    %v1992 = vadd.f32 %v1990, %v1991
    %v1993 = vrot.slane %v1992, 1
    %v1994 = vadd.f32 %v1992, %v1993
    %v1995 = vrot.slane %v1986, 4
    %v1996 = vadd.f32 %v1986, %v1995
    %v1997 = vrot.slane %v1996, 2
    %v1998 = vadd.f32 %v1996, %v1997
    %v1999 = vrot.slane %v1998, 1
    %v2000 = vadd.f32 %v1998, %v1999
    %v2001 = vrot.slane %v1987, 4
    %v2002 = vadd.f32 %v1987, %v2001
    %v2003 = vrot.slane %v2002, 2
    %v2004 = vadd.f32 %v2002, %v2003
    %v2005 = vrot.slane %v2004, 1
    %v2006 = vadd.f32 %v2004, %v2005
    %v2007 = vrot.slane %v1988, 4
    %v2008 = vadd.f32 %v1988, %v2007
    %v2009 = vrot.slane %v2008, 2
    %v2010 = vadd.f32 %v2008, %v2009
    %v2011 = vrot.slane %v2010, 1
    %v2012 = vadd.f32 %v2010, %v2011
    %v2013 = vmul.f32 %v1994, %v1976
    %v2014 = vmul.f32 %v2000, %v1976
    %v2015 = vmul.f32 %v2006, %v1976
    %v2016 = vmul.f32 %v2012, %v1976
    %v2017 = vld [vmem:[#allocation8] sm:$0xf]
    %v2018 = vadd.f32 %v2013, 1e-05
    %v2019 = vadd.f32 %v2014, 1e-05
    %v2020 = vadd.f32 %v2015, 1e-05
    %v2021 = vadd.f32 %v2016, 1e-05
    %v2022 = vrsqrt.pop %v2018
    %v2023 = vmul.f32 %v2022, %v2018
    %v2024 = vmul.f32 %v2023, %v2022
    %v2025 = vmul.f32 0.5, %v2024
    %v2026 = vsub.f32 1.5, %v2025
    %v2027 = vmul.f32 %v2022, %v2026
    %vm2028 = vweird.f32 %v2018
    %vm2029 = vweird.f32 %v2022
    %vm2030 = vmor %vm2028, %vm2029
    %v2031 = vsel %vm2030, %v2022, %v2027
    %v2032 = vrsqrt.pop %v2019
    %v2033 = vmul.f32 %v2032, %v2019
    %v2034 = vmul.f32 %v2033, %v2032
    %v2035 = vmul.f32 0.5, %v2034
    %v2036 = vsub.f32 1.5, %v2035
    %v2037 = vmul.f32 %v2032, %v2036
    %vm2038 = vweird.f32 %v2019
    %vm2039 = vweird.f32 %v2032
    %vm2040 = vmor %vm2038, %vm2039
    %v2041 = vsel %vm2040, %v2032, %v2037
    %v2042 = vrsqrt.pop %v2020
    %v2043 = vmul.f32 %v2042, %v2020
    %v2044 = vmul.f32 %v2043, %v2042
    %v2045 = vmul.f32 0.5, %v2044
    %v2046 = vsub.f32 1.5, %v2045
    %v2047 = vmul.f32 %v2042, %v2046
    %vm2048 = vweird.f32 %v2020
    %vm2049 = vweird.f32 %v2042
    %vm2050 = vmor %vm2048, %vm2049
    %v2051 = vsel %vm2050, %v2042, %v2047
    %v2052 = vrsqrt.pop %v2021
    %v2053 = vmul.f32 %v2052, %v2021
    %v2054 = vmul.f32 %v2053, %v2052
    %v2055 = vmul.f32 0.5, %v2054
    %v2056 = vsub.f32 1.5, %v2055
    %v2057 = vmul.f32 %v2052, %v2056
    %vm2058 = vweird.f32 %v2021
    %vm2059 = vweird.f32 %v2052
    %vm2060 = vmor %vm2058, %vm2059
    %v2061 = vsel %vm2060, %v2052, %v2057
    %v2066 = vrot.slane %v2041, 7
    %v2067 = vrot.slane %v2051, 6
    %v2068 = vrot.slane %v2061, 5
    %vm2069 = vcmask 1040384
    %v2070 = vsel %vm2069, %v2031, %v2066
    %vm2071 = vcmask 1042434
    %v2072 = vsel %vm2071, %v2067, %v2068
    %vm2073 = vcmask 1041408
    %v2074 = vsel %vm2073, %v2070, %v2072
    %v2076 = vmul.f32 %v2017, %v2074
    %v2078 = vperm.slane %v2076, 0
    %v2079 = vperm.slane %v2076, 1
    %v2080 = vperm.slane %v2076, 2
    %v2081 = vperm.slane %v2076, 3
    %v2086 = vmul.f32 %v1981, %v2078
    %v2087 = vmul.f32 %v1982, %v2079
    %v2088 = vmul.f32 %v1983, %v2080
    %v2089 = vmul.f32 %v1984, %v2081
    %v2090 = vld [vmem:[#allocation10] sm:$0xf]
    %v2092 = vperm.slane %v2090, 0
    %v2093 = vperm.slane %v2090, 1
    %v2094 = vperm.slane %v2090, 2
    %v2095 = vperm.slane %v2090, 3
    %v2100 = vadd.f32 %v2086, %v2092
    %v2101 = vadd.f32 %v2087, %v2093
    %v2102 = vadd.f32 %v2088, %v2094
    %v2103 = vadd.f32 %v2089, %v2095
    %v2104 = vld [vmem:[#allocation11] sm:$0xff]
    %v2105 = vld [vmem:[#allocation11 + $0x8] sm:$0xff]
    %v2106 = vld [vmem:[#allocation11 + $0x10] sm:$0xff]
    %v2107 = vld [vmem:[#allocation11 + $0x18] sm:$0xff]
    %v2108 = vld [vmem:[#allocation11 + $0x20] sm:$0xff]
    %v2109 = vld [vmem:[#allocation11 + $0x28] sm:$0xff]
    %v2110 = vld [vmem:[#allocation11 + $0x30] sm:$0xff]
    %v2111 = vld [vmem:[#allocation11 + $0x38] sm:$0xff]
    %v2112 = vld [vmem:[#allocation11 + $0x40] sm:$0xff]
    %v2113 = vld [vmem:[#allocation11 + $0x48] sm:$0xff]
    %v2114 = vld [vmem:[#allocation11 + $0x50] sm:$0xff]
    %v2115 = vld [vmem:[#allocation11 + $0x58] sm:$0xff]
    %v2116 = vld [vmem:[#allocation11 + $0x60] sm:$0xff]
    %v2117 = vld [vmem:[#allocation11 + $0x68] sm:$0xff]
    %v2118 = vld [vmem:[#allocation11 + $0x70] sm:$0xff]
    %v2119 = vld [vmem:[#allocation11 + $0x78] sm:$0xff]
    %v2120 = vld [vmem:[#allocation11 + $0x80] sm:$0xff]
    %v2121 = vld [vmem:[#allocation11 + $0x88] sm:$0xff]
    %v2122 = vld [vmem:[#allocation11 + $0x90] sm:$0xff]
    %v2123 = vld [vmem:[#allocation11 + $0x98] sm:$0xff]
    %v2124 = vld [vmem:[#allocation11 + $0xa0] sm:$0xff]
    %v2125 = vld [vmem:[#allocation11 + $0xa8] sm:$0xff]
    %v2126 = vld [vmem:[#allocation11 + $0xb0] sm:$0xff]
    %v2127 = vld [vmem:[#allocation11 + $0xb8] sm:$0xff]
    %v2128 = vld [vmem:[#allocation11 + $0xc0] sm:$0xff]
    %v2129 = vld [vmem:[#allocation11 + $0xc8] sm:$0xff]
    %v2130 = vld [vmem:[#allocation11 + $0xd0] sm:$0xff]
    %v2131 = vld [vmem:[#allocation11 + $0xd8] sm:$0xff]
    %v2132 = vld [vmem:[#allocation11 + $0xe0] sm:$0xff]
    %v2133 = vld [vmem:[#allocation11 + $0xe8] sm:$0xff]
    %v2134 = vld [vmem:[#allocation11 + $0xf0] sm:$0xff]
    %v2135 = vld [vmem:[#allocation11 + $0xf8] sm:$0xff]
    %v2136 = vld [vmem:[#allocation11 + $0x100] sm:$0xff]
    %v2137 = vld [vmem:[#allocation11 + $0x108] sm:$0xff]
    %v2138 = vld [vmem:[#allocation11 + $0x110] sm:$0xff]
    %v2139 = vld [vmem:[#allocation11 + $0x118] sm:$0xff]
    %v2140 = vld [vmem:[#allocation11 + $0x120] sm:$0xff]
    %v2141 = vld [vmem:[#allocation11 + $0x128] sm:$0xff]
    %v2142 = vld [vmem:[#allocation11 + $0x130] sm:$0xff]
    %v2143 = vld [vmem:[#allocation11 + $0x138] sm:$0xff]
    %v2144 = vld [vmem:[#allocation11 + $0x140] sm:$0xff]
    %v2145 = vld [vmem:[#allocation11 + $0x148] sm:$0xff]
    %v2146 = vld [vmem:[#allocation11 + $0x150] sm:$0xff]
    %v2147 = vld [vmem:[#allocation11 + $0x158] sm:$0xff]
    %v2148 = vld [vmem:[#allocation11 + $0x160] sm:$0xff]
    %v2149 = vld [vmem:[#allocation11 + $0x168] sm:$0xff]
    %v2150 = vld [vmem:[#allocation11 + $0x170] sm:$0xff]
    %v2151 = vld [vmem:[#allocation11 + $0x178] sm:$0xff]
    %v2152 = vld [vmem:[#allocation11 + $0x180] sm:$0xff]
    %v2153 = vld [vmem:[#allocation11 + $0x188] sm:$0xff]
    %v2154 = vld [vmem:[#allocation11 + $0x190] sm:$0xff]
    %v2155 = vld [vmem:[#allocation11 + $0x198] sm:$0xff]
    %v2156 = vld [vmem:[#allocation11 + $0x1a0] sm:$0xff]
    %v2157 = vld [vmem:[#allocation11 + $0x1a8] sm:$0xff]
    %v2158 = vld [vmem:[#allocation11 + $0x1b0] sm:$0xff]
    %v2159 = vld [vmem:[#allocation11 + $0x1b8] sm:$0xff]
    %v2160 = vld [vmem:[#allocation11 + $0x1c0] sm:$0xff]
    %v2161 = vld [vmem:[#allocation11 + $0x1c8] sm:$0xff]
    %v2162 = vld [vmem:[#allocation11 + $0x1d0] sm:$0xff]
    %v2163 = vld [vmem:[#allocation11 + $0x1d8] sm:$0xff]
    %v2164 = vld [vmem:[#allocation11 + $0x1e0] sm:$0xff]
    %v2165 = vld [vmem:[#allocation11 + $0x1e8] sm:$0xff]
    %v2166 = vld [vmem:[#allocation11 + $0x1f0] sm:$0xff]
    %v2167 = vld [vmem:[#allocation11 + $0x1f8] sm:$0xff]
    %v2168 = vld [vmem:[%s6] sm:$0x3]
    %v2170 = vperm.slane %v2168, 0
    %v2171 = vperm.slane %v2168, 1
    %v2238 = vunpack.c.l.b16 %v2104
    %v2239 = vunpack.c.h.b16 %v2104
    %v2240 = vunpack.c.l.b16 %v2105
    %v2241 = vunpack.c.h.b16 %v2105
    %v2242 = vunpack.c.l.b16 %v2106
    %v2243 = vunpack.c.h.b16 %v2106
    %v2244 = vunpack.c.l.b16 %v2107
    %v2245 = vunpack.c.h.b16 %v2107
    %v2246 = vunpack.c.l.b16 %v2108
    %v2247 = vunpack.c.h.b16 %v2108
    %v2248 = vunpack.c.l.b16 %v2109
    %v2249 = vunpack.c.h.b16 %v2109
    %v2250 = vunpack.c.l.b16 %v2110
    %v2251 = vunpack.c.h.b16 %v2110
    %v2252 = vunpack.c.l.b16 %v2111
    %v2253 = vunpack.c.h.b16 %v2111
    %v2254 = vunpack.c.l.b16 %v2112
    %v2255 = vunpack.c.h.b16 %v2112
    %v2256 = vunpack.c.l.b16 %v2113
    %v2257 = vunpack.c.h.b16 %v2113
    %v2258 = vunpack.c.l.b16 %v2114
    %v2259 = vunpack.c.h.b16 %v2114
    %v2260 = vunpack.c.l.b16 %v2115
    %v2261 = vunpack.c.h.b16 %v2115
    %v2262 = vunpack.c.l.b16 %v2116
    %v2263 = vunpack.c.h.b16 %v2116
    %v2264 = vunpack.c.l.b16 %v2117
    %v2265 = vunpack.c.h.b16 %v2117
    %v2266 = vunpack.c.l.b16 %v2118
    %v2267 = vunpack.c.h.b16 %v2118
    %v2268 = vunpack.c.l.b16 %v2119
    %v2269 = vunpack.c.h.b16 %v2119
    %v2270 = vunpack.c.l.b16 %v2120
    %v2271 = vunpack.c.h.b16 %v2120
    %v2272 = vunpack.c.l.b16 %v2121
    %v2273 = vunpack.c.h.b16 %v2121
    %v2274 = vunpack.c.l.b16 %v2122
    %v2275 = vunpack.c.h.b16 %v2122
    %v2276 = vunpack.c.l.b16 %v2123
    %v2277 = vunpack.c.h.b16 %v2123
    %v2278 = vunpack.c.l.b16 %v2124
    %v2279 = vunpack.c.h.b16 %v2124
    %v2280 = vunpack.c.l.b16 %v2125
    %v2281 = vunpack.c.h.b16 %v2125
    %v2282 = vunpack.c.l.b16 %v2126
    %v2283 = vunpack.c.h.b16 %v2126
    %v2284 = vunpack.c.l.b16 %v2127
    %v2285 = vunpack.c.h.b16 %v2127
    %v2286 = vunpack.c.l.b16 %v2128
    %v2287 = vunpack.c.h.b16 %v2128
    %v2288 = vunpack.c.l.b16 %v2129
    %v2289 = vunpack.c.h.b16 %v2129
    %v2290 = vunpack.c.l.b16 %v2130
    %v2291 = vunpack.c.h.b16 %v2130
    %v2292 = vunpack.c.l.b16 %v2131
    %v2293 = vunpack.c.h.b16 %v2131
    %v2294 = vunpack.c.l.b16 %v2132
    %v2295 = vunpack.c.h.b16 %v2132
    %v2296 = vunpack.c.l.b16 %v2133
    %v2297 = vunpack.c.h.b16 %v2133
    %v2298 = vunpack.c.l.b16 %v2134
    %v2299 = vunpack.c.h.b16 %v2134
    %v2300 = vunpack.c.l.b16 %v2135
    %v2301 = vunpack.c.h.b16 %v2135
    %v2302 = vunpack.c.l.b16 %v2136
    %v2303 = vunpack.c.h.b16 %v2136
    %v2304 = vunpack.c.l.b16 %v2137
    %v2305 = vunpack.c.h.b16 %v2137
    %v2306 = vunpack.c.l.b16 %v2138
    %v2307 = vunpack.c.h.b16 %v2138
    %v2308 = vunpack.c.l.b16 %v2139
    %v2309 = vunpack.c.h.b16 %v2139
    %v2310 = vunpack.c.l.b16 %v2140
    %v2311 = vunpack.c.h.b16 %v2140
    %v2312 = vunpack.c.l.b16 %v2141
    %v2313 = vunpack.c.h.b16 %v2141
    %v2314 = vunpack.c.l.b16 %v2142
    %v2315 = vunpack.c.h.b16 %v2142
    %v2316 = vunpack.c.l.b16 %v2143
    %v2317 = vunpack.c.h.b16 %v2143
    %v2318 = vunpack.c.l.b16 %v2144
    %v2319 = vunpack.c.h.b16 %v2144
    %v2320 = vunpack.c.l.b16 %v2145
    %v2321 = vunpack.c.h.b16 %v2145
    %v2322 = vunpack.c.l.b16 %v2146
    %v2323 = vunpack.c.h.b16 %v2146
    %v2324 = vunpack.c.l.b16 %v2147
    %v2325 = vunpack.c.h.b16 %v2147
    %v2326 = vunpack.c.l.b16 %v2148
    %v2327 = vunpack.c.h.b16 %v2148
    %v2328 = vunpack.c.l.b16 %v2149
    %v2329 = vunpack.c.h.b16 %v2149
    %v2330 = vunpack.c.l.b16 %v2150
    %v2331 = vunpack.c.h.b16 %v2150
    %v2332 = vunpack.c.l.b16 %v2151
    %v2333 = vunpack.c.h.b16 %v2151
    %v2334 = vunpack.c.l.b16 %v2152
    %v2335 = vunpack.c.h.b16 %v2152
    %v2336 = vunpack.c.l.b16 %v2153
    %v2337 = vunpack.c.h.b16 %v2153
    %v2338 = vunpack.c.l.b16 %v2154
    %v2339 = vunpack.c.h.b16 %v2154
    %v2340 = vunpack.c.l.b16 %v2155
    %v2341 = vunpack.c.h.b16 %v2155
    %v2342 = vunpack.c.l.b16 %v2156
    %v2343 = vunpack.c.h.b16 %v2156
    %v2344 = vunpack.c.l.b16 %v2157
    %v2345 = vunpack.c.h.b16 %v2157
    %v2346 = vunpack.c.l.b16 %v2158
    %v2347 = vunpack.c.h.b16 %v2158
    %v2348 = vunpack.c.l.b16 %v2159
    %v2349 = vunpack.c.h.b16 %v2159
    %v2350 = vunpack.c.l.b16 %v2160
    %v2351 = vunpack.c.h.b16 %v2160
    %v2352 = vunpack.c.l.b16 %v2161
    %v2353 = vunpack.c.h.b16 %v2161
    %v2354 = vunpack.c.l.b16 %v2162
    %v2355 = vunpack.c.h.b16 %v2162
    %v2356 = vunpack.c.l.b16 %v2163
    %v2357 = vunpack.c.h.b16 %v2163
    %v2358 = vunpack.c.l.b16 %v2164
    %v2359 = vunpack.c.h.b16 %v2164
    %v2360 = vunpack.c.l.b16 %v2165
    %v2361 = vunpack.c.h.b16 %v2165
    %v2362 = vunpack.c.l.b16 %v2166
    %v2363 = vunpack.c.h.b16 %v2166
    %v2364 = vunpack.c.l.b16 %v2167
    %v2365 = vunpack.c.h.b16 %v2167
    %v2366 = vpack.c.b16 %v2240, %v2238
    %v2367 = vpack.c.b16 %v2241, %v2239
    %v2368 = vpack.c.b16 %v2244, %v2242
    %v2369 = vpack.c.b16 %v2245, %v2243
    %v2370 = vpack.c.b16 %v2248, %v2246
    %v2371 = vpack.c.b16 %v2249, %v2247
    %v2372 = vpack.c.b16 %v2252, %v2250
    %v2373 = vpack.c.b16 %v2253, %v2251
    %v2374 = vpack.c.b16 %v2256, %v2254
    %v2375 = vpack.c.b16 %v2257, %v2255
    %v2376 = vpack.c.b16 %v2260, %v2258
    %v2377 = vpack.c.b16 %v2261, %v2259
    %v2378 = vpack.c.b16 %v2264, %v2262
    %v2379 = vpack.c.b16 %v2265, %v2263
    %v2380 = vpack.c.b16 %v2268, %v2266
    %v2381 = vpack.c.b16 %v2269, %v2267
    %v2382 = vpack.c.b16 %v2272, %v2270
    %v2383 = vpack.c.b16 %v2273, %v2271
    %v2384 = vpack.c.b16 %v2276, %v2274
    %v2385 = vpack.c.b16 %v2277, %v2275
    %v2386 = vpack.c.b16 %v2280, %v2278
    %v2387 = vpack.c.b16 %v2281, %v2279
    %v2388 = vpack.c.b16 %v2284, %v2282
    %v2389 = vpack.c.b16 %v2285, %v2283
    %v2390 = vpack.c.b16 %v2288, %v2286
    %v2391 = vpack.c.b16 %v2289, %v2287
    %v2392 = vpack.c.b16 %v2292, %v2290
    %v2393 = vpack.c.b16 %v2293, %v2291
    %v2394 = vpack.c.b16 %v2296, %v2294
    %v2395 = vpack.c.b16 %v2297, %v2295
    %v2396 = vpack.c.b16 %v2300, %v2298
    %v2397 = vpack.c.b16 %v2301, %v2299
    %v2398 = vpack.c.b16 %v2304, %v2302
    %v2399 = vpack.c.b16 %v2305, %v2303
    %v2400 = vpack.c.b16 %v2308, %v2306
    %v2401 = vpack.c.b16 %v2309, %v2307
    %v2402 = vpack.c.b16 %v2312, %v2310
    %v2403 = vpack.c.b16 %v2313, %v2311
    %v2404 = vpack.c.b16 %v2316, %v2314
    %v2405 = vpack.c.b16 %v2317, %v2315
    %v2406 = vpack.c.b16 %v2320, %v2318
    %v2407 = vpack.c.b16 %v2321, %v2319
    %v2408 = vpack.c.b16 %v2324, %v2322
    %v2409 = vpack.c.b16 %v2325, %v2323
    %v2410 = vpack.c.b16 %v2328, %v2326
    %v2411 = vpack.c.b16 %v2329, %v2327
    %v2412 = vpack.c.b16 %v2332, %v2330
    %v2413 = vpack.c.b16 %v2333, %v2331
    %v2414 = vpack.c.b16 %v2336, %v2334
    %v2415 = vpack.c.b16 %v2337, %v2335
    %v2416 = vpack.c.b16 %v2340, %v2338
    %v2417 = vpack.c.b16 %v2341, %v2339
    %v2418 = vpack.c.b16 %v2344, %v2342
    %v2419 = vpack.c.b16 %v2345, %v2343
    %v2420 = vpack.c.b16 %v2348, %v2346
    %v2421 = vpack.c.b16 %v2349, %v2347
    %v2422 = vpack.c.b16 %v2352, %v2350
    %v2423 = vpack.c.b16 %v2353, %v2351
    %v2424 = vpack.c.b16 %v2356, %v2354
    %v2425 = vpack.c.b16 %v2357, %v2355
    %v2426 = vpack.c.b16 %v2360, %v2358
    %v2427 = vpack.c.b16 %v2361, %v2359
    %v2428 = vpack.c.b16 %v2364, %v2362
    %v2429 = vpack.c.b16 %v2365, %v2363
    %2494 = vmatpush.bf16.msra.mxu0 %v2380
    %2495 = vmatpush.bf16.msra.mxu0 %v2378
    %2496 = vmatpush.bf16.msra.mxu0 %v2376
    %2497 = vmatpush.bf16.msra.mxu0 %v2374
    %2498 = vmatpush.bf16.msra.mxu0 %v2372
    %2499 = vmatpush.bf16.msra.mxu0 %v2370
    %2500 = vmatpush.bf16.msra.mxu0 %v2368
    %2501 = vmatpush.bf16.msra.mxu0 %v2366
    %2502 = vmatmul.f32.gmra.mxu0 %v2100
    %v2503 = vpop.f32.mrf.mxu0
    %v2504 = vadd.f32 %v2170, %v2503
    %2505 = vdwg.mxu0
    %2506 = vmatpush.bf16.msra.mxu0 %v2396
    %2507 = vmatpush.bf16.msra.mxu0 %v2394
    %2508 = vmatpush.bf16.msra.mxu0 %v2392
    %2509 = vmatpush.bf16.msra.mxu0 %v2390
    %2510 = vmatpush.bf16.msra.mxu0 %v2388
    %2511 = vmatpush.bf16.msra.mxu0 %v2386
    %2512 = vmatpush.bf16.msra.mxu0 %v2384
    %2513 = vmatpush.bf16.msra.mxu0 %v2382
    %2514 = vmatmul.f32.gmra.mxu0 %v2101
    %v2515 = vpop.f32.mrf.mxu0
    %v2516 = vadd.f32 %v2504, %v2515
    %2517 = vdwg.mxu0
    %2518 = vmatpush.bf16.msra.mxu0 %v2412
    %2519 = vmatpush.bf16.msra.mxu0 %v2410
    %2520 = vmatpush.bf16.msra.mxu0 %v2408
    %2521 = vmatpush.bf16.msra.mxu0 %v2406
    %2522 = vmatpush.bf16.msra.mxu0 %v2404
    %2523 = vmatpush.bf16.msra.mxu0 %v2402
    %2524 = vmatpush.bf16.msra.mxu0 %v2400
    %2525 = vmatpush.bf16.msra.mxu0 %v2398
    %2526 = vmatmul.f32.gmra.mxu0 %v2102
    %v2527 = vpop.f32.mrf.mxu0
    %v2528 = vadd.f32 %v2516, %v2527
    %2529 = vdwg.mxu0
    %2530 = vmatpush.bf16.msra.mxu0 %v2428
    %2531 = vmatpush.bf16.msra.mxu0 %v2426
    %2532 = vmatpush.bf16.msra.mxu0 %v2424
    %2533 = vmatpush.bf16.msra.mxu0 %v2422
    %2534 = vmatpush.bf16.msra.mxu0 %v2420
    %2535 = vmatpush.bf16.msra.mxu0 %v2418
    %2536 = vmatpush.bf16.msra.mxu0 %v2416
    %2537 = vmatpush.bf16.msra.mxu0 %v2414
    %2538 = vmatmul.f32.gmra.mxu0 %v2103
    %v2539 = vpop.f32.mrf.mxu0
    %v2540 = vadd.f32 %v2528, %v2539
    %2541 = vdwg.mxu0
    %2542 = vmatpush.bf16.msra.mxu0 %v2381
    %2543 = vmatpush.bf16.msra.mxu0 %v2379
    %2544 = vmatpush.bf16.msra.mxu0 %v2377
    %2545 = vmatpush.bf16.msra.mxu0 %v2375
    %2546 = vmatpush.bf16.msra.mxu0 %v2373
    %2547 = vmatpush.bf16.msra.mxu0 %v2371
    %2548 = vmatpush.bf16.msra.mxu0 %v2369
    %2549 = vmatpush.bf16.msra.mxu0 %v2367
    %2550 = vmatmul.f32.gmra.mxu0 %v2100
    %v2551 = vpop.f32.mrf.mxu0
    %v2552 = vadd.f32 %v2171, %v2551
    %2553 = vdwg.mxu0
    %2554 = vmatpush.bf16.msra.mxu0 %v2397
    %2555 = vmatpush.bf16.msra.mxu0 %v2395
    %2556 = vmatpush.bf16.msra.mxu0 %v2393
    %2557 = vmatpush.bf16.msra.mxu0 %v2391
    %2558 = vmatpush.bf16.msra.mxu0 %v2389
    %2559 = vmatpush.bf16.msra.mxu0 %v2387
    %2560 = vmatpush.bf16.msra.mxu0 %v2385
    %2561 = vmatpush.bf16.msra.mxu0 %v2383
    %2562 = vmatmul.f32.gmra.mxu0 %v2101
    %v2563 = vpop.f32.mrf.mxu0
    %v2564 = vadd.f32 %v2552, %v2563
    %2565 = vdwg.mxu0
    %2566 = vmatpush.bf16.msra.mxu0 %v2413
    %2567 = vmatpush.bf16.msra.mxu0 %v2411
    %2568 = vmatpush.bf16.msra.mxu0 %v2409
    %2569 = vmatpush.bf16.msra.mxu0 %v2407
    %2570 = vmatpush.bf16.msra.mxu0 %v2405
    %2571 = vmatpush.bf16.msra.mxu0 %v2403
    %2572 = vmatpush.bf16.msra.mxu0 %v2401
    %2573 = vmatpush.bf16.msra.mxu0 %v2399
    %2574 = vmatmul.f32.gmra.mxu0 %v2102
    %v2575 = vpop.f32.mrf.mxu0
    %v2576 = vadd.f32 %v2564, %v2575
    %2577 = vdwg.mxu0
    %2578 = vmatpush.bf16.msra.mxu0 %v2429
    %2579 = vmatpush.bf16.msra.mxu0 %v2427
    %2580 = vmatpush.bf16.msra.mxu0 %v2425
    %2581 = vmatpush.bf16.msra.mxu0 %v2423
    %2582 = vmatpush.bf16.msra.mxu0 %v2421
    %2583 = vmatpush.bf16.msra.mxu0 %v2419
    %2584 = vmatpush.bf16.msra.mxu0 %v2417
    %2585 = vmatpush.bf16.msra.mxu0 %v2415
    %2586 = vmatmul.f32.gmra.mxu0 %v2103
    %v2587 = vpop.f32.mrf.mxu0
    %v2588 = vadd.f32 %v2576, %v2587
    %2589 = vdwg.mxu0
    %v2590 = vmax.f32 %v2540, 0.0
    %v2591 = vmax.f32 %v2588, 0.0
    %v2592 = vrot.slane %v2590, 4
    %v2593 = vadd.f32 %v2590, %v2592
    %v2594 = vrot.slane %v2593, 2
    %v2595 = vadd.f32 %v2593, %v2594
    %v2596 = vrot.slane %v2595, 1
    %v2597 = vadd.f32 %v2595, %v2596
    %v2598 = vrot.slane %v2591, 4
    %v2599 = vadd.f32 %v2591, %v2598
    %v2600 = vrot.slane %v2599, 2
    %v2601 = vadd.f32 %v2599, %v2600
    %v2602 = vrot.slane %v2601, 1
    %v2603 = vadd.f32 %v2601, %v2602
    %v2604 = vmul.f32 %v2597, %v1976
    %v2605 = vmul.f32 %v2603, %v1976
    %v2606 = vsub.f32 %v2590, %v2604
    %v2607 = vsub.f32 %v2591, %v2605
    %v2608 = vmul.f32 %v2606, %v2606
    %v2609 = vmul.f32 %v2607, %v2607
    %v2610 = vrot.slane %v2608, 4
    %v2611 = vadd.f32 %v2608, %v2610
    %v2612 = vrot.slane %v2611, 2
    %v2613 = vadd.f32 %v2611, %v2612
    %v2614 = vrot.slane %v2613, 1
    %v2615 = vadd.f32 %v2613, %v2614
    %v2616 = vrot.slane %v2609, 4
    %v2617 = vadd.f32 %v2609, %v2616
    %v2618 = vrot.slane %v2617, 2
    %v2619 = vadd.f32 %v2617, %v2618
    %v2620 = vrot.slane %v2619, 1
    %v2621 = vadd.f32 %v2619, %v2620
    %v2622 = vmul.f32 %v2615, %v1976
    %v2623 = vmul.f32 %v2621, %v1976
    %v2624 = vld [vmem:[#allocation13] sm:$0x3]
    %v2625 = vadd.f32 %v2622, 1e-05
    %v2626 = vadd.f32 %v2623, 1e-05
    %v2627 = vrsqrt.pop %v2625
    %v2628 = vmul.f32 %v2627, %v2625
    %v2629 = vmul.f32 %v2628, %v2627
    %v2630 = vmul.f32 0.5, %v2629
    %v2631 = vsub.f32 1.5, %v2630
    %v2632 = vmul.f32 %v2627, %v2631
    %vm2633 = vweird.f32 %v2625
    %vm2634 = vweird.f32 %v2627
    %vm2635 = vmor %vm2633, %vm2634
    %v2636 = vsel %vm2635, %v2627, %v2632
    %v2637 = vrsqrt.pop %v2626
    %v2638 = vmul.f32 %v2637, %v2626
    %v2639 = vmul.f32 %v2638, %v2637
    %v2640 = vmul.f32 0.5, %v2639
    %v2641 = vsub.f32 1.5, %v2640
    %v2642 = vmul.f32 %v2637, %v2641
    %vm2643 = vweird.f32 %v2626
    %vm2644 = vweird.f32 %v2637
    %vm2645 = vmor %vm2643, %vm2644
    %v2646 = vsel %vm2645, %v2637, %v2642
    %v2649 = vrot.slane %v2646, 7
    %v2650 = vsel %vm2069, %v2636, %v2649
    %v2652 = vmul.f32 %v2624, %v2650
    %v2654 = vperm.slane %v2652, 0
    %v2655 = vperm.slane %v2652, 1
    %v2658 = vmul.f32 %v2606, %v2654
    %v2659 = vmul.f32 %v2607, %v2655
    %v2660 = vld [vmem:[#allocation14] sm:$0x3]
    %v2662 = vperm.slane %v2660, 0
    %v2663 = vperm.slane %v2660, 1
    %v2666 = vadd.f32 %v2658, %v2662
    %v2667 = vadd.f32 %v2659, %v2663
    %v2668 = vld [vmem:[#allocation16] sm:$0xf]
    %v2669 = vld [vmem:[#allocation16 + $0x4] sm:$0xf]
    %v2670 = vld [vmem:[#allocation16 + $0x8] sm:$0xf]
    %v2671 = vld [vmem:[#allocation16 + $0xc] sm:$0xf]
    %v2672 = vld [vmem:[#allocation16 + $0x10] sm:$0xf]
    %v2673 = vld [vmem:[#allocation16 + $0x14] sm:$0xf]
    %v2674 = vld [vmem:[#allocation16 + $0x18] sm:$0xf]
    %v2675 = vld [vmem:[#allocation16 + $0x1c] sm:$0xf]
    %v2676 = vld [vmem:[#allocation16 + $0x20] sm:$0xf]
    %v2677 = vld [vmem:[#allocation16 + $0x24] sm:$0xf]
    %v2678 = vld [vmem:[#allocation16 + $0x28] sm:$0xf]
    %v2679 = vld [vmem:[#allocation16 + $0x2c] sm:$0xf]
    %v2680 = vld [vmem:[#allocation16 + $0x30] sm:$0xf]
    %v2681 = vld [vmem:[#allocation16 + $0x34] sm:$0xf]
    %v2682 = vld [vmem:[#allocation16 + $0x38] sm:$0xf]
    %v2683 = vld [vmem:[#allocation16 + $0x3c] sm:$0xf]
    %v2684 = vld [vmem:[#allocation16 + $0x40] sm:$0xf]
    %v2685 = vld [vmem:[#allocation16 + $0x44] sm:$0xf]
    %v2686 = vld [vmem:[#allocation16 + $0x48] sm:$0xf]
    %v2687 = vld [vmem:[#allocation16 + $0x4c] sm:$0xf]
    %v2688 = vld [vmem:[#allocation16 + $0x50] sm:$0xf]
    %v2689 = vld [vmem:[#allocation16 + $0x54] sm:$0xf]
    %v2690 = vld [vmem:[#allocation16 + $0x58] sm:$0xf]
    %v2691 = vld [vmem:[#allocation16 + $0x5c] sm:$0xf]
    %v2692 = vld [vmem:[#allocation16 + $0x60] sm:$0xf]
    %v2693 = vld [vmem:[#allocation16 + $0x64] sm:$0xf]
    %v2694 = vld [vmem:[#allocation16 + $0x68] sm:$0xf]
    %v2695 = vld [vmem:[#allocation16 + $0x6c] sm:$0xf]
    %v2696 = vld [vmem:[#allocation16 + $0x70] sm:$0xf]
    %v2697 = vld [vmem:[#allocation16 + $0x74] sm:$0xf]
    %v2698 = vld [vmem:[#allocation16 + $0x78] sm:$0xf]
    %v2699 = vld [vmem:[#allocation16 + $0x7c] sm:$0xf]
    %v2700 = vld [vmem:[%s10] sm:$0x1]
    %v2702 = vperm.slane %v2700, 0
    %v2736 = vunpack.c.l.b16 %v2668
    %v2737 = vunpack.c.l.b16 %v2669
    %v2738 = vunpack.c.l.b16 %v2670
    %v2739 = vunpack.c.l.b16 %v2671
    %v2740 = vunpack.c.l.b16 %v2672
    %v2741 = vunpack.c.l.b16 %v2673
    %v2742 = vunpack.c.l.b16 %v2674
    %v2743 = vunpack.c.l.b16 %v2675
    %v2744 = vunpack.c.l.b16 %v2676
    %v2745 = vunpack.c.l.b16 %v2677
    %v2746 = vunpack.c.l.b16 %v2678
    %v2747 = vunpack.c.l.b16 %v2679
    %v2748 = vunpack.c.l.b16 %v2680
    %v2749 = vunpack.c.l.b16 %v2681
    %v2750 = vunpack.c.l.b16 %v2682
    %v2751 = vunpack.c.l.b16 %v2683
    %v2752 = vunpack.c.l.b16 %v2684
    %v2753 = vunpack.c.l.b16 %v2685
    %v2754 = vunpack.c.l.b16 %v2686
    %v2755 = vunpack.c.l.b16 %v2687
    %v2756 = vunpack.c.l.b16 %v2688
    %v2757 = vunpack.c.l.b16 %v2689
    %v2758 = vunpack.c.l.b16 %v2690
    %v2759 = vunpack.c.l.b16 %v2691
    %v2760 = vunpack.c.l.b16 %v2692
    %v2761 = vunpack.c.l.b16 %v2693
    %v2762 = vunpack.c.l.b16 %v2694
    %v2763 = vunpack.c.l.b16 %v2695
    %v2764 = vunpack.c.l.b16 %v2696
    %v2765 = vunpack.c.l.b16 %v2697
    %v2766 = vunpack.c.l.b16 %v2698
    %v2767 = vunpack.c.l.b16 %v2699
    %v2768 = vpack.c.b16 %v2737, %v2736
    %v2769 = vpack.c.b16 %v2739, %v2738
    %v2770 = vpack.c.b16 %v2741, %v2740
    %v2771 = vpack.c.b16 %v2743, %v2742
    %v2772 = vpack.c.b16 %v2745, %v2744
    %v2773 = vpack.c.b16 %v2747, %v2746
    %v2774 = vpack.c.b16 %v2749, %v2748
    %v2775 = vpack.c.b16 %v2751, %v2750
    %v2776 = vpack.c.b16 %v2753, %v2752
    %v2777 = vpack.c.b16 %v2755, %v2754
    %v2778 = vpack.c.b16 %v2757, %v2756
    %v2779 = vpack.c.b16 %v2759, %v2758
    %v2780 = vpack.c.b16 %v2761, %v2760
    %v2781 = vpack.c.b16 %v2763, %v2762
    %v2782 = vpack.c.b16 %v2765, %v2764
    %v2783 = vpack.c.b16 %v2767, %v2766
    %2800 = vmatpush.bf16.msra.mxu0 %v2775
    %2801 = vmatpush.bf16.msra.mxu0 %v2774
    %2802 = vmatpush.bf16.msra.mxu0 %v2773
    %2803 = vmatpush.bf16.msra.mxu0 %v2772
    %2804 = vmatpush.bf16.msra.mxu0 %v2771
    %2805 = vmatpush.bf16.msra.mxu0 %v2770
    %2806 = vmatpush.bf16.msra.mxu0 %v2769
    %2807 = vmatpush.bf16.msra.mxu0 %v2768
    %2808 = vmatmul.f32.gmra.mxu0 %v2666
    %v2809 = vpop.f32.mrf.mxu0
    %v2810 = vadd.f32 %v2702, %v2809
    %2811 = vdwg.mxu0
    %2812 = vmatpush.bf16.msra.mxu0 %v2783
    %2813 = vmatpush.bf16.msra.mxu0 %v2782
    %2814 = vmatpush.bf16.msra.mxu0 %v2781
    %2815 = vmatpush.bf16.msra.mxu0 %v2780
    %2816 = vmatpush.bf16.msra.mxu0 %v2779
    %2817 = vmatpush.bf16.msra.mxu0 %v2778
    %2818 = vmatpush.bf16.msra.mxu0 %v2777
    %2819 = vmatpush.bf16.msra.mxu0 %v2776
    %2820 = vmatmul.f32.gmra.mxu0 %v2667
    %v2821 = vpop.f32.mrf.mxu0
    %v2822 = vadd.f32 %v2810, %v2821
    %2823 = vdwg.mxu0
    %v2824 = vld [vmem:[#allocation17] sm:$0xff]
    %v2825 = vld [vmem:[#allocation17 + $0x8] sm:$0xff]
    %v2826 = vld [vmem:[#allocation17 + $0x10] sm:$0xff]
    %v2827 = vld [vmem:[#allocation17 + $0x18] sm:$0xff]
    %v2828 = vld [vmem:[#allocation17 + $0x20] sm:$0xff]
    %v2829 = vld [vmem:[#allocation17 + $0x28] sm:$0xff]
    %v2830 = vld [vmem:[#allocation17 + $0x30] sm:$0xff]
    %v2831 = vld [vmem:[#allocation17 + $0x38] sm:$0xff]
    %v2832 = vld [vmem:[#allocation17 + $0x40] sm:$0xff]
    %v2833 = vld [vmem:[#allocation17 + $0x48] sm:$0xff]
    %v2834 = vld [vmem:[#allocation17 + $0x50] sm:$0xff]
    %v2835 = vld [vmem:[#allocation17 + $0x58] sm:$0xff]
    %v2836 = vld [vmem:[#allocation17 + $0x60] sm:$0xff]
    %v2837 = vld [vmem:[#allocation17 + $0x68] sm:$0xff]
    %v2838 = vld [vmem:[#allocation17 + $0x70] sm:$0xff]
    %v2839 = vld [vmem:[#allocation17 + $0x78] sm:$0xff]
    %v2840 = vld [vmem:[#allocation19] sm:$0x3]
    %v2842 = vperm.slane %v2840, 0
    %v2843 = vperm.slane %v2840, 1
    %v2862 = vunpack.c.l.b16 %v2824
    %v2863 = vunpack.c.h.b16 %v2824
    %v2864 = vunpack.c.l.b16 %v2825
    %v2865 = vunpack.c.h.b16 %v2825
    %v2866 = vunpack.c.l.b16 %v2826
    %v2867 = vunpack.c.h.b16 %v2826
    %v2868 = vunpack.c.l.b16 %v2827
    %v2869 = vunpack.c.h.b16 %v2827
    %v2870 = vunpack.c.l.b16 %v2828
    %v2871 = vunpack.c.h.b16 %v2828
    %v2872 = vunpack.c.l.b16 %v2829
    %v2873 = vunpack.c.h.b16 %v2829
    %v2874 = vunpack.c.l.b16 %v2830
    %v2875 = vunpack.c.h.b16 %v2830
    %v2876 = vunpack.c.l.b16 %v2831
    %v2877 = vunpack.c.h.b16 %v2831
    %v2878 = vunpack.c.l.b16 %v2832
    %v2879 = vunpack.c.h.b16 %v2832
    %v2880 = vunpack.c.l.b16 %v2833
    %v2881 = vunpack.c.h.b16 %v2833
    %v2882 = vunpack.c.l.b16 %v2834
    %v2883 = vunpack.c.h.b16 %v2834
    %v2884 = vunpack.c.l.b16 %v2835
    %v2885 = vunpack.c.h.b16 %v2835
    %v2886 = vunpack.c.l.b16 %v2836
    %v2887 = vunpack.c.h.b16 %v2836
    %v2888 = vunpack.c.l.b16 %v2837
    %v2889 = vunpack.c.h.b16 %v2837
    %v2890 = vunpack.c.l.b16 %v2838
    %v2891 = vunpack.c.h.b16 %v2838
    %v2892 = vunpack.c.l.b16 %v2839
    %v2893 = vunpack.c.h.b16 %v2839
    %v2894 = vpack.c.b16 %v2864, %v2862
    %v2895 = vpack.c.b16 %v2865, %v2863
    %v2896 = vpack.c.b16 %v2868, %v2866
    %v2897 = vpack.c.b16 %v2869, %v2867
    %v2898 = vpack.c.b16 %v2872, %v2870
    %v2899 = vpack.c.b16 %v2873, %v2871
    %v2900 = vpack.c.b16 %v2876, %v2874
    %v2901 = vpack.c.b16 %v2877, %v2875
    %v2902 = vpack.c.b16 %v2880, %v2878
    %v2903 = vpack.c.b16 %v2881, %v2879
    %v2904 = vpack.c.b16 %v2884, %v2882
    %v2905 = vpack.c.b16 %v2885, %v2883
    %v2906 = vpack.c.b16 %v2888, %v2886
    %v2907 = vpack.c.b16 %v2889, %v2887
    %v2908 = vpack.c.b16 %v2892, %v2890
    %v2909 = vpack.c.b16 %v2893, %v2891
    %2926 = vmatpush.bf16.msra.mxu0 %v2908
    %2927 = vmatpush.bf16.msra.mxu0 %v2906
    %2928 = vmatpush.bf16.msra.mxu0 %v2904
    %2929 = vmatpush.bf16.msra.mxu0 %v2902
    %2930 = vmatpush.bf16.msra.mxu0 %v2900
    %2931 = vmatpush.bf16.msra.mxu0 %v2898
    %2932 = vmatpush.bf16.msra.mxu0 %v2896
    %2933 = vmatpush.bf16.msra.mxu0 %v2894
    %2934 = vmatmul.f32.gmra.mxu0 %v2822
    %v2935 = vpop.f32.mrf.mxu0
    %v2936 = vadd.f32 %v2842, %v2935
    %2937 = vdwg.mxu0
    %2938 = vmatpush.bf16.msra.mxu0 %v2909
    %2939 = vmatpush.bf16.msra.mxu0 %v2907
    %2940 = vmatpush.bf16.msra.mxu0 %v2905
    %2941 = vmatpush.bf16.msra.mxu0 %v2903
    %2942 = vmatpush.bf16.msra.mxu0 %v2901
    %2943 = vmatpush.bf16.msra.mxu0 %v2899
    %2944 = vmatpush.bf16.msra.mxu0 %v2897
    %2945 = vmatpush.bf16.msra.mxu0 %v2895
    %2946 = vmatmul.f32.gmra.mxu0 %v2822
    %v2947 = vpop.f32.mrf.mxu0
    %v2948 = vadd.f32 %v2843, %v2947
    %2949 = vdwg.mxu0
    %v2950 = vmax.f32 %v2936, 0.0
    %v2951 = vmax.f32 %v2948, 0.0
    %v2952 = vrot.slane %v2950, 4
    %v2953 = vadd.f32 %v2950, %v2952
    %v2954 = vrot.slane %v2953, 2
    %v2955 = vadd.f32 %v2953, %v2954
    %v2956 = vrot.slane %v2955, 1
    %v2957 = vadd.f32 %v2955, %v2956
    %v2958 = vrot.slane %v2951, 4
    %v2959 = vadd.f32 %v2951, %v2958
    %v2960 = vrot.slane %v2959, 2
    %v2961 = vadd.f32 %v2959, %v2960
    %v2962 = vrot.slane %v2961, 1
    %v2963 = vadd.f32 %v2961, %v2962
    %v2964 = vmul.f32 %v2957, %v1976
    %v2965 = vmul.f32 %v2963, %v1976
    %v2966 = vsub.f32 %v2950, %v2964
    %v2967 = vsub.f32 %v2951, %v2965
    %v2968 = vmul.f32 %v2966, %v2966
    %v2969 = vmul.f32 %v2967, %v2967
    %v2970 = vrot.slane %v2968, 4
    %v2971 = vadd.f32 %v2968, %v2970
    %v2972 = vrot.slane %v2971, 2
    %v2973 = vadd.f32 %v2971, %v2972
    %v2974 = vrot.slane %v2973, 1
    %v2975 = vadd.f32 %v2973, %v2974
    %v2976 = vrot.slane %v2969, 4
    %v2977 = vadd.f32 %v2969, %v2976
    %v2978 = vrot.slane %v2977, 2
    %v2979 = vadd.f32 %v2977, %v2978
    %v2980 = vrot.slane %v2979, 1
    %v2981 = vadd.f32 %v2979, %v2980
    %v2982 = vmul.f32 %v2975, %v1976
    %v2983 = vmul.f32 %v2981, %v1976
    %v2984 = vadd.f32 %v2982, 1e-05
    %v2985 = vadd.f32 %v2983, 1e-05
    %v2986 = vrsqrt.pop %v2984
    %v2987 = vmul.f32 %v2986, %v2984
    %v2988 = vmul.f32 %v2987, %v2986
    %v2989 = vmul.f32 0.5, %v2988
    %v2990 = vsub.f32 1.5, %v2989
    %v2991 = vmul.f32 %v2986, %v2990
    %vm2992 = vweird.f32 %v2984
    %vm2993 = vweird.f32 %v2986
    %vm2994 = vmor %vm2992, %vm2993
    %v2995 = vsel %vm2994, %v2986, %v2991
    %v2996 = vrsqrt.pop %v2985
    %v2997 = vmul.f32 %v2996, %v2985
    %v2998 = vmul.f32 %v2997, %v2996
    %v2999 = vmul.f32 0.5, %v2998
    %v3000 = vsub.f32 1.5, %v2999
    %v3001 = vmul.f32 %v2996, %v3000
    %vm3002 = vweird.f32 %v2985
    %vm3003 = vweird.f32 %v2996
    %vm3004 = vmor %vm3002, %vm3003
    %v3005 = vsel %vm3004, %v2996, %v3001
    %v3008 = vrot.slane %v3005, 7
    %v3009 = vsel %vm2069, %v2995, %v3008
    %v3011 = vmul.f32 %v2624, %v3009
    %v3013 = vperm.slane %v3011, 0
    %v3014 = vperm.slane %v3011, 1
    %v3017 = vmul.f32 %v2966, %v3013
    %v3018 = vmul.f32 %v2967, %v3014
    %v3019 = vadd.f32 %v3017, %v2662
    %v3020 = vadd.f32 %v3018, %v2663
    %v3021 = vld [vmem:[#allocation20] sm:$0xff]
    %v3022 = vld [vmem:[#allocation20 + $0x8] sm:$0xff]
    %v3023 = vld [vmem:[#allocation20 + $0x10] sm:$0xff]
    %v3024 = vld [vmem:[#allocation20 + $0x18] sm:$0xff]
    %v3025 = vld [vmem:[#allocation20 + $0x20] sm:$0xff]
    %v3026 = vld [vmem:[#allocation20 + $0x28] sm:$0xff]
    %v3027 = vld [vmem:[#allocation20 + $0x30] sm:$0xff]
    %v3028 = vld [vmem:[#allocation20 + $0x38] sm:$0xff]
    %v3029 = vld [vmem:[#allocation20 + $0x40] sm:$0xff]
    %v3030 = vld [vmem:[#allocation20 + $0x48] sm:$0xff]
    %v3031 = vld [vmem:[#allocation20 + $0x50] sm:$0xff]
    %v3032 = vld [vmem:[#allocation20 + $0x58] sm:$0xff]
    %v3033 = vld [vmem:[#allocation20 + $0x60] sm:$0xff]
    %v3034 = vld [vmem:[#allocation20 + $0x68] sm:$0xff]
    %v3035 = vld [vmem:[#allocation20 + $0x70] sm:$0xff]
    %v3036 = vld [vmem:[#allocation20 + $0x78] sm:$0xff]
    %v3037 = vld [vmem:[#allocation20 + $0x80] sm:$0xff]
    %v3038 = vld [vmem:[#allocation20 + $0x88] sm:$0xff]
    %v3039 = vld [vmem:[#allocation20 + $0x90] sm:$0xff]
    %v3040 = vld [vmem:[#allocation20 + $0x98] sm:$0xff]
    %v3041 = vld [vmem:[#allocation20 + $0xa0] sm:$0xff]
    %v3042 = vld [vmem:[#allocation20 + $0xa8] sm:$0xff]
    %v3043 = vld [vmem:[#allocation20 + $0xb0] sm:$0xff]
    %v3044 = vld [vmem:[#allocation20 + $0xb8] sm:$0xff]
    %v3045 = vld [vmem:[#allocation20 + $0xc0] sm:$0xff]
    %v3046 = vld [vmem:[#allocation20 + $0xc8] sm:$0xff]
    %v3047 = vld [vmem:[#allocation20 + $0xd0] sm:$0xff]
    %v3048 = vld [vmem:[#allocation20 + $0xd8] sm:$0xff]
    %v3049 = vld [vmem:[#allocation20 + $0xe0] sm:$0xff]
    %v3050 = vld [vmem:[#allocation20 + $0xe8] sm:$0xff]
    %v3051 = vld [vmem:[#allocation20 + $0xf0] sm:$0xff]
    %v3052 = vld [vmem:[#allocation20 + $0xf8] sm:$0xff]
    %v3053 = vld [vmem:[#allocation20 + $0x100] sm:$0xff]
    %v3054 = vld [vmem:[#allocation20 + $0x108] sm:$0xff]
    %v3055 = vld [vmem:[#allocation20 + $0x110] sm:$0xff]
    %v3056 = vld [vmem:[#allocation20 + $0x118] sm:$0xff]
    %v3057 = vld [vmem:[#allocation20 + $0x120] sm:$0xff]
    %v3058 = vld [vmem:[#allocation20 + $0x128] sm:$0xff]
    %v3059 = vld [vmem:[#allocation20 + $0x130] sm:$0xff]
    %v3060 = vld [vmem:[#allocation20 + $0x138] sm:$0xff]
    %v3061 = vld [vmem:[#allocation20 + $0x140] sm:$0xff]
    %v3062 = vld [vmem:[#allocation20 + $0x148] sm:$0xff]
    %v3063 = vld [vmem:[#allocation20 + $0x150] sm:$0xff]
    %v3064 = vld [vmem:[#allocation20 + $0x158] sm:$0xff]
    %v3065 = vld [vmem:[#allocation20 + $0x160] sm:$0xff]
    %v3066 = vld [vmem:[#allocation20 + $0x168] sm:$0xff]
    %v3067 = vld [vmem:[#allocation20 + $0x170] sm:$0xff]
    %v3068 = vld [vmem:[#allocation20 + $0x178] sm:$0xff]
    %v3069 = vld [vmem:[#allocation20 + $0x180] sm:$0xff]
    %v3070 = vld [vmem:[#allocation20 + $0x188] sm:$0xff]
    %v3071 = vld [vmem:[#allocation20 + $0x190] sm:$0xff]
    %v3072 = vld [vmem:[#allocation20 + $0x198] sm:$0xff]
    %v3073 = vld [vmem:[#allocation20 + $0x1a0] sm:$0xff]
    %v3074 = vld [vmem:[#allocation20 + $0x1a8] sm:$0xff]
    %v3075 = vld [vmem:[#allocation20 + $0x1b0] sm:$0xff]
    %v3076 = vld [vmem:[#allocation20 + $0x1b8] sm:$0xff]
    %v3077 = vld [vmem:[#allocation20 + $0x1c0] sm:$0xff]
    %v3078 = vld [vmem:[#allocation20 + $0x1c8] sm:$0xff]
    %v3079 = vld [vmem:[#allocation20 + $0x1d0] sm:$0xff]
    %v3080 = vld [vmem:[#allocation20 + $0x1d8] sm:$0xff]
    %v3081 = vld [vmem:[#allocation20 + $0x1e0] sm:$0xff]
    %v3082 = vld [vmem:[#allocation20 + $0x1e8] sm:$0xff]
    %v3083 = vld [vmem:[#allocation20 + $0x1f0] sm:$0xff]
    %v3084 = vld [vmem:[#allocation20 + $0x1f8] sm:$0xff]
    %v3085 = vld [vmem:[%s14] sm:$0xf]
    %v3087 = vperm.slane %v3085, 0
    %v3088 = vperm.slane %v3085, 1
    %v3089 = vperm.slane %v3085, 2
    %v3090 = vperm.slane %v3085, 3
    %v3159 = vunpack.c.l.b16 %v3021
    %v3160 = vunpack.c.h.b16 %v3021
    %v3161 = vunpack.c.l.b16 %v3022
    %v3162 = vunpack.c.h.b16 %v3022
    %v3163 = vunpack.c.l.b16 %v3023
    %v3164 = vunpack.c.h.b16 %v3023
    %v3165 = vunpack.c.l.b16 %v3024
    %v3166 = vunpack.c.h.b16 %v3024
    %v3167 = vunpack.c.l.b16 %v3025
    %v3168 = vunpack.c.h.b16 %v3025
    %v3169 = vunpack.c.l.b16 %v3026
    %v3170 = vunpack.c.h.b16 %v3026
    %v3171 = vunpack.c.l.b16 %v3027
    %v3172 = vunpack.c.h.b16 %v3027
    %v3173 = vunpack.c.l.b16 %v3028
    %v3174 = vunpack.c.h.b16 %v3028
    %v3175 = vunpack.c.l.b16 %v3029
    %v3176 = vunpack.c.h.b16 %v3029
    %v3177 = vunpack.c.l.b16 %v3030
    %v3178 = vunpack.c.h.b16 %v3030
    %v3179 = vunpack.c.l.b16 %v3031
    %v3180 = vunpack.c.h.b16 %v3031
    %v3181 = vunpack.c.l.b16 %v3032
    %v3182 = vunpack.c.h.b16 %v3032
    %v3183 = vunpack.c.l.b16 %v3033
    %v3184 = vunpack.c.h.b16 %v3033
    %v3185 = vunpack.c.l.b16 %v3034
    %v3186 = vunpack.c.h.b16 %v3034
    %v3187 = vunpack.c.l.b16 %v3035
    %v3188 = vunpack.c.h.b16 %v3035
    %v3189 = vunpack.c.l.b16 %v3036
    %v3190 = vunpack.c.h.b16 %v3036
    %v3191 = vunpack.c.l.b16 %v3037
    %v3192 = vunpack.c.h.b16 %v3037
    %v3193 = vunpack.c.l.b16 %v3038
    %v3194 = vunpack.c.h.b16 %v3038
    %v3195 = vunpack.c.l.b16 %v3039
    %v3196 = vunpack.c.h.b16 %v3039
    %v3197 = vunpack.c.l.b16 %v3040
    %v3198 = vunpack.c.h.b16 %v3040
    %v3199 = vunpack.c.l.b16 %v3041
    %v3200 = vunpack.c.h.b16 %v3041
    %v3201 = vunpack.c.l.b16 %v3042
    %v3202 = vunpack.c.h.b16 %v3042
    %v3203 = vunpack.c.l.b16 %v3043
    %v3204 = vunpack.c.h.b16 %v3043
    %v3205 = vunpack.c.l.b16 %v3044
    %v3206 = vunpack.c.h.b16 %v3044
    %v3207 = vunpack.c.l.b16 %v3045
    %v3208 = vunpack.c.h.b16 %v3045
    %v3209 = vunpack.c.l.b16 %v3046
    %v3210 = vunpack.c.h.b16 %v3046
    %v3211 = vunpack.c.l.b16 %v3047
    %v3212 = vunpack.c.h.b16 %v3047
    %v3213 = vunpack.c.l.b16 %v3048
    %v3214 = vunpack.c.h.b16 %v3048
    %v3215 = vunpack.c.l.b16 %v3049
    %v3216 = vunpack.c.h.b16 %v3049
    %v3217 = vunpack.c.l.b16 %v3050
    %v3218 = vunpack.c.h.b16 %v3050
    %v3219 = vunpack.c.l.b16 %v3051
    %v3220 = vunpack.c.h.b16 %v3051
    %v3221 = vunpack.c.l.b16 %v3052
    %v3222 = vunpack.c.h.b16 %v3052
    %v3223 = vunpack.c.l.b16 %v3053
    %v3224 = vunpack.c.h.b16 %v3053
    %v3225 = vunpack.c.l.b16 %v3054
    %v3226 = vunpack.c.h.b16 %v3054
    %v3227 = vunpack.c.l.b16 %v3055
    %v3228 = vunpack.c.h.b16 %v3055
    %v3229 = vunpack.c.l.b16 %v3056
    %v3230 = vunpack.c.h.b16 %v3056
    %v3231 = vunpack.c.l.b16 %v3057
    %v3232 = vunpack.c.h.b16 %v3057
    %v3233 = vunpack.c.l.b16 %v3058
    %v3234 = vunpack.c.h.b16 %v3058
    %v3235 = vunpack.c.l.b16 %v3059
    %v3236 = vunpack.c.h.b16 %v3059
    %v3237 = vunpack.c.l.b16 %v3060
    %v3238 = vunpack.c.h.b16 %v3060
    %v3239 = vunpack.c.l.b16 %v3061
    %v3240 = vunpack.c.h.b16 %v3061
    %v3241 = vunpack.c.l.b16 %v3062
    %v3242 = vunpack.c.h.b16 %v3062
    %v3243 = vunpack.c.l.b16 %v3063
    %v3244 = vunpack.c.h.b16 %v3063
    %v3245 = vunpack.c.l.b16 %v3064
    %v3246 = vunpack.c.h.b16 %v3064
    %v3247 = vunpack.c.l.b16 %v3065
    %v3248 = vunpack.c.h.b16 %v3065
    %v3249 = vunpack.c.l.b16 %v3066
    %v3250 = vunpack.c.h.b16 %v3066
    %v3251 = vunpack.c.l.b16 %v3067
    %v3252 = vunpack.c.h.b16 %v3067
    %v3253 = vunpack.c.l.b16 %v3068
    %v3254 = vunpack.c.h.b16 %v3068
    %v3255 = vunpack.c.l.b16 %v3069
    %v3256 = vunpack.c.h.b16 %v3069
    %v3257 = vunpack.c.l.b16 %v3070
    %v3258 = vunpack.c.h.b16 %v3070
    %v3259 = vunpack.c.l.b16 %v3071
    %v3260 = vunpack.c.h.b16 %v3071
    %v3261 = vunpack.c.l.b16 %v3072
    %v3262 = vunpack.c.h.b16 %v3072
    %v3263 = vunpack.c.l.b16 %v3073
    %v3264 = vunpack.c.h.b16 %v3073
    %v3265 = vunpack.c.l.b16 %v3074
    %v3266 = vunpack.c.h.b16 %v3074
    %v3267 = vunpack.c.l.b16 %v3075
    %v3268 = vunpack.c.h.b16 %v3075
    %v3269 = vunpack.c.l.b16 %v3076
    %v3270 = vunpack.c.h.b16 %v3076
    %v3271 = vunpack.c.l.b16 %v3077
    %v3272 = vunpack.c.h.b16 %v3077
    %v3273 = vunpack.c.l.b16 %v3078
    %v3274 = vunpack.c.h.b16 %v3078
    %v3275 = vunpack.c.l.b16 %v3079
    %v3276 = vunpack.c.h.b16 %v3079
    %v3277 = vunpack.c.l.b16 %v3080
    %v3278 = vunpack.c.h.b16 %v3080
    %v3279 = vunpack.c.l.b16 %v3081
    %v3280 = vunpack.c.h.b16 %v3081
    %v3281 = vunpack.c.l.b16 %v3082
    %v3282 = vunpack.c.h.b16 %v3082
    %v3283 = vunpack.c.l.b16 %v3083
    %v3284 = vunpack.c.h.b16 %v3083
    %v3285 = vunpack.c.l.b16 %v3084
    %v3286 = vunpack.c.h.b16 %v3084
    %v3287 = vpack.c.b16 %v3163, %v3159
    %v3288 = vpack.c.b16 %v3164, %v3160
    %v3289 = vpack.c.b16 %v3165, %v3161
    %v3290 = vpack.c.b16 %v3166, %v3162
    %v3291 = vpack.c.b16 %v3171, %v3167
    %v3292 = vpack.c.b16 %v3172, %v3168
    %v3293 = vpack.c.b16 %v3173, %v3169
    %v3294 = vpack.c.b16 %v3174, %v3170
    %v3295 = vpack.c.b16 %v3179, %v3175
    %v3296 = vpack.c.b16 %v3180, %v3176
    %v3297 = vpack.c.b16 %v3181, %v3177
    %v3298 = vpack.c.b16 %v3182, %v3178
    %v3299 = vpack.c.b16 %v3187, %v3183
    %v3300 = vpack.c.b16 %v3188, %v3184
    %v3301 = vpack.c.b16 %v3189, %v3185
    %v3302 = vpack.c.b16 %v3190, %v3186
    %v3303 = vpack.c.b16 %v3195, %v3191
    %v3304 = vpack.c.b16 %v3196, %v3192
    %v3305 = vpack.c.b16 %v3197, %v3193
    %v3306 = vpack.c.b16 %v3198, %v3194
    %v3307 = vpack.c.b16 %v3203, %v3199
    %v3308 = vpack.c.b16 %v3204, %v3200
    %v3309 = vpack.c.b16 %v3205, %v3201
    %v3310 = vpack.c.b16 %v3206, %v3202
    %v3311 = vpack.c.b16 %v3211, %v3207
    %v3312 = vpack.c.b16 %v3212, %v3208
    %v3313 = vpack.c.b16 %v3213, %v3209
    %v3314 = vpack.c.b16 %v3214, %v3210
    %v3315 = vpack.c.b16 %v3219, %v3215
    %v3316 = vpack.c.b16 %v3220, %v3216
    %v3317 = vpack.c.b16 %v3221, %v3217
    %v3318 = vpack.c.b16 %v3222, %v3218
    %v3319 = vpack.c.b16 %v3227, %v3223
    %v3320 = vpack.c.b16 %v3228, %v3224
    %v3321 = vpack.c.b16 %v3229, %v3225
    %v3322 = vpack.c.b16 %v3230, %v3226
    %v3323 = vpack.c.b16 %v3235, %v3231
    %v3324 = vpack.c.b16 %v3236, %v3232
    %v3325 = vpack.c.b16 %v3237, %v3233
    %v3326 = vpack.c.b16 %v3238, %v3234
    %v3327 = vpack.c.b16 %v3243, %v3239
    %v3328 = vpack.c.b16 %v3244, %v3240
    %v3329 = vpack.c.b16 %v3245, %v3241
    %v3330 = vpack.c.b16 %v3246, %v3242
    %v3331 = vpack.c.b16 %v3251, %v3247
    %v3332 = vpack.c.b16 %v3252, %v3248
    %v3333 = vpack.c.b16 %v3253, %v3249
    %v3334 = vpack.c.b16 %v3254, %v3250
    %v3335 = vpack.c.b16 %v3259, %v3255
    %v3336 = vpack.c.b16 %v3260, %v3256
    %v3337 = vpack.c.b16 %v3261, %v3257
    %v3338 = vpack.c.b16 %v3262, %v3258
    %v3339 = vpack.c.b16 %v3267, %v3263
    %v3340 = vpack.c.b16 %v3268, %v3264
    %v3341 = vpack.c.b16 %v3269, %v3265
    %v3342 = vpack.c.b16 %v3270, %v3266
    %v3343 = vpack.c.b16 %v3275, %v3271
    %v3344 = vpack.c.b16 %v3276, %v3272
    %v3345 = vpack.c.b16 %v3277, %v3273
    %v3346 = vpack.c.b16 %v3278, %v3274
    %v3347 = vpack.c.b16 %v3283, %v3279
    %v3348 = vpack.c.b16 %v3284, %v3280
    %v3349 = vpack.c.b16 %v3285, %v3281
    %v3350 = vpack.c.b16 %v3286, %v3282
    %3415 = vmatpush.bf16.msra.mxu0 %v3315
    %3416 = vmatpush.bf16.msra.mxu0 %v3311
    %3417 = vmatpush.bf16.msra.mxu0 %v3307
    %3418 = vmatpush.bf16.msra.mxu0 %v3303
    %3419 = vmatpush.bf16.msra.mxu0 %v3299
    %3420 = vmatpush.bf16.msra.mxu0 %v3295
    %3421 = vmatpush.bf16.msra.mxu0 %v3291
    %3422 = vmatpush.bf16.msra.mxu0 %v3287
    %3423 = vmatmul.f32.gmra.mxu0 %v3019
    %v3424 = vpop.f32.mrf.mxu0
    %v3425 = vadd.f32 %v3087, %v3424
    %3426 = vdwg.mxu0
    %3427 = vmatpush.bf16.msra.mxu0 %v3347
    %3428 = vmatpush.bf16.msra.mxu0 %v3343
    %3429 = vmatpush.bf16.msra.mxu0 %v3339
    %3430 = vmatpush.bf16.msra.mxu0 %v3335
    %3431 = vmatpush.bf16.msra.mxu0 %v3331
    %3432 = vmatpush.bf16.msra.mxu0 %v3327
    %3433 = vmatpush.bf16.msra.mxu0 %v3323
    %3434 = vmatpush.bf16.msra.mxu0 %v3319
    %3435 = vmatmul.f32.gmra.mxu0 %v3020
    %v3436 = vpop.f32.mrf.mxu0
    %v3437 = vadd.f32 %v3425, %v3436
    %3438 = vdwg.mxu0
    %3439 = vmatpush.bf16.msra.mxu0 %v3316
    %3440 = vmatpush.bf16.msra.mxu0 %v3312
    %3441 = vmatpush.bf16.msra.mxu0 %v3308
    %3442 = vmatpush.bf16.msra.mxu0 %v3304
    %3443 = vmatpush.bf16.msra.mxu0 %v3300
    %3444 = vmatpush.bf16.msra.mxu0 %v3296
    %3445 = vmatpush.bf16.msra.mxu0 %v3292
    %3446 = vmatpush.bf16.msra.mxu0 %v3288
    %3447 = vmatmul.f32.gmra.mxu0 %v3019
    %v3448 = vpop.f32.mrf.mxu0
    %v3449 = vadd.f32 %v3088, %v3448
    %3450 = vdwg.mxu0
    %3451 = vmatpush.bf16.msra.mxu0 %v3348
    %3452 = vmatpush.bf16.msra.mxu0 %v3344
    %3453 = vmatpush.bf16.msra.mxu0 %v3340
    %3454 = vmatpush.bf16.msra.mxu0 %v3336
    %3455 = vmatpush.bf16.msra.mxu0 %v3332
    %3456 = vmatpush.bf16.msra.mxu0 %v3328
    %3457 = vmatpush.bf16.msra.mxu0 %v3324
    %3458 = vmatpush.bf16.msra.mxu0 %v3320
    %3459 = vmatmul.f32.gmra.mxu0 %v3020
    %v3460 = vpop.f32.mrf.mxu0
    %v3461 = vadd.f32 %v3449, %v3460
    %3462 = vdwg.mxu0
    %3463 = vmatpush.bf16.msra.mxu0 %v3317
    %3464 = vmatpush.bf16.msra.mxu0 %v3313
    %3465 = vmatpush.bf16.msra.mxu0 %v3309
    %3466 = vmatpush.bf16.msra.mxu0 %v3305
    %3467 = vmatpush.bf16.msra.mxu0 %v3301
    %3468 = vmatpush.bf16.msra.mxu0 %v3297
    %3469 = vmatpush.bf16.msra.mxu0 %v3293
    %3470 = vmatpush.bf16.msra.mxu0 %v3289
    %3471 = vmatmul.f32.gmra.mxu0 %v3019
    %v3472 = vpop.f32.mrf.mxu0
    %v3473 = vadd.f32 %v3089, %v3472
    %3474 = vdwg.mxu0
    %3475 = vmatpush.bf16.msra.mxu0 %v3349
    %3476 = vmatpush.bf16.msra.mxu0 %v3345
    %3477 = vmatpush.bf16.msra.mxu0 %v3341
    %3478 = vmatpush.bf16.msra.mxu0 %v3337
    %3479 = vmatpush.bf16.msra.mxu0 %v3333
    %3480 = vmatpush.bf16.msra.mxu0 %v3329
    %3481 = vmatpush.bf16.msra.mxu0 %v3325
    %3482 = vmatpush.bf16.msra.mxu0 %v3321
    %3483 = vmatmul.f32.gmra.mxu0 %v3020
    %v3484 = vpop.f32.mrf.mxu0
    %v3485 = vadd.f32 %v3473, %v3484
    %3486 = vdwg.mxu0
    %3487 = vmatpush.bf16.msra.mxu0 %v3318
    %3488 = vmatpush.bf16.msra.mxu0 %v3314
    %3489 = vmatpush.bf16.msra.mxu0 %v3310
    %3490 = vmatpush.bf16.msra.mxu0 %v3306
    %3491 = vmatpush.bf16.msra.mxu0 %v3302
    %3492 = vmatpush.bf16.msra.mxu0 %v3298
    %3493 = vmatpush.bf16.msra.mxu0 %v3294
    %3494 = vmatpush.bf16.msra.mxu0 %v3290
    %3495 = vmatmul.f32.gmra.mxu0 %v3019
    %v3496 = vpop.f32.mrf.mxu0
    %v3497 = vadd.f32 %v3090, %v3496
    %3498 = vdwg.mxu0
    %3499 = vmatpush.bf16.msra.mxu0 %v3350
    %3500 = vmatpush.bf16.msra.mxu0 %v3346
    %3501 = vmatpush.bf16.msra.mxu0 %v3342
    %3502 = vmatpush.bf16.msra.mxu0 %v3338
    %3503 = vmatpush.bf16.msra.mxu0 %v3334
    %3504 = vmatpush.bf16.msra.mxu0 %v3330
    %3505 = vmatpush.bf16.msra.mxu0 %v3326
    %3506 = vmatpush.bf16.msra.mxu0 %v3322
    %3507 = vmatmul.f32.gmra.mxu0 %v3020
    %v3508 = vpop.f32.mrf.mxu0
    %v3509 = vadd.f32 %v3497, %v3508
    %3510 = vdwg.mxu0
    %v3511 = vmax.f32 %v3437, 0.0
    %v3512 = vmax.f32 %v3461, 0.0
    %v3513 = vmax.f32 %v3485, 0.0
    %v3514 = vmax.f32 %v3509, 0.0
    %v3515 = vrot.slane %v3511, 4
    %v3516 = vadd.f32 %v3511, %v3515
    %v3517 = vrot.slane %v3516, 2
    %v3518 = vadd.f32 %v3516, %v3517
    %v3519 = vrot.slane %v3518, 1
    %v3520 = vadd.f32 %v3518, %v3519
    %v3521 = vrot.slane %v3512, 4
    %v3522 = vadd.f32 %v3512, %v3521
    %v3523 = vrot.slane %v3522, 2
    %v3524 = vadd.f32 %v3522, %v3523
    %v3525 = vrot.slane %v3524, 1
    %v3526 = vadd.f32 %v3524, %v3525
    %v3527 = vrot.slane %v3513, 4
    %v3528 = vadd.f32 %v3513, %v3527
    %v3529 = vrot.slane %v3528, 2
    %v3530 = vadd.f32 %v3528, %v3529
    %v3531 = vrot.slane %v3530, 1
    %v3532 = vadd.f32 %v3530, %v3531
    %v3533 = vrot.slane %v3514, 4
    %v3534 = vadd.f32 %v3514, %v3533
    %v3535 = vrot.slane %v3534, 2
    %v3536 = vadd.f32 %v3534, %v3535
    %v3537 = vrot.slane %v3536, 1
    %v3538 = vadd.f32 %v3536, %v3537
    %v3539 = vmul.f32 %v3520, %v1976
    %v3540 = vmul.f32 %v3526, %v1976
    %v3541 = vmul.f32 %v3532, %v1976
    %v3542 = vmul.f32 %v3538, %v1976
    %v3543 = vsub.f32 %v3511, %v3539
    %v3544 = vsub.f32 %v3512, %v3540
    %v3545 = vsub.f32 %v3513, %v3541
    %v3546 = vsub.f32 %v3514, %v3542
    %v3547 = vmul.f32 %v3543, %v3543
    %v3548 = vmul.f32 %v3544, %v3544
    %v3549 = vmul.f32 %v3545, %v3545
    %v3550 = vmul.f32 %v3546, %v3546
    %v3551 = vrot.slane %v3547, 4
    %v3552 = vadd.f32 %v3547, %v3551
    %v3553 = vrot.slane %v3552, 2
    %v3554 = vadd.f32 %v3552, %v3553
    %v3555 = vrot.slane %v3554, 1
    %v3556 = vadd.f32 %v3554, %v3555
    %v3557 = vrot.slane %v3548, 4
    %v3558 = vadd.f32 %v3548, %v3557
    %v3559 = vrot.slane %v3558, 2
    %v3560 = vadd.f32 %v3558, %v3559
    %v3561 = vrot.slane %v3560, 1
    %v3562 = vadd.f32 %v3560, %v3561
    %v3563 = vrot.slane %v3549, 4
    %v3564 = vadd.f32 %v3549, %v3563
    %v3565 = vrot.slane %v3564, 2
    %v3566 = vadd.f32 %v3564, %v3565
    %v3567 = vrot.slane %v3566, 1
    %v3568 = vadd.f32 %v3566, %v3567
    %v3569 = vrot.slane %v3550, 4
    %v3570 = vadd.f32 %v3550, %v3569
    %v3571 = vrot.slane %v3570, 2
    %v3572 = vadd.f32 %v3570, %v3571
    %v3573 = vrot.slane %v3572, 1
    %v3574 = vadd.f32 %v3572, %v3573
    %v3575 = vmul.f32 %v3556, %v1976
    %v3576 = vmul.f32 %v3562, %v1976
    %v3577 = vmul.f32 %v3568, %v1976
    %v3578 = vmul.f32 %v3574, %v1976
    %v3579 = vadd.f32 %v3575, 1e-05
    %v3580 = vadd.f32 %v3576, 1e-05
    %v3581 = vadd.f32 %v3577, 1e-05
    %v3582 = vadd.f32 %v3578, 1e-05
    %v3583 = vrsqrt.pop %v3579
    %v3584 = vmul.f32 %v3583, %v3579
    %v3585 = vmul.f32 %v3584, %v3583
    %v3586 = vmul.f32 0.5, %v3585
    %v3587 = vsub.f32 1.5, %v3586
    %v3588 = vmul.f32 %v3583, %v3587
    %vm3589 = vweird.f32 %v3579
    %vm3590 = vweird.f32 %v3583
    %vm3591 = vmor %vm3589, %vm3590
    %v3592 = vsel %vm3591, %v3583, %v3588
    %v3593 = vrsqrt.pop %v3580
    %v3594 = vmul.f32 %v3593, %v3580
    %v3595 = vmul.f32 %v3594, %v3593
    %v3596 = vmul.f32 0.5, %v3595
    %v3597 = vsub.f32 1.5, %v3596
    %v3598 = vmul.f32 %v3593, %v3597
    %vm3599 = vweird.f32 %v3580
    %vm3600 = vweird.f32 %v3593
    %vm3601 = vmor %vm3599, %vm3600
    %v3602 = vsel %vm3601, %v3593, %v3598
    %v3603 = vrsqrt.pop %v3581
    %v3604 = vmul.f32 %v3603, %v3581
    %v3605 = vmul.f32 %v3604, %v3603
    %v3606 = vmul.f32 0.5, %v3605
    %v3607 = vsub.f32 1.5, %v3606
    %v3608 = vmul.f32 %v3603, %v3607
    %vm3609 = vweird.f32 %v3581
    %vm3610 = vweird.f32 %v3603
    %vm3611 = vmor %vm3609, %vm3610
    %v3612 = vsel %vm3611, %v3603, %v3608
    %v3613 = vrsqrt.pop %v3582
    %v3614 = vmul.f32 %v3613, %v3582
    %v3615 = vmul.f32 %v3614, %v3613
    %v3616 = vmul.f32 0.5, %v3615
    %v3617 = vsub.f32 1.5, %v3616
    %v3618 = vmul.f32 %v3613, %v3617
    %vm3619 = vweird.f32 %v3582
    %vm3620 = vweird.f32 %v3613
    %vm3621 = vmor %vm3619, %vm3620
    %v3622 = vsel %vm3621, %v3613, %v3618
    %v3627 = vrot.slane %v3602, 7
    %v3628 = vrot.slane %v3612, 6
    %v3629 = vrot.slane %v3622, 5
    %v3630 = vsel %vm2069, %v3592, %v3627
    %v3631 = vsel %vm2071, %v3628, %v3629
    %v3632 = vsel %vm2073, %v3630, %v3631
    %v3634 = vmul.f32 %v2017, %v3632
    %v3636 = vperm.slane %v3634, 0
    %v3637 = vperm.slane %v3634, 1
    %v3638 = vperm.slane %v3634, 2
    %v3639 = vperm.slane %v3634, 3
    %v3644 = vmul.f32 %v3543, %v3636
    %v3645 = vmul.f32 %v3544, %v3637
    %v3646 = vmul.f32 %v3545, %v3638
    %v3647 = vmul.f32 %v3546, %v3639
    %v3648 = vadd.f32 %v3644, %v2092
    %v3649 = vadd.f32 %v3645, %v2093
    %v3650 = vadd.f32 %v3646, %v2094
    %v3651 = vadd.f32 %v3647, %v2095
    %v3652 = vld [vmem:[#allocation22] sm:$0xff]
    %v3653 = vld [vmem:[#allocation22 + $0x8] sm:$0xff]
    %v3654 = vld [vmem:[#allocation22 + $0x10] sm:$0xff]
    %v3655 = vld [vmem:[#allocation22 + $0x18] sm:$0xf]
    %v3656 = vld [vmem:[#allocation22 + $0x1c] sm:$0xff]
    %v3657 = vld [vmem:[#allocation22 + $0x24] sm:$0xff]
    %v3658 = vld [vmem:[#allocation22 + $0x2c] sm:$0xff]
    %v3659 = vld [vmem:[#allocation22 + $0x34] sm:$0xf]
    %v3660 = vld [vmem:[#allocation22 + $0x38] sm:$0xff]
    %v3661 = vld [vmem:[#allocation22 + $0x40] sm:$0xff]
    %v3662 = vld [vmem:[#allocation22 + $0x48] sm:$0xff]
    %v3663 = vld [vmem:[#allocation22 + $0x50] sm:$0xf]
    %v3664 = vld [vmem:[#allocation22 + $0x54] sm:$0xff]
    %v3665 = vld [vmem:[#allocation22 + $0x5c] sm:$0xff]
    %v3666 = vld [vmem:[#allocation22 + $0x64] sm:$0xff]
    %v3667 = vld [vmem:[#allocation22 + $0x6c] sm:$0xf]
    %v3668 = vld [vmem:[#allocation22 + $0x70] sm:$0xff]
    %v3669 = vld [vmem:[#allocation22 + $0x78] sm:$0xff]
    %v3670 = vld [vmem:[#allocation22 + $0x80] sm:$0xff]
    %v3671 = vld [vmem:[#allocation22 + $0x88] sm:$0xf]
    %v3672 = vld [vmem:[#allocation22 + $0x8c] sm:$0xff]
    %v3673 = vld [vmem:[#allocation22 + $0x94] sm:$0xff]
    %v3674 = vld [vmem:[#allocation22 + $0x9c] sm:$0xff]
    %v3675 = vld [vmem:[#allocation22 + $0xa4] sm:$0xf]
    %v3676 = vld [vmem:[#allocation22 + $0xa8] sm:$0xff]
    %v3677 = vld [vmem:[#allocation22 + $0xb0] sm:$0xff]
    %v3678 = vld [vmem:[#allocation22 + $0xb8] sm:$0xff]
    %v3679 = vld [vmem:[#allocation22 + $0xc0] sm:$0xf]
    %v3680 = vld [vmem:[#allocation22 + $0xc4] sm:$0xff]
    %v3681 = vld [vmem:[#allocation22 + $0xcc] sm:$0xff]
    %v3682 = vld [vmem:[#allocation22 + $0xd4] sm:$0xff]
    %v3683 = vld [vmem:[#allocation22 + $0xdc] sm:$0xf]
    %v3684 = vld [vmem:[#allocation22 + $0xe0] sm:$0xff]
    %v3685 = vld [vmem:[#allocation22 + $0xe8] sm:$0xff]
    %v3686 = vld [vmem:[#allocation22 + $0xf0] sm:$0xff]
    %v3687 = vld [vmem:[#allocation22 + $0xf8] sm:$0xf]
    %v3688 = vld [vmem:[#allocation22 + $0xfc] sm:$0xff]
    %v3689 = vld [vmem:[#allocation22 + $0x104] sm:$0xff]
    %v3690 = vld [vmem:[#allocation22 + $0x10c] sm:$0xff]
    %v3691 = vld [vmem:[#allocation22 + $0x114] sm:$0xf]
    %v3692 = vld [vmem:[#allocation22 + $0x118] sm:$0xff]
    %v3693 = vld [vmem:[#allocation22 + $0x120] sm:$0xff]
    %v3694 = vld [vmem:[#allocation22 + $0x128] sm:$0xff]
    %v3695 = vld [vmem:[#allocation22 + $0x130] sm:$0xf]
    %v3696 = vld [vmem:[#allocation22 + $0x134] sm:$0xff]
    %v3697 = vld [vmem:[#allocation22 + $0x13c] sm:$0xff]
    %v3698 = vld [vmem:[#allocation22 + $0x144] sm:$0xff]
    %v3699 = vld [vmem:[#allocation22 + $0x14c] sm:$0xf]
    %v3700 = vld [vmem:[#allocation22 + $0x150] sm:$0xff]
    %v3701 = vld [vmem:[#allocation22 + $0x158] sm:$0xff]
    %v3702 = vld [vmem:[#allocation22 + $0x160] sm:$0xff]
    %v3703 = vld [vmem:[#allocation22 + $0x168] sm:$0xf]
    %v3704 = vld [vmem:[#allocation22 + $0x16c] sm:$0xff]
    %v3705 = vld [vmem:[#allocation22 + $0x174] sm:$0xff]
    %v3706 = vld [vmem:[#allocation22 + $0x17c] sm:$0xff]
    %v3707 = vld [vmem:[#allocation22 + $0x184] sm:$0xf]
    %v3708 = vld [vmem:[#allocation22 + $0x188] sm:$0xff]
    %v3709 = vld [vmem:[#allocation22 + $0x190] sm:$0xff]
    %v3710 = vld [vmem:[#allocation22 + $0x198] sm:$0xff]
    %v3711 = vld [vmem:[#allocation22 + $0x1a0] sm:$0xf]
    %v3712 = vld [vmem:[#allocation22 + $0x1a4] sm:$0xff]
    %v3713 = vld [vmem:[#allocation22 + $0x1ac] sm:$0xff]
    %v3714 = vld [vmem:[#allocation22 + $0x1b4] sm:$0xff]
    %v3715 = vld [vmem:[#allocation22 + $0x1bc] sm:$0xf]
    %v3716 = vld [vmem:[#allocation22 + $0x1c0] sm:$0xff]
    %v3717 = vld [vmem:[#allocation22 + $0x1c8] sm:$0xff]
    %v3718 = vld [vmem:[#allocation22 + $0x1d0] sm:$0xff]
    %v3719 = vld [vmem:[#allocation22 + $0x1d8] sm:$0xf]
    %v3720 = vld [vmem:[#allocation22 + $0x1dc] sm:$0xff]
    %v3721 = vld [vmem:[#allocation22 + $0x1e4] sm:$0xff]
    %v3722 = vld [vmem:[#allocation22 + $0x1ec] sm:$0xff]
    %v3723 = vld [vmem:[#allocation22 + $0x1f4] sm:$0xf]
    %v3724 = vld [vmem:[#allocation22 + $0x1f8] sm:$0xff]
    %v3725 = vld [vmem:[#allocation22 + $0x200] sm:$0xff]
    %v3726 = vld [vmem:[#allocation22 + $0x208] sm:$0xff]
    %v3727 = vld [vmem:[#allocation22 + $0x210] sm:$0xf]
    %v3728 = vld [vmem:[#allocation22 + $0x214] sm:$0xff]
    %v3729 = vld [vmem:[#allocation22 + $0x21c] sm:$0xff]
    %v3730 = vld [vmem:[#allocation22 + $0x224] sm:$0xff]
    %v3731 = vld [vmem:[#allocation22 + $0x22c] sm:$0xf]
    %v3732 = vld [vmem:[#allocation22 + $0x230] sm:$0xff]
    %v3733 = vld [vmem:[#allocation22 + $0x238] sm:$0xff]
    %v3734 = vld [vmem:[#allocation22 + $0x240] sm:$0xff]
    %v3735 = vld [vmem:[#allocation22 + $0x248] sm:$0xf]
    %v3736 = vld [vmem:[#allocation22 + $0x24c] sm:$0xff]
    %v3737 = vld [vmem:[#allocation22 + $0x254] sm:$0xff]
    %v3738 = vld [vmem:[#allocation22 + $0x25c] sm:$0xff]
    %v3739 = vld [vmem:[#allocation22 + $0x264] sm:$0xf]
    %v3740 = vld [vmem:[#allocation22 + $0x268] sm:$0xff]
    %v3741 = vld [vmem:[#allocation22 + $0x270] sm:$0xff]
    %v3742 = vld [vmem:[#allocation22 + $0x278] sm:$0xff]
    %v3743 = vld [vmem:[#allocation22 + $0x280] sm:$0xf]
    %v3744 = vld [vmem:[#allocation22 + $0x284] sm:$0xff]
    %v3745 = vld [vmem:[#allocation22 + $0x28c] sm:$0xff]
    %v3746 = vld [vmem:[#allocation22 + $0x294] sm:$0xff]
    %v3747 = vld [vmem:[#allocation22 + $0x29c] sm:$0xf]
    %v3748 = vld [vmem:[#allocation22 + $0x2a0] sm:$0xff]
    %v3749 = vld [vmem:[#allocation22 + $0x2a8] sm:$0xff]
    %v3750 = vld [vmem:[#allocation22 + $0x2b0] sm:$0xff]
    %v3751 = vld [vmem:[#allocation22 + $0x2b8] sm:$0xf]
    %v3752 = vld [vmem:[#allocation22 + $0x2bc] sm:$0xff]
    %v3753 = vld [vmem:[#allocation22 + $0x2c4] sm:$0xff]
    %v3754 = vld [vmem:[#allocation22 + $0x2cc] sm:$0xff]
    %v3755 = vld [vmem:[#allocation22 + $0x2d4] sm:$0xf]
    %v3756 = vld [vmem:[#allocation22 + $0x2d8] sm:$0xff]
    %v3757 = vld [vmem:[#allocation22 + $0x2e0] sm:$0xff]
    %v3758 = vld [vmem:[#allocation22 + $0x2e8] sm:$0xff]
    %v3759 = vld [vmem:[#allocation22 + $0x2f0] sm:$0xf]
    %v3760 = vld [vmem:[#allocation22 + $0x2f4] sm:$0xff]
    %v3761 = vld [vmem:[#allocation22 + $0x2fc] sm:$0xff]
    %v3762 = vld [vmem:[#allocation22 + $0x304] sm:$0xff]
    %v3763 = vld [vmem:[#allocation22 + $0x30c] sm:$0xf]
    %v3764 = vld [vmem:[#allocation22 + $0x310] sm:$0xff]
    %v3765 = vld [vmem:[#allocation22 + $0x318] sm:$0xff]
    %v3766 = vld [vmem:[#allocation22 + $0x320] sm:$0xff]
    %v3767 = vld [vmem:[#allocation22 + $0x328] sm:$0xf]
    %v3768 = vld [vmem:[#allocation22 + $0x32c] sm:$0xff]
    %v3769 = vld [vmem:[#allocation22 + $0x334] sm:$0xff]
    %v3770 = vld [vmem:[#allocation22 + $0x33c] sm:$0xff]
    %v3771 = vld [vmem:[#allocation22 + $0x344] sm:$0xf]
    %v3772 = vld [vmem:[#allocation22 + $0x348] sm:$0xff]
    %v3773 = vld [vmem:[#allocation22 + $0x350] sm:$0xff]
    %v3774 = vld [vmem:[#allocation22 + $0x358] sm:$0xff]
    %v3775 = vld [vmem:[#allocation22 + $0x360] sm:$0xf]
    %v3776 = vld [vmem:[#allocation22 + $0x364] sm:$0xff]
    %v3777 = vld [vmem:[#allocation22 + $0x36c] sm:$0xff]
    %v3778 = vld [vmem:[#allocation22 + $0x374] sm:$0xff]
    %v3779 = vld [vmem:[#allocation22 + $0x37c] sm:$0xf]
    %v3780 = vld [vmem:[#allocation22 + $0x380] sm:$0xff]
    %v3781 = vld [vmem:[#allocation22 + $0x388] sm:$0xff]
    %v3782 = vld [vmem:[#allocation22 + $0x390] sm:$0xff]
    %v3783 = vld [vmem:[#allocation22 + $0x398] sm:$0xf]
    %v3784 = vld [vmem:[#allocation22 + $0x39c] sm:$0xff]
    %v3785 = vld [vmem:[#allocation22 + $0x3a4] sm:$0xff]
    %v3786 = vld [vmem:[#allocation22 + $0x3ac] sm:$0xff]
    %v3787 = vld [vmem:[#allocation22 + $0x3b4] sm:$0xf]
    %v3788 = vld [vmem:[#allocation22 + $0x3b8] sm:$0xff]
    %v3789 = vld [vmem:[#allocation22 + $0x3c0] sm:$0xff]
    %v3790 = vld [vmem:[#allocation22 + $0x3c8] sm:$0xff]
    %v3791 = vld [vmem:[#allocation22 + $0x3d0] sm:$0xf]
    %v3792 = vld [vmem:[#allocation22 + $0x3d4] sm:$0xff]
    %v3793 = vld [vmem:[#allocation22 + $0x3dc] sm:$0xff]
    %v3794 = vld [vmem:[#allocation22 + $0x3e4] sm:$0xff]
    %v3795 = vld [vmem:[#allocation22 + $0x3ec] sm:$0xf]
    %v3796 = vld [vmem:[#allocation22 + $0x3f0] sm:$0xff]
    %v3797 = vld [vmem:[#allocation22 + $0x3f8] sm:$0xff]
    %v3798 = vld [vmem:[#allocation22 + $0x400] sm:$0xff]
    %v3799 = vld [vmem:[#allocation22 + $0x408] sm:$0xf]
    %v3800 = vld [vmem:[#allocation22 + $0x40c] sm:$0xff]
    %v3801 = vld [vmem:[#allocation22 + $0x414] sm:$0xff]
    %v3802 = vld [vmem:[#allocation22 + $0x41c] sm:$0xff]
    %v3803 = vld [vmem:[#allocation22 + $0x424] sm:$0xf]
    %v3804 = vld [vmem:[#allocation22 + $0x428] sm:$0xff]
    %v3805 = vld [vmem:[#allocation22 + $0x430] sm:$0xff]
    %v3806 = vld [vmem:[#allocation22 + $0x438] sm:$0xff]
    %v3807 = vld [vmem:[#allocation22 + $0x440] sm:$0xf]
    %v3808 = vld [vmem:[#allocation22 + $0x444] sm:$0xff]
    %v3809 = vld [vmem:[#allocation22 + $0x44c] sm:$0xff]
    %v3810 = vld [vmem:[#allocation22 + $0x454] sm:$0xff]
    %v3811 = vld [vmem:[#allocation22 + $0x45c] sm:$0xf]
    %v3812 = vld [vmem:[#allocation22 + $0x460] sm:$0xff]
    %v3813 = vld [vmem:[#allocation22 + $0x468] sm:$0xff]
    %v3814 = vld [vmem:[#allocation22 + $0x470] sm:$0xff]
    %v3815 = vld [vmem:[#allocation22 + $0x478] sm:$0xf]
    %v3816 = vld [vmem:[#allocation22 + $0x47c] sm:$0xff]
    %v3817 = vld [vmem:[#allocation22 + $0x484] sm:$0xff]
    %v3818 = vld [vmem:[#allocation22 + $0x48c] sm:$0xff]
    %v3819 = vld [vmem:[#allocation22 + $0x494] sm:$0xf]
    %v3820 = vld [vmem:[#allocation22 + $0x498] sm:$0xff]
    %v3821 = vld [vmem:[#allocation22 + $0x4a0] sm:$0xff]
    %v3822 = vld [vmem:[#allocation22 + $0x4a8] sm:$0xff]
    %v3823 = vld [vmem:[#allocation22 + $0x4b0] sm:$0xf]
    %v3824 = vld [vmem:[#allocation22 + $0x4b4] sm:$0xff]
    %v3825 = vld [vmem:[#allocation22 + $0x4bc] sm:$0xff]
    %v3826 = vld [vmem:[#allocation22 + $0x4c4] sm:$0xff]
    %v3827 = vld [vmem:[#allocation22 + $0x4cc] sm:$0xf]
    %v3828 = vld [vmem:[#allocation22 + $0x4d0] sm:$0xff]
    %v3829 = vld [vmem:[#allocation22 + $0x4d8] sm:$0xff]
    %v3830 = vld [vmem:[#allocation22 + $0x4e0] sm:$0xff]
    %v3831 = vld [vmem:[#allocation22 + $0x4e8] sm:$0xf]
    %v3832 = vld [vmem:[#allocation22 + $0x4ec] sm:$0xff]
    %v3833 = vld [vmem:[#allocation22 + $0x4f4] sm:$0xff]
    %v3834 = vld [vmem:[#allocation22 + $0x4fc] sm:$0xff]
    %v3835 = vld [vmem:[#allocation22 + $0x504] sm:$0xf]
    %v3836 = vld [vmem:[#allocation22 + $0x508] sm:$0xff]
    %v3837 = vld [vmem:[#allocation22 + $0x510] sm:$0xff]
    %v3838 = vld [vmem:[#allocation22 + $0x518] sm:$0xff]
    %v3839 = vld [vmem:[#allocation22 + $0x520] sm:$0xf]
    %v3840 = vld [vmem:[#allocation22 + $0x524] sm:$0xff]
    %v3841 = vld [vmem:[#allocation22 + $0x52c] sm:$0xff]
    %v3842 = vld [vmem:[#allocation22 + $0x534] sm:$0xff]
    %v3843 = vld [vmem:[#allocation22 + $0x53c] sm:$0xf]
    %v3844 = vld [vmem:[#allocation22 + $0x540] sm:$0xff]
    %v3845 = vld [vmem:[#allocation22 + $0x548] sm:$0xff]
    %v3846 = vld [vmem:[#allocation22 + $0x550] sm:$0xff]
    %v3847 = vld [vmem:[#allocation22 + $0x558] sm:$0xf]
    %v3848 = vld [vmem:[#allocation22 + $0x55c] sm:$0xff]
    %v3849 = vld [vmem:[#allocation22 + $0x564] sm:$0xff]
    %v3850 = vld [vmem:[#allocation22 + $0x56c] sm:$0xff]
    %v3851 = vld [vmem:[#allocation22 + $0x574] sm:$0xf]
    %v3852 = vld [vmem:[#allocation22 + $0x578] sm:$0xff]
    %v3853 = vld [vmem:[#allocation22 + $0x580] sm:$0xff]
    %v3854 = vld [vmem:[#allocation22 + $0x588] sm:$0xff]
    %v3855 = vld [vmem:[#allocation22 + $0x590] sm:$0xf]
    %v3856 = vld [vmem:[#allocation22 + $0x594] sm:$0xff]
    %v3857 = vld [vmem:[#allocation22 + $0x59c] sm:$0xff]
    %v3858 = vld [vmem:[#allocation22 + $0x5a4] sm:$0xff]
    %v3859 = vld [vmem:[#allocation22 + $0x5ac] sm:$0xf]
    %v3860 = vld [vmem:[#allocation22 + $0x5b0] sm:$0xff]
    %v3861 = vld [vmem:[#allocation22 + $0x5b8] sm:$0xff]
    %v3862 = vld [vmem:[#allocation22 + $0x5c0] sm:$0xff]
    %v3863 = vld [vmem:[#allocation22 + $0x5c8] sm:$0xf]
    %v3864 = vld [vmem:[#allocation22 + $0x5cc] sm:$0xff]
    %v3865 = vld [vmem:[#allocation22 + $0x5d4] sm:$0xff]
    %v3866 = vld [vmem:[#allocation22 + $0x5dc] sm:$0xff]
    %v3867 = vld [vmem:[#allocation22 + $0x5e4] sm:$0xf]
    %v3868 = vld [vmem:[#allocation22 + $0x5e8] sm:$0xff]
    %v3869 = vld [vmem:[#allocation22 + $0x5f0] sm:$0xff]
    %v3870 = vld [vmem:[#allocation22 + $0x5f8] sm:$0xff]
    %v3871 = vld [vmem:[#allocation22 + $0x600] sm:$0xf]
    %v3872 = vld [vmem:[#allocation22 + $0x604] sm:$0xff]
    %v3873 = vld [vmem:[#allocation22 + $0x60c] sm:$0xff]
    %v3874 = vld [vmem:[#allocation22 + $0x614] sm:$0xff]
    %v3875 = vld [vmem:[#allocation22 + $0x61c] sm:$0xf]
    %v3876 = vld [vmem:[#allocation22 + $0x620] sm:$0xff]
    %v3877 = vld [vmem:[#allocation22 + $0x628] sm:$0xff]
    %v3878 = vld [vmem:[#allocation22 + $0x630] sm:$0xff]
    %v3879 = vld [vmem:[#allocation22 + $0x638] sm:$0xf]
    %v3880 = vld [vmem:[#allocation22 + $0x63c] sm:$0xff]
    %v3881 = vld [vmem:[#allocation22 + $0x644] sm:$0xff]
    %v3882 = vld [vmem:[#allocation22 + $0x64c] sm:$0xff]
    %v3883 = vld [vmem:[#allocation22 + $0x654] sm:$0xf]
    %v3884 = vld [vmem:[#allocation22 + $0x658] sm:$0xff]
    %v3885 = vld [vmem:[#allocation22 + $0x660] sm:$0xff]
    %v3886 = vld [vmem:[#allocation22 + $0x668] sm:$0xff]
    %v3887 = vld [vmem:[#allocation22 + $0x670] sm:$0xf]
    %v3888 = vld [vmem:[#allocation22 + $0x674] sm:$0xff]
    %v3889 = vld [vmem:[#allocation22 + $0x67c] sm:$0xff]
    %v3890 = vld [vmem:[#allocation22 + $0x684] sm:$0xff]
    %v3891 = vld [vmem:[#allocation22 + $0x68c] sm:$0xf]
    %v3892 = vld [vmem:[#allocation22 + $0x690] sm:$0xff]
    %v3893 = vld [vmem:[#allocation22 + $0x698] sm:$0xff]
    %v3894 = vld [vmem:[#allocation22 + $0x6a0] sm:$0xff]
    %v3895 = vld [vmem:[#allocation22 + $0x6a8] sm:$0xf]
    %v3896 = vld [vmem:[#allocation22 + $0x6ac] sm:$0xff]
    %v3897 = vld [vmem:[#allocation22 + $0x6b4] sm:$0xff]
    %v3898 = vld [vmem:[#allocation22 + $0x6bc] sm:$0xff]
    %v3899 = vld [vmem:[#allocation22 + $0x6c4] sm:$0xf]
    %v3900 = vld [vmem:[#allocation22 + $0x6c8] sm:$0xff]
    %v3901 = vld [vmem:[#allocation22 + $0x6d0] sm:$0xff]
    %v3902 = vld [vmem:[#allocation22 + $0x6d8] sm:$0xff]
    %v3903 = vld [vmem:[#allocation22 + $0x6e0] sm:$0xf]
    %v3904 = vld [vmem:[#allocation22 + $0x6e4] sm:$0xff]
    %v3905 = vld [vmem:[#allocation22 + $0x6ec] sm:$0xff]
    %v3906 = vld [vmem:[#allocation22 + $0x6f4] sm:$0xff]
    %v3907 = vld [vmem:[#allocation22 + $0x6fc] sm:$0xf]
    %v3908 = vld [vmem:[%s16] sm:$0xff]
    %v3910 = vperm.slane %v3908, 0
    %v3911 = vperm.slane %v3908, 1
    %v3912 = vperm.slane %v3908, 2
    %v3913 = vperm.slane %v3908, 3
    %v3914 = vperm.slane %v3908, 4
    %v3915 = vperm.slane %v3908, 5
    %v3916 = vperm.slane %v3908, 6
    %v4180 = vunpack.c.l.b16 %v3652
    %v4181 = vunpack.c.h.b16 %v3652
    %v4182 = vunpack.c.l.b16 %v3653
    %v4183 = vunpack.c.h.b16 %v3653
    %v4184 = vunpack.c.l.b16 %v3654
    %v4185 = vunpack.c.h.b16 %v3654
    %v4186 = vunpack.c.l.b16 %v3655
    %v4187 = vunpack.c.l.b16 %v3656
    %v4188 = vunpack.c.h.b16 %v3656
    %v4189 = vunpack.c.l.b16 %v3657
    %v4190 = vunpack.c.h.b16 %v3657
    %v4191 = vunpack.c.l.b16 %v3658
    %v4192 = vunpack.c.h.b16 %v3658
    %v4193 = vunpack.c.l.b16 %v3659
    %v4194 = vunpack.c.l.b16 %v3660
    %v4195 = vunpack.c.h.b16 %v3660
    %v4196 = vunpack.c.l.b16 %v3661
    %v4197 = vunpack.c.h.b16 %v3661
    %v4198 = vunpack.c.l.b16 %v3662
    %v4199 = vunpack.c.h.b16 %v3662
    %v4200 = vunpack.c.l.b16 %v3663
    %v4201 = vunpack.c.l.b16 %v3664
    %v4202 = vunpack.c.h.b16 %v3664
    %v4203 = vunpack.c.l.b16 %v3665
    %v4204 = vunpack.c.h.b16 %v3665
    %v4205 = vunpack.c.l.b16 %v3666
    %v4206 = vunpack.c.h.b16 %v3666
    %v4207 = vunpack.c.l.b16 %v3667
    %v4208 = vunpack.c.l.b16 %v3668
    %v4209 = vunpack.c.h.b16 %v3668
    %v4210 = vunpack.c.l.b16 %v3669
    %v4211 = vunpack.c.h.b16 %v3669
    %v4212 = vunpack.c.l.b16 %v3670
    %v4213 = vunpack.c.h.b16 %v3670
    %v4214 = vunpack.c.l.b16 %v3671
    %v4215 = vunpack.c.l.b16 %v3672
    %v4216 = vunpack.c.h.b16 %v3672
    %v4217 = vunpack.c.l.b16 %v3673
    %v4218 = vunpack.c.h.b16 %v3673
    %v4219 = vunpack.c.l.b16 %v3674
    %v4220 = vunpack.c.h.b16 %v3674
    %v4221 = vunpack.c.l.b16 %v3675
    %v4222 = vunpack.c.l.b16 %v3676
    %v4223 = vunpack.c.h.b16 %v3676
    %v4224 = vunpack.c.l.b16 %v3677
    %v4225 = vunpack.c.h.b16 %v3677
    %v4226 = vunpack.c.l.b16 %v3678
    %v4227 = vunpack.c.h.b16 %v3678
    %v4228 = vunpack.c.l.b16 %v3679
    %v4229 = vunpack.c.l.b16 %v3680
    %v4230 = vunpack.c.h.b16 %v3680
    %v4231 = vunpack.c.l.b16 %v3681
    %v4232 = vunpack.c.h.b16 %v3681
    %v4233 = vunpack.c.l.b16 %v3682
    %v4234 = vunpack.c.h.b16 %v3682
    %v4235 = vunpack.c.l.b16 %v3683
    %v4236 = vunpack.c.l.b16 %v3684
    %v4237 = vunpack.c.h.b16 %v3684
    %v4238 = vunpack.c.l.b16 %v3685
    %v4239 = vunpack.c.h.b16 %v3685
    %v4240 = vunpack.c.l.b16 %v3686
    %v4241 = vunpack.c.h.b16 %v3686
    %v4242 = vunpack.c.l.b16 %v3687
    %v4243 = vunpack.c.l.b16 %v3688
    %v4244 = vunpack.c.h.b16 %v3688
    %v4245 = vunpack.c.l.b16 %v3689
    %v4246 = vunpack.c.h.b16 %v3689
    %v4247 = vunpack.c.l.b16 %v3690
    %v4248 = vunpack.c.h.b16 %v3690
    %v4249 = vunpack.c.l.b16 %v3691
    %v4250 = vunpack.c.l.b16 %v3692
    %v4251 = vunpack.c.h.b16 %v3692
    %v4252 = vunpack.c.l.b16 %v3693
    %v4253 = vunpack.c.h.b16 %v3693
    %v4254 = vunpack.c.l.b16 %v3694
    %v4255 = vunpack.c.h.b16 %v3694
    %v4256 = vunpack.c.l.b16 %v3695
    %v4257 = vunpack.c.l.b16 %v3696
    %v4258 = vunpack.c.h.b16 %v3696
    %v4259 = vunpack.c.l.b16 %v3697
    %v4260 = vunpack.c.h.b16 %v3697
    %v4261 = vunpack.c.l.b16 %v3698
    %v4262 = vunpack.c.h.b16 %v3698
    %v4263 = vunpack.c.l.b16 %v3699
    %v4264 = vunpack.c.l.b16 %v3700
    %v4265 = vunpack.c.h.b16 %v3700
    %v4266 = vunpack.c.l.b16 %v3701
    %v4267 = vunpack.c.h.b16 %v3701
    %v4268 = vunpack.c.l.b16 %v3702
    %v4269 = vunpack.c.h.b16 %v3702
    %v4270 = vunpack.c.l.b16 %v3703
    %v4271 = vunpack.c.l.b16 %v3704
    %v4272 = vunpack.c.h.b16 %v3704
    %v4273 = vunpack.c.l.b16 %v3705
    %v4274 = vunpack.c.h.b16 %v3705
    %v4275 = vunpack.c.l.b16 %v3706
    %v4276 = vunpack.c.h.b16 %v3706
    %v4277 = vunpack.c.l.b16 %v3707
    %v4278 = vunpack.c.l.b16 %v3708
    %v4279 = vunpack.c.h.b16 %v3708
    %v4280 = vunpack.c.l.b16 %v3709
    %v4281 = vunpack.c.h.b16 %v3709
    %v4282 = vunpack.c.l.b16 %v3710
    %v4283 = vunpack.c.h.b16 %v3710
    %v4284 = vunpack.c.l.b16 %v3711
    %v4285 = vunpack.c.l.b16 %v3712
    %v4286 = vunpack.c.h.b16 %v3712
    %v4287 = vunpack.c.l.b16 %v3713
    %v4288 = vunpack.c.h.b16 %v3713
    %v4289 = vunpack.c.l.b16 %v3714
    %v4290 = vunpack.c.h.b16 %v3714
    %v4291 = vunpack.c.l.b16 %v3715
    %v4292 = vunpack.c.l.b16 %v3716
    %v4293 = vunpack.c.h.b16 %v3716
    %v4294 = vunpack.c.l.b16 %v3717
    %v4295 = vunpack.c.h.b16 %v3717
    %v4296 = vunpack.c.l.b16 %v3718
    %v4297 = vunpack.c.h.b16 %v3718
    %v4298 = vunpack.c.l.b16 %v3719
    %v4299 = vunpack.c.l.b16 %v3720
    %v4300 = vunpack.c.h.b16 %v3720
    %v4301 = vunpack.c.l.b16 %v3721
    %v4302 = vunpack.c.h.b16 %v3721
    %v4303 = vunpack.c.l.b16 %v3722
    %v4304 = vunpack.c.h.b16 %v3722
    %v4305 = vunpack.c.l.b16 %v3723
    %v4306 = vunpack.c.l.b16 %v3724
    %v4307 = vunpack.c.h.b16 %v3724
    %v4308 = vunpack.c.l.b16 %v3725
    %v4309 = vunpack.c.h.b16 %v3725
    %v4310 = vunpack.c.l.b16 %v3726
    %v4311 = vunpack.c.h.b16 %v3726
    %v4312 = vunpack.c.l.b16 %v3727
    %v4313 = vunpack.c.l.b16 %v3728
    %v4314 = vunpack.c.h.b16 %v3728
    %v4315 = vunpack.c.l.b16 %v3729
    %v4316 = vunpack.c.h.b16 %v3729
    %v4317 = vunpack.c.l.b16 %v3730
    %v4318 = vunpack.c.h.b16 %v3730
    %v4319 = vunpack.c.l.b16 %v3731
    %v4320 = vunpack.c.l.b16 %v3732
    %v4321 = vunpack.c.h.b16 %v3732
    %v4322 = vunpack.c.l.b16 %v3733
    %v4323 = vunpack.c.h.b16 %v3733
    %v4324 = vunpack.c.l.b16 %v3734
    %v4325 = vunpack.c.h.b16 %v3734
    %v4326 = vunpack.c.l.b16 %v3735
    %v4327 = vunpack.c.l.b16 %v3736
    %v4328 = vunpack.c.h.b16 %v3736
    %v4329 = vunpack.c.l.b16 %v3737
    %v4330 = vunpack.c.h.b16 %v3737
    %v4331 = vunpack.c.l.b16 %v3738
    %v4332 = vunpack.c.h.b16 %v3738
    %v4333 = vunpack.c.l.b16 %v3739
    %v4334 = vunpack.c.l.b16 %v3740
    %v4335 = vunpack.c.h.b16 %v3740
    %v4336 = vunpack.c.l.b16 %v3741
    %v4337 = vunpack.c.h.b16 %v3741
    %v4338 = vunpack.c.l.b16 %v3742
    %v4339 = vunpack.c.h.b16 %v3742
    %v4340 = vunpack.c.l.b16 %v3743
    %v4341 = vunpack.c.l.b16 %v3744
    %v4342 = vunpack.c.h.b16 %v3744
    %v4343 = vunpack.c.l.b16 %v3745
    %v4344 = vunpack.c.h.b16 %v3745
    %v4345 = vunpack.c.l.b16 %v3746
    %v4346 = vunpack.c.h.b16 %v3746
    %v4347 = vunpack.c.l.b16 %v3747
    %v4348 = vunpack.c.l.b16 %v3748
    %v4349 = vunpack.c.h.b16 %v3748
    %v4350 = vunpack.c.l.b16 %v3749
    %v4351 = vunpack.c.h.b16 %v3749
    %v4352 = vunpack.c.l.b16 %v3750
    %v4353 = vunpack.c.h.b16 %v3750
    %v4354 = vunpack.c.l.b16 %v3751
    %v4355 = vunpack.c.l.b16 %v3752
    %v4356 = vunpack.c.h.b16 %v3752
    %v4357 = vunpack.c.l.b16 %v3753
    %v4358 = vunpack.c.h.b16 %v3753
    %v4359 = vunpack.c.l.b16 %v3754
    %v4360 = vunpack.c.h.b16 %v3754
    %v4361 = vunpack.c.l.b16 %v3755
    %v4362 = vunpack.c.l.b16 %v3756
    %v4363 = vunpack.c.h.b16 %v3756
    %v4364 = vunpack.c.l.b16 %v3757
    %v4365 = vunpack.c.h.b16 %v3757
    %v4366 = vunpack.c.l.b16 %v3758
    %v4367 = vunpack.c.h.b16 %v3758
    %v4368 = vunpack.c.l.b16 %v3759
    %v4369 = vunpack.c.l.b16 %v3760
    %v4370 = vunpack.c.h.b16 %v3760
    %v4371 = vunpack.c.l.b16 %v3761
    %v4372 = vunpack.c.h.b16 %v3761
    %v4373 = vunpack.c.l.b16 %v3762
    %v4374 = vunpack.c.h.b16 %v3762
    %v4375 = vunpack.c.l.b16 %v3763
    %v4376 = vunpack.c.l.b16 %v3764
    %v4377 = vunpack.c.h.b16 %v3764
    %v4378 = vunpack.c.l.b16 %v3765
    %v4379 = vunpack.c.h.b16 %v3765
    %v4380 = vunpack.c.l.b16 %v3766
    %v4381 = vunpack.c.h.b16 %v3766
    %v4382 = vunpack.c.l.b16 %v3767
    %v4383 = vunpack.c.l.b16 %v3768
    %v4384 = vunpack.c.h.b16 %v3768
    %v4385 = vunpack.c.l.b16 %v3769
    %v4386 = vunpack.c.h.b16 %v3769
    %v4387 = vunpack.c.l.b16 %v3770
    %v4388 = vunpack.c.h.b16 %v3770
    %v4389 = vunpack.c.l.b16 %v3771
    %v4390 = vunpack.c.l.b16 %v3772
    %v4391 = vunpack.c.h.b16 %v3772
    %v4392 = vunpack.c.l.b16 %v3773
    %v4393 = vunpack.c.h.b16 %v3773
    %v4394 = vunpack.c.l.b16 %v3774
    %v4395 = vunpack.c.h.b16 %v3774
    %v4396 = vunpack.c.l.b16 %v3775
    %v4397 = vunpack.c.l.b16 %v3776
    %v4398 = vunpack.c.h.b16 %v3776
    %v4399 = vunpack.c.l.b16 %v3777
    %v4400 = vunpack.c.h.b16 %v3777
    %v4401 = vunpack.c.l.b16 %v3778
    %v4402 = vunpack.c.h.b16 %v3778
    %v4403 = vunpack.c.l.b16 %v3779
    %v4404 = vunpack.c.l.b16 %v3780
    %v4405 = vunpack.c.h.b16 %v3780
    %v4406 = vunpack.c.l.b16 %v3781
    %v4407 = vunpack.c.h.b16 %v3781
    %v4408 = vunpack.c.l.b16 %v3782
    %v4409 = vunpack.c.h.b16 %v3782
    %v4410 = vunpack.c.l.b16 %v3783
    %v4411 = vunpack.c.l.b16 %v3784
    %v4412 = vunpack.c.h.b16 %v3784
    %v4413 = vunpack.c.l.b16 %v3785
    %v4414 = vunpack.c.h.b16 %v3785
    %v4415 = vunpack.c.l.b16 %v3786
    %v4416 = vunpack.c.h.b16 %v3786
    %v4417 = vunpack.c.l.b16 %v3787
    %v4418 = vunpack.c.l.b16 %v3788
    %v4419 = vunpack.c.h.b16 %v3788
    %v4420 = vunpack.c.l.b16 %v3789
    %v4421 = vunpack.c.h.b16 %v3789
    %v4422 = vunpack.c.l.b16 %v3790
    %v4423 = vunpack.c.h.b16 %v3790
    %v4424 = vunpack.c.l.b16 %v3791
    %v4425 = vunpack.c.l.b16 %v3792
    %v4426 = vunpack.c.h.b16 %v3792
    %v4427 = vunpack.c.l.b16 %v3793
    %v4428 = vunpack.c.h.b16 %v3793
    %v4429 = vunpack.c.l.b16 %v3794
    %v4430 = vunpack.c.h.b16 %v3794
    %v4431 = vunpack.c.l.b16 %v3795
    %v4432 = vunpack.c.l.b16 %v3796
    %v4433 = vunpack.c.h.b16 %v3796
    %v4434 = vunpack.c.l.b16 %v3797
    %v4435 = vunpack.c.h.b16 %v3797
    %v4436 = vunpack.c.l.b16 %v3798
    %v4437 = vunpack.c.h.b16 %v3798
    %v4438 = vunpack.c.l.b16 %v3799
    %v4439 = vunpack.c.l.b16 %v3800
    %v4440 = vunpack.c.h.b16 %v3800
    %v4441 = vunpack.c.l.b16 %v3801
    %v4442 = vunpack.c.h.b16 %v3801
    %v4443 = vunpack.c.l.b16 %v3802
    %v4444 = vunpack.c.h.b16 %v3802
    %v4445 = vunpack.c.l.b16 %v3803
    %v4446 = vunpack.c.l.b16 %v3804
    %v4447 = vunpack.c.h.b16 %v3804
    %v4448 = vunpack.c.l.b16 %v3805
    %v4449 = vunpack.c.h.b16 %v3805
    %v4450 = vunpack.c.l.b16 %v3806
    %v4451 = vunpack.c.h.b16 %v3806
    %v4452 = vunpack.c.l.b16 %v3807
    %v4453 = vunpack.c.l.b16 %v3808
    %v4454 = vunpack.c.h.b16 %v3808
    %v4455 = vunpack.c.l.b16 %v3809
    %v4456 = vunpack.c.h.b16 %v3809
    %v4457 = vunpack.c.l.b16 %v3810
    %v4458 = vunpack.c.h.b16 %v3810
    %v4459 = vunpack.c.l.b16 %v3811
    %v4460 = vunpack.c.l.b16 %v3812
    %v4461 = vunpack.c.h.b16 %v3812
    %v4462 = vunpack.c.l.b16 %v3813
    %v4463 = vunpack.c.h.b16 %v3813
    %v4464 = vunpack.c.l.b16 %v3814
    %v4465 = vunpack.c.h.b16 %v3814
    %v4466 = vunpack.c.l.b16 %v3815
    %v4467 = vunpack.c.l.b16 %v3816
    %v4468 = vunpack.c.h.b16 %v3816
    %v4469 = vunpack.c.l.b16 %v3817
    %v4470 = vunpack.c.h.b16 %v3817
    %v4471 = vunpack.c.l.b16 %v3818
    %v4472 = vunpack.c.h.b16 %v3818
    %v4473 = vunpack.c.l.b16 %v3819
    %v4474 = vunpack.c.l.b16 %v3820
    %v4475 = vunpack.c.h.b16 %v3820
    %v4476 = vunpack.c.l.b16 %v3821
    %v4477 = vunpack.c.h.b16 %v3821
    %v4478 = vunpack.c.l.b16 %v3822
    %v4479 = vunpack.c.h.b16 %v3822
    %v4480 = vunpack.c.l.b16 %v3823
    %v4481 = vunpack.c.l.b16 %v3824
    %v4482 = vunpack.c.h.b16 %v3824
    %v4483 = vunpack.c.l.b16 %v3825
    %v4484 = vunpack.c.h.b16 %v3825
    %v4485 = vunpack.c.l.b16 %v3826
    %v4486 = vunpack.c.h.b16 %v3826
    %v4487 = vunpack.c.l.b16 %v3827
    %v4488 = vunpack.c.l.b16 %v3828
    %v4489 = vunpack.c.h.b16 %v3828
    %v4490 = vunpack.c.l.b16 %v3829
    %v4491 = vunpack.c.h.b16 %v3829
    %v4492 = vunpack.c.l.b16 %v3830
    %v4493 = vunpack.c.h.b16 %v3830
    %v4494 = vunpack.c.l.b16 %v3831
    %v4495 = vunpack.c.l.b16 %v3832
    %v4496 = vunpack.c.h.b16 %v3832
    %v4497 = vunpack.c.l.b16 %v3833
    %v4498 = vunpack.c.h.b16 %v3833
    %v4499 = vunpack.c.l.b16 %v3834
    %v4500 = vunpack.c.h.b16 %v3834
    %v4501 = vunpack.c.l.b16 %v3835
    %v4502 = vunpack.c.l.b16 %v3836
    %v4503 = vunpack.c.h.b16 %v3836
    %v4504 = vunpack.c.l.b16 %v3837
    %v4505 = vunpack.c.h.b16 %v3837
    %v4506 = vunpack.c.l.b16 %v3838
    %v4507 = vunpack.c.h.b16 %v3838
    %v4508 = vunpack.c.l.b16 %v3839
    %v4509 = vunpack.c.l.b16 %v3840
    %v4510 = vunpack.c.h.b16 %v3840
    %v4511 = vunpack.c.l.b16 %v3841
    %v4512 = vunpack.c.h.b16 %v3841
    %v4513 = vunpack.c.l.b16 %v3842
    %v4514 = vunpack.c.h.b16 %v3842
    %v4515 = vunpack.c.l.b16 %v3843
    %v4516 = vunpack.c.l.b16 %v3844
    %v4517 = vunpack.c.h.b16 %v3844
    %v4518 = vunpack.c.l.b16 %v3845
    %v4519 = vunpack.c.h.b16 %v3845
    %v4520 = vunpack.c.l.b16 %v3846
    %v4521 = vunpack.c.h.b16 %v3846
    %v4522 = vunpack.c.l.b16 %v3847
    %v4523 = vunpack.c.l.b16 %v3848
    %v4524 = vunpack.c.h.b16 %v3848
    %v4525 = vunpack.c.l.b16 %v3849
    %v4526 = vunpack.c.h.b16 %v3849
    %v4527 = vunpack.c.l.b16 %v3850
    %v4528 = vunpack.c.h.b16 %v3850
    %v4529 = vunpack.c.l.b16 %v3851
    %v4530 = vunpack.c.l.b16 %v3852
    %v4531 = vunpack.c.h.b16 %v3852
    %v4532 = vunpack.c.l.b16 %v3853
    %v4533 = vunpack.c.h.b16 %v3853
    %v4534 = vunpack.c.l.b16 %v3854
    %v4535 = vunpack.c.h.b16 %v3854
    %v4536 = vunpack.c.l.b16 %v3855
    %v4537 = vunpack.c.l.b16 %v3856
    %v4538 = vunpack.c.h.b16 %v3856
    %v4539 = vunpack.c.l.b16 %v3857
    %v4540 = vunpack.c.h.b16 %v3857
    %v4541 = vunpack.c.l.b16 %v3858
    %v4542 = vunpack.c.h.b16 %v3858
    %v4543 = vunpack.c.l.b16 %v3859
    %v4544 = vunpack.c.l.b16 %v3860
    %v4545 = vunpack.c.h.b16 %v3860
    %v4546 = vunpack.c.l.b16 %v3861
    %v4547 = vunpack.c.h.b16 %v3861
    %v4548 = vunpack.c.l.b16 %v3862
    %v4549 = vunpack.c.h.b16 %v3862
    %v4550 = vunpack.c.l.b16 %v3863
    %v4551 = vunpack.c.l.b16 %v3864
    %v4552 = vunpack.c.h.b16 %v3864
    %v4553 = vunpack.c.l.b16 %v3865
    %v4554 = vunpack.c.h.b16 %v3865
    %v4555 = vunpack.c.l.b16 %v3866
    %v4556 = vunpack.c.h.b16 %v3866
    %v4557 = vunpack.c.l.b16 %v3867
    %v4558 = vunpack.c.l.b16 %v3868
    %v4559 = vunpack.c.h.b16 %v3868
    %v4560 = vunpack.c.l.b16 %v3869
    %v4561 = vunpack.c.h.b16 %v3869
    %v4562 = vunpack.c.l.b16 %v3870
    %v4563 = vunpack.c.h.b16 %v3870
    %v4564 = vunpack.c.l.b16 %v3871
    %v4565 = vunpack.c.l.b16 %v3872
    %v4566 = vunpack.c.h.b16 %v3872
    %v4567 = vunpack.c.l.b16 %v3873
    %v4568 = vunpack.c.h.b16 %v3873
    %v4569 = vunpack.c.l.b16 %v3874
    %v4570 = vunpack.c.h.b16 %v3874
    %v4571 = vunpack.c.l.b16 %v3875
    %v4572 = vunpack.c.l.b16 %v3876
    %v4573 = vunpack.c.h.b16 %v3876
    %v4574 = vunpack.c.l.b16 %v3877
    %v4575 = vunpack.c.h.b16 %v3877
    %v4576 = vunpack.c.l.b16 %v3878
    %v4577 = vunpack.c.h.b16 %v3878
    %v4578 = vunpack.c.l.b16 %v3879
    %v4579 = vunpack.c.l.b16 %v3880
    %v4580 = vunpack.c.h.b16 %v3880
    %v4581 = vunpack.c.l.b16 %v3881
    %v4582 = vunpack.c.h.b16 %v3881
    %v4583 = vunpack.c.l.b16 %v3882
    %v4584 = vunpack.c.h.b16 %v3882
    %v4585 = vunpack.c.l.b16 %v3883
    %v4586 = vunpack.c.l.b16 %v3884
    %v4587 = vunpack.c.h.b16 %v3884
    %v4588 = vunpack.c.l.b16 %v3885
    %v4589 = vunpack.c.h.b16 %v3885
    %v4590 = vunpack.c.l.b16 %v3886
    %v4591 = vunpack.c.h.b16 %v3886
    %v4592 = vunpack.c.l.b16 %v3887
    %v4593 = vunpack.c.l.b16 %v3888
    %v4594 = vunpack.c.h.b16 %v3888
    %v4595 = vunpack.c.l.b16 %v3889
    %v4596 = vunpack.c.h.b16 %v3889
    %v4597 = vunpack.c.l.b16 %v3890
    %v4598 = vunpack.c.h.b16 %v3890
    %v4599 = vunpack.c.l.b16 %v3891
    %v4600 = vunpack.c.l.b16 %v3892
    %v4601 = vunpack.c.h.b16 %v3892
    %v4602 = vunpack.c.l.b16 %v3893
    %v4603 = vunpack.c.h.b16 %v3893
    %v4604 = vunpack.c.l.b16 %v3894
    %v4605 = vunpack.c.h.b16 %v3894
    %v4606 = vunpack.c.l.b16 %v3895
    %v4607 = vunpack.c.l.b16 %v3896
    %v4608 = vunpack.c.h.b16 %v3896
    %v4609 = vunpack.c.l.b16 %v3897
    %v4610 = vunpack.c.h.b16 %v3897
    %v4611 = vunpack.c.l.b16 %v3898
    %v4612 = vunpack.c.h.b16 %v3898
    %v4613 = vunpack.c.l.b16 %v3899
    %v4614 = vunpack.c.l.b16 %v3900
    %v4615 = vunpack.c.h.b16 %v3900
    %v4616 = vunpack.c.l.b16 %v3901
    %v4617 = vunpack.c.h.b16 %v3901
    %v4618 = vunpack.c.l.b16 %v3902
    %v4619 = vunpack.c.h.b16 %v3902
    %v4620 = vunpack.c.l.b16 %v3903
    %v4621 = vunpack.c.l.b16 %v3904
    %v4622 = vunpack.c.h.b16 %v3904
    %v4623 = vunpack.c.l.b16 %v3905
    %v4624 = vunpack.c.h.b16 %v3905
    %v4625 = vunpack.c.l.b16 %v3906
    %v4626 = vunpack.c.h.b16 %v3906
    %v4627 = vunpack.c.l.b16 %v3907
    %v4628 = vpack.c.b16 %v4187, %v4180
    %v4629 = vpack.c.b16 %v4188, %v4181
    %v4630 = vpack.c.b16 %v4189, %v4182
    %v4631 = vpack.c.b16 %v4190, %v4183
    %v4632 = vpack.c.b16 %v4191, %v4184
    %v4633 = vpack.c.b16 %v4192, %v4185
    %v4634 = vpack.c.b16 %v4193, %v4186
    %v4635 = vpack.c.b16 %v4201, %v4194
    %v4636 = vpack.c.b16 %v4202, %v4195
    %v4637 = vpack.c.b16 %v4203, %v4196
    %v4638 = vpack.c.b16 %v4204, %v4197
    %v4639 = vpack.c.b16 %v4205, %v4198
    %v4640 = vpack.c.b16 %v4206, %v4199
    %v4641 = vpack.c.b16 %v4207, %v4200
    %v4642 = vpack.c.b16 %v4215, %v4208
    %v4643 = vpack.c.b16 %v4216, %v4209
    %v4644 = vpack.c.b16 %v4217, %v4210
    %v4645 = vpack.c.b16 %v4218, %v4211
    %v4646 = vpack.c.b16 %v4219, %v4212
    %v4647 = vpack.c.b16 %v4220, %v4213
    %v4648 = vpack.c.b16 %v4221, %v4214
    %v4649 = vpack.c.b16 %v4229, %v4222
    %v4650 = vpack.c.b16 %v4230, %v4223
    %v4651 = vpack.c.b16 %v4231, %v4224
    %v4652 = vpack.c.b16 %v4232, %v4225
    %v4653 = vpack.c.b16 %v4233, %v4226
    %v4654 = vpack.c.b16 %v4234, %v4227
    %v4655 = vpack.c.b16 %v4235, %v4228
    %v4656 = vpack.c.b16 %v4243, %v4236
    %v4657 = vpack.c.b16 %v4244, %v4237
    %v4658 = vpack.c.b16 %v4245, %v4238
    %v4659 = vpack.c.b16 %v4246, %v4239
    %v4660 = vpack.c.b16 %v4247, %v4240
    %v4661 = vpack.c.b16 %v4248, %v4241
    %v4662 = vpack.c.b16 %v4249, %v4242
    %v4663 = vpack.c.b16 %v4257, %v4250
    %v4664 = vpack.c.b16 %v4258, %v4251
    %v4665 = vpack.c.b16 %v4259, %v4252
    %v4666 = vpack.c.b16 %v4260, %v4253
    %v4667 = vpack.c.b16 %v4261, %v4254
    %v4668 = vpack.c.b16 %v4262, %v4255
    %v4669 = vpack.c.b16 %v4263, %v4256
    %v4670 = vpack.c.b16 %v4271, %v4264
    %v4671 = vpack.c.b16 %v4272, %v4265
    %v4672 = vpack.c.b16 %v4273, %v4266
    %v4673 = vpack.c.b16 %v4274, %v4267
    %v4674 = vpack.c.b16 %v4275, %v4268
    %v4675 = vpack.c.b16 %v4276, %v4269
    %v4676 = vpack.c.b16 %v4277, %v4270
    %v4677 = vpack.c.b16 %v4285, %v4278
    %v4678 = vpack.c.b16 %v4286, %v4279
    %v4679 = vpack.c.b16 %v4287, %v4280
    %v4680 = vpack.c.b16 %v4288, %v4281
    %v4681 = vpack.c.b16 %v4289, %v4282
    %v4682 = vpack.c.b16 %v4290, %v4283
    %v4683 = vpack.c.b16 %v4291, %v4284
    %v4684 = vpack.c.b16 %v4299, %v4292
    %v4685 = vpack.c.b16 %v4300, %v4293
    %v4686 = vpack.c.b16 %v4301, %v4294
    %v4687 = vpack.c.b16 %v4302, %v4295
    %v4688 = vpack.c.b16 %v4303, %v4296
    %v4689 = vpack.c.b16 %v4304, %v4297
    %v4690 = vpack.c.b16 %v4305, %v4298
    %v4691 = vpack.c.b16 %v4313, %v4306
    %v4692 = vpack.c.b16 %v4314, %v4307
    %v4693 = vpack.c.b16 %v4315, %v4308
    %v4694 = vpack.c.b16 %v4316, %v4309
    %v4695 = vpack.c.b16 %v4317, %v4310
    %v4696 = vpack.c.b16 %v4318, %v4311
    %v4697 = vpack.c.b16 %v4319, %v4312
    %v4698 = vpack.c.b16 %v4327, %v4320
    %v4699 = vpack.c.b16 %v4328, %v4321
    %v4700 = vpack.c.b16 %v4329, %v4322
    %v4701 = vpack.c.b16 %v4330, %v4323
    %v4702 = vpack.c.b16 %v4331, %v4324
    %v4703 = vpack.c.b16 %v4332, %v4325
    %v4704 = vpack.c.b16 %v4333, %v4326
    %v4705 = vpack.c.b16 %v4341, %v4334
    %v4706 = vpack.c.b16 %v4342, %v4335
    %v4707 = vpack.c.b16 %v4343, %v4336
    %v4708 = vpack.c.b16 %v4344, %v4337
    %v4709 = vpack.c.b16 %v4345, %v4338
    %v4710 = vpack.c.b16 %v4346, %v4339
    %v4711 = vpack.c.b16 %v4347, %v4340
    %v4712 = vpack.c.b16 %v4355, %v4348
    %v4713 = vpack.c.b16 %v4356, %v4349
    %v4714 = vpack.c.b16 %v4357, %v4350
    %v4715 = vpack.c.b16 %v4358, %v4351
    %v4716 = vpack.c.b16 %v4359, %v4352
    %v4717 = vpack.c.b16 %v4360, %v4353
    %v4718 = vpack.c.b16 %v4361, %v4354
    %v4719 = vpack.c.b16 %v4369, %v4362
    %v4720 = vpack.c.b16 %v4370, %v4363
    %v4721 = vpack.c.b16 %v4371, %v4364
    %v4722 = vpack.c.b16 %v4372, %v4365
    %v4723 = vpack.c.b16 %v4373, %v4366
    %v4724 = vpack.c.b16 %v4374, %v4367
    %v4725 = vpack.c.b16 %v4375, %v4368
    %v4726 = vpack.c.b16 %v4383, %v4376
    %v4727 = vpack.c.b16 %v4384, %v4377
    %v4728 = vpack.c.b16 %v4385, %v4378
    %v4729 = vpack.c.b16 %v4386, %v4379
    %v4730 = vpack.c.b16 %v4387, %v4380
    %v4731 = vpack.c.b16 %v4388, %v4381
    %v4732 = vpack.c.b16 %v4389, %v4382
    %v4733 = vpack.c.b16 %v4397, %v4390
    %v4734 = vpack.c.b16 %v4398, %v4391
    %v4735 = vpack.c.b16 %v4399, %v4392
    %v4736 = vpack.c.b16 %v4400, %v4393
    %v4737 = vpack.c.b16 %v4401, %v4394
    %v4738 = vpack.c.b16 %v4402, %v4395
    %v4739 = vpack.c.b16 %v4403, %v4396
    %v4740 = vpack.c.b16 %v4411, %v4404
    %v4741 = vpack.c.b16 %v4412, %v4405
    %v4742 = vpack.c.b16 %v4413, %v4406
    %v4743 = vpack.c.b16 %v4414, %v4407
    %v4744 = vpack.c.b16 %v4415, %v4408
    %v4745 = vpack.c.b16 %v4416, %v4409
    %v4746 = vpack.c.b16 %v4417, %v4410
    %v4747 = vpack.c.b16 %v4425, %v4418
    %v4748 = vpack.c.b16 %v4426, %v4419
    %v4749 = vpack.c.b16 %v4427, %v4420
    %v4750 = vpack.c.b16 %v4428, %v4421
    %v4751 = vpack.c.b16 %v4429, %v4422
    %v4752 = vpack.c.b16 %v4430, %v4423
    %v4753 = vpack.c.b16 %v4431, %v4424
    %v4754 = vpack.c.b16 %v4439, %v4432
    %v4755 = vpack.c.b16 %v4440, %v4433
    %v4756 = vpack.c.b16 %v4441, %v4434
    %v4757 = vpack.c.b16 %v4442, %v4435
    %v4758 = vpack.c.b16 %v4443, %v4436
    %v4759 = vpack.c.b16 %v4444, %v4437
    %v4760 = vpack.c.b16 %v4445, %v4438
    %v4761 = vpack.c.b16 %v4453, %v4446
    %v4762 = vpack.c.b16 %v4454, %v4447
    %v4763 = vpack.c.b16 %v4455, %v4448
    %v4764 = vpack.c.b16 %v4456, %v4449
    %v4765 = vpack.c.b16 %v4457, %v4450
    %v4766 = vpack.c.b16 %v4458, %v4451
    %v4767 = vpack.c.b16 %v4459, %v4452
    %v4768 = vpack.c.b16 %v4467, %v4460
    %v4769 = vpack.c.b16 %v4468, %v4461
    %v4770 = vpack.c.b16 %v4469, %v4462
    %v4771 = vpack.c.b16 %v4470, %v4463
    %v4772 = vpack.c.b16 %v4471, %v4464
    %v4773 = vpack.c.b16 %v4472, %v4465
    %v4774 = vpack.c.b16 %v4473, %v4466
    %v4775 = vpack.c.b16 %v4481, %v4474
    %v4776 = vpack.c.b16 %v4482, %v4475
    %v4777 = vpack.c.b16 %v4483, %v4476
    %v4778 = vpack.c.b16 %v4484, %v4477
    %v4779 = vpack.c.b16 %v4485, %v4478
    %v4780 = vpack.c.b16 %v4486, %v4479
    %v4781 = vpack.c.b16 %v4487, %v4480
    %v4782 = vpack.c.b16 %v4495, %v4488
    %v4783 = vpack.c.b16 %v4496, %v4489
    %v4784 = vpack.c.b16 %v4497, %v4490
    %v4785 = vpack.c.b16 %v4498, %v4491
    %v4786 = vpack.c.b16 %v4499, %v4492
    %v4787 = vpack.c.b16 %v4500, %v4493
    %v4788 = vpack.c.b16 %v4501, %v4494
    %v4789 = vpack.c.b16 %v4509, %v4502
    %v4790 = vpack.c.b16 %v4510, %v4503
    %v4791 = vpack.c.b16 %v4511, %v4504
    %v4792 = vpack.c.b16 %v4512, %v4505
    %v4793 = vpack.c.b16 %v4513, %v4506
    %v4794 = vpack.c.b16 %v4514, %v4507
    %v4795 = vpack.c.b16 %v4515, %v4508
    %v4796 = vpack.c.b16 %v4523, %v4516
    %v4797 = vpack.c.b16 %v4524, %v4517
    %v4798 = vpack.c.b16 %v4525, %v4518
    %v4799 = vpack.c.b16 %v4526, %v4519
    %v4800 = vpack.c.b16 %v4527, %v4520
    %v4801 = vpack.c.b16 %v4528, %v4521
    %v4802 = vpack.c.b16 %v4529, %v4522
    %v4803 = vpack.c.b16 %v4537, %v4530
    %v4804 = vpack.c.b16 %v4538, %v4531
    %v4805 = vpack.c.b16 %v4539, %v4532
    %v4806 = vpack.c.b16 %v4540, %v4533
    %v4807 = vpack.c.b16 %v4541, %v4534
    %v4808 = vpack.c.b16 %v4542, %v4535
    %v4809 = vpack.c.b16 %v4543, %v4536
    %v4810 = vpack.c.b16 %v4551, %v4544
    %v4811 = vpack.c.b16 %v4552, %v4545
    %v4812 = vpack.c.b16 %v4553, %v4546
    %v4813 = vpack.c.b16 %v4554, %v4547
    %v4814 = vpack.c.b16 %v4555, %v4548
    %v4815 = vpack.c.b16 %v4556, %v4549
    %v4816 = vpack.c.b16 %v4557, %v4550
    %v4817 = vpack.c.b16 %v4565, %v4558
    %v4818 = vpack.c.b16 %v4566, %v4559
    %v4819 = vpack.c.b16 %v4567, %v4560
    %v4820 = vpack.c.b16 %v4568, %v4561
    %v4821 = vpack.c.b16 %v4569, %v4562
    %v4822 = vpack.c.b16 %v4570, %v4563
    %v4823 = vpack.c.b16 %v4571, %v4564
    %v4824 = vpack.c.b16 %v4579, %v4572
    %v4825 = vpack.c.b16 %v4580, %v4573
    %v4826 = vpack.c.b16 %v4581, %v4574
    %v4827 = vpack.c.b16 %v4582, %v4575
    %v4828 = vpack.c.b16 %v4583, %v4576
    %v4829 = vpack.c.b16 %v4584, %v4577
    %v4830 = vpack.c.b16 %v4585, %v4578
    %v4831 = vpack.c.b16 %v4593, %v4586
    %v4832 = vpack.c.b16 %v4594, %v4587
    %v4833 = vpack.c.b16 %v4595, %v4588
    %v4834 = vpack.c.b16 %v4596, %v4589
    %v4835 = vpack.c.b16 %v4597, %v4590
    %v4836 = vpack.c.b16 %v4598, %v4591
    %v4837 = vpack.c.b16 %v4599, %v4592
    %v4838 = vpack.c.b16 %v4607, %v4600
    %v4839 = vpack.c.b16 %v4608, %v4601
    %v4840 = vpack.c.b16 %v4609, %v4602
    %v4841 = vpack.c.b16 %v4610, %v4603
    %v4842 = vpack.c.b16 %v4611, %v4604
    %v4843 = vpack.c.b16 %v4612, %v4605
    %v4844 = vpack.c.b16 %v4613, %v4606
    %v4845 = vpack.c.b16 %v4621, %v4614
    %v4846 = vpack.c.b16 %v4622, %v4615
    %v4847 = vpack.c.b16 %v4623, %v4616
    %v4848 = vpack.c.b16 %v4624, %v4617
    %v4849 = vpack.c.b16 %v4625, %v4618
    %v4850 = vpack.c.b16 %v4626, %v4619
    %v4851 = vpack.c.b16 %v4627, %v4620
    %5076 = vmatpush.bf16.msra.mxu0 %v4677
    %5077 = vmatpush.bf16.msra.mxu0 %v4670
    %5078 = vmatpush.bf16.msra.mxu0 %v4663
    %5079 = vmatpush.bf16.msra.mxu0 %v4656
    %5080 = vmatpush.bf16.msra.mxu0 %v4649
    %5081 = vmatpush.bf16.msra.mxu0 %v4642
    %5082 = vmatpush.bf16.msra.mxu0 %v4635
    %5083 = vmatpush.bf16.msra.mxu0 %v4628
    %5084 = vmatmul.f32.gmra.mxu0 %v3648
    %v5085 = vpop.f32.mrf.mxu0
    %v5086 = vadd.f32 %v3910, %v5085
    %5087 = vdwg.mxu0
    %5088 = vmatpush.bf16.msra.mxu0 %v4733
    %5089 = vmatpush.bf16.msra.mxu0 %v4726
    %5090 = vmatpush.bf16.msra.mxu0 %v4719
    %5091 = vmatpush.bf16.msra.mxu0 %v4712
    %5092 = vmatpush.bf16.msra.mxu0 %v4705
    %5093 = vmatpush.bf16.msra.mxu0 %v4698
    %5094 = vmatpush.bf16.msra.mxu0 %v4691
    %5095 = vmatpush.bf16.msra.mxu0 %v4684
    %5096 = vmatmul.f32.gmra.mxu0 %v3649
    %v5097 = vpop.f32.mrf.mxu0
    %v5098 = vadd.f32 %v5086, %v5097
    %5099 = vdwg.mxu0
    %5100 = vmatpush.bf16.msra.mxu0 %v4789
    %5101 = vmatpush.bf16.msra.mxu0 %v4782
    %5102 = vmatpush.bf16.msra.mxu0 %v4775
    %5103 = vmatpush.bf16.msra.mxu0 %v4768
    %5104 = vmatpush.bf16.msra.mxu0 %v4761
    %5105 = vmatpush.bf16.msra.mxu0 %v4754
    %5106 = vmatpush.bf16.msra.mxu0 %v4747
    %5107 = vmatpush.bf16.msra.mxu0 %v4740
    %5108 = vmatmul.f32.gmra.mxu0 %v3650
    %v5109 = vpop.f32.mrf.mxu0
    %v5110 = vadd.f32 %v5098, %v5109
    %5111 = vdwg.mxu0
    %5112 = vmatpush.bf16.msra.mxu0 %v4845
    %5113 = vmatpush.bf16.msra.mxu0 %v4838
    %5114 = vmatpush.bf16.msra.mxu0 %v4831
    %5115 = vmatpush.bf16.msra.mxu0 %v4824
    %5116 = vmatpush.bf16.msra.mxu0 %v4817
    %5117 = vmatpush.bf16.msra.mxu0 %v4810
    %5118 = vmatpush.bf16.msra.mxu0 %v4803
    %5119 = vmatpush.bf16.msra.mxu0 %v4796
    %5120 = vmatmul.f32.gmra.mxu0 %v3651
    %v5121 = vpop.f32.mrf.mxu0
    %v5122 = vadd.f32 %v5110, %v5121
    %5123 = vdwg.mxu0
    %5124 = vmatpush.bf16.msra.mxu0 %v4678
    %5125 = vmatpush.bf16.msra.mxu0 %v4671
    %5126 = vmatpush.bf16.msra.mxu0 %v4664
    %5127 = vmatpush.bf16.msra.mxu0 %v4657
    %5128 = vmatpush.bf16.msra.mxu0 %v4650
    %5129 = vmatpush.bf16.msra.mxu0 %v4643
    %5130 = vmatpush.bf16.msra.mxu0 %v4636
    %5131 = vmatpush.bf16.msra.mxu0 %v4629
    %5132 = vmatmul.f32.gmra.mxu0 %v3648
    %v5133 = vpop.f32.mrf.mxu0
    %v5134 = vadd.f32 %v3911, %v5133
    %5135 = vdwg.mxu0
    %5136 = vmatpush.bf16.msra.mxu0 %v4734
    %5137 = vmatpush.bf16.msra.mxu0 %v4727
    %5138 = vmatpush.bf16.msra.mxu0 %v4720
    %5139 = vmatpush.bf16.msra.mxu0 %v4713
    %5140 = vmatpush.bf16.msra.mxu0 %v4706
    %5141 = vmatpush.bf16.msra.mxu0 %v4699
    %5142 = vmatpush.bf16.msra.mxu0 %v4692
    %5143 = vmatpush.bf16.msra.mxu0 %v4685
    %5144 = vmatmul.f32.gmra.mxu0 %v3649
    %v5145 = vpop.f32.mrf.mxu0
    %v5146 = vadd.f32 %v5134, %v5145
    %5147 = vdwg.mxu0
    %5148 = vmatpush.bf16.msra.mxu0 %v4790
    %5149 = vmatpush.bf16.msra.mxu0 %v4783
    %5150 = vmatpush.bf16.msra.mxu0 %v4776
    %5151 = vmatpush.bf16.msra.mxu0 %v4769
    %5152 = vmatpush.bf16.msra.mxu0 %v4762
    %5153 = vmatpush.bf16.msra.mxu0 %v4755
    %5154 = vmatpush.bf16.msra.mxu0 %v4748
    %5155 = vmatpush.bf16.msra.mxu0 %v4741
    %5156 = vmatmul.f32.gmra.mxu0 %v3650
    %v5157 = vpop.f32.mrf.mxu0
    %v5158 = vadd.f32 %v5146, %v5157
    %5159 = vdwg.mxu0
    %5160 = vmatpush.bf16.msra.mxu0 %v4846
    %5161 = vmatpush.bf16.msra.mxu0 %v4839
    %5162 = vmatpush.bf16.msra.mxu0 %v4832
    %5163 = vmatpush.bf16.msra.mxu0 %v4825
    %5164 = vmatpush.bf16.msra.mxu0 %v4818
    %5165 = vmatpush.bf16.msra.mxu0 %v4811
    %5166 = vmatpush.bf16.msra.mxu0 %v4804
    %5167 = vmatpush.bf16.msra.mxu0 %v4797
    %5168 = vmatmul.f32.gmra.mxu0 %v3651
    %v5169 = vpop.f32.mrf.mxu0
    %v5170 = vadd.f32 %v5158, %v5169
    %5171 = vdwg.mxu0
    %5172 = vmatpush.bf16.msra.mxu0 %v4679
    %5173 = vmatpush.bf16.msra.mxu0 %v4672
    %5174 = vmatpush.bf16.msra.mxu0 %v4665
    %5175 = vmatpush.bf16.msra.mxu0 %v4658
    %5176 = vmatpush.bf16.msra.mxu0 %v4651
    %5177 = vmatpush.bf16.msra.mxu0 %v4644
    %5178 = vmatpush.bf16.msra.mxu0 %v4637
    %5179 = vmatpush.bf16.msra.mxu0 %v4630
    %5180 = vmatmul.f32.gmra.mxu0 %v3648
    %v5181 = vpop.f32.mrf.mxu0
    %v5182 = vadd.f32 %v3912, %v5181
    %5183 = vdwg.mxu0
    %5184 = vmatpush.bf16.msra.mxu0 %v4735
    %5185 = vmatpush.bf16.msra.mxu0 %v4728
    %5186 = vmatpush.bf16.msra.mxu0 %v4721
    %5187 = vmatpush.bf16.msra.mxu0 %v4714
    %5188 = vmatpush.bf16.msra.mxu0 %v4707
    %5189 = vmatpush.bf16.msra.mxu0 %v4700
    %5190 = vmatpush.bf16.msra.mxu0 %v4693
    %5191 = vmatpush.bf16.msra.mxu0 %v4686
    %5192 = vmatmul.f32.gmra.mxu0 %v3649
    %v5193 = vpop.f32.mrf.mxu0
    %v5194 = vadd.f32 %v5182, %v5193
    %5195 = vdwg.mxu0
    %5196 = vmatpush.bf16.msra.mxu0 %v4791
    %5197 = vmatpush.bf16.msra.mxu0 %v4784
    %5198 = vmatpush.bf16.msra.mxu0 %v4777
    %5199 = vmatpush.bf16.msra.mxu0 %v4770
    %5200 = vmatpush.bf16.msra.mxu0 %v4763
    %5201 = vmatpush.bf16.msra.mxu0 %v4756
    %5202 = vmatpush.bf16.msra.mxu0 %v4749
    %5203 = vmatpush.bf16.msra.mxu0 %v4742
    %5204 = vmatmul.f32.gmra.mxu0 %v3650
    %v5205 = vpop.f32.mrf.mxu0
    %v5206 = vadd.f32 %v5194, %v5205
    %5207 = vdwg.mxu0
    %5208 = vmatpush.bf16.msra.mxu0 %v4847
    %5209 = vmatpush.bf16.msra.mxu0 %v4840
    %5210 = vmatpush.bf16.msra.mxu0 %v4833
    %5211 = vmatpush.bf16.msra.mxu0 %v4826
    %5212 = vmatpush.bf16.msra.mxu0 %v4819
    %5213 = vmatpush.bf16.msra.mxu0 %v4812
    %5214 = vmatpush.bf16.msra.mxu0 %v4805
    %5215 = vmatpush.bf16.msra.mxu0 %v4798
    %5216 = vmatmul.f32.gmra.mxu0 %v3651
    %v5217 = vpop.f32.mrf.mxu0
    %v5218 = vadd.f32 %v5206, %v5217
    %5219 = vdwg.mxu0
    %5220 = vmatpush.bf16.msra.mxu0 %v4680
    %5221 = vmatpush.bf16.msra.mxu0 %v4673
    %5222 = vmatpush.bf16.msra.mxu0 %v4666
    %5223 = vmatpush.bf16.msra.mxu0 %v4659
    %5224 = vmatpush.bf16.msra.mxu0 %v4652
    %5225 = vmatpush.bf16.msra.mxu0 %v4645
    %5226 = vmatpush.bf16.msra.mxu0 %v4638
    %5227 = vmatpush.bf16.msra.mxu0 %v4631
    %5228 = vmatmul.f32.gmra.mxu0 %v3648
    %v5229 = vpop.f32.mrf.mxu0
    %v5230 = vadd.f32 %v3913, %v5229
    %5231 = vdwg.mxu0
    %5232 = vmatpush.bf16.msra.mxu0 %v4736
    %5233 = vmatpush.bf16.msra.mxu0 %v4729
    %5234 = vmatpush.bf16.msra.mxu0 %v4722
    %5235 = vmatpush.bf16.msra.mxu0 %v4715
    %5236 = vmatpush.bf16.msra.mxu0 %v4708
    %5237 = vmatpush.bf16.msra.mxu0 %v4701
    %5238 = vmatpush.bf16.msra.mxu0 %v4694
    %5239 = vmatpush.bf16.msra.mxu0 %v4687
    %5240 = vmatmul.f32.gmra.mxu0 %v3649
    %v5241 = vpop.f32.mrf.mxu0
    %v5242 = vadd.f32 %v5230, %v5241
    %5243 = vdwg.mxu0
    %5244 = vmatpush.bf16.msra.mxu0 %v4792
    %5245 = vmatpush.bf16.msra.mxu0 %v4785
    %5246 = vmatpush.bf16.msra.mxu0 %v4778
    %5247 = vmatpush.bf16.msra.mxu0 %v4771
    %5248 = vmatpush.bf16.msra.mxu0 %v4764
    %5249 = vmatpush.bf16.msra.mxu0 %v4757
    %5250 = vmatpush.bf16.msra.mxu0 %v4750
    %5251 = vmatpush.bf16.msra.mxu0 %v4743
    %5252 = vmatmul.f32.gmra.mxu0 %v3650
    %v5253 = vpop.f32.mrf.mxu0
    %v5254 = vadd.f32 %v5242, %v5253
    %5255 = vdwg.mxu0
    %5256 = vmatpush.bf16.msra.mxu0 %v4848
    %5257 = vmatpush.bf16.msra.mxu0 %v4841
    %5258 = vmatpush.bf16.msra.mxu0 %v4834
    %5259 = vmatpush.bf16.msra.mxu0 %v4827
    %5260 = vmatpush.bf16.msra.mxu0 %v4820
    %5261 = vmatpush.bf16.msra.mxu0 %v4813
    %5262 = vmatpush.bf16.msra.mxu0 %v4806
    %5263 = vmatpush.bf16.msra.mxu0 %v4799
    %5264 = vmatmul.f32.gmra.mxu0 %v3651
    %v5265 = vpop.f32.mrf.mxu0
    %v5266 = vadd.f32 %v5254, %v5265
    %5267 = vdwg.mxu0
    %5268 = vmatpush.bf16.msra.mxu0 %v4681
    %5269 = vmatpush.bf16.msra.mxu0 %v4674
    %5270 = vmatpush.bf16.msra.mxu0 %v4667
    %5271 = vmatpush.bf16.msra.mxu0 %v4660
    %5272 = vmatpush.bf16.msra.mxu0 %v4653
    %5273 = vmatpush.bf16.msra.mxu0 %v4646
    %5274 = vmatpush.bf16.msra.mxu0 %v4639
    %5275 = vmatpush.bf16.msra.mxu0 %v4632
    %5276 = vmatmul.f32.gmra.mxu0 %v3648
    %v5277 = vpop.f32.mrf.mxu0
    %v5278 = vadd.f32 %v3914, %v5277
    %5279 = vdwg.mxu0
    %5280 = vmatpush.bf16.msra.mxu0 %v4737
    %5281 = vmatpush.bf16.msra.mxu0 %v4730
    %5282 = vmatpush.bf16.msra.mxu0 %v4723
    %5283 = vmatpush.bf16.msra.mxu0 %v4716
    %5284 = vmatpush.bf16.msra.mxu0 %v4709
    %5285 = vmatpush.bf16.msra.mxu0 %v4702
    %5286 = vmatpush.bf16.msra.mxu0 %v4695
    %5287 = vmatpush.bf16.msra.mxu0 %v4688
    %5288 = vmatmul.f32.gmra.mxu0 %v3649
    %v5289 = vpop.f32.mrf.mxu0
    %v5290 = vadd.f32 %v5278, %v5289
    %5291 = vdwg.mxu0
    %5292 = vmatpush.bf16.msra.mxu0 %v4793
    %5293 = vmatpush.bf16.msra.mxu0 %v4786
    %5294 = vmatpush.bf16.msra.mxu0 %v4779
    %5295 = vmatpush.bf16.msra.mxu0 %v4772
    %5296 = vmatpush.bf16.msra.mxu0 %v4765
    %5297 = vmatpush.bf16.msra.mxu0 %v4758
    %5298 = vmatpush.bf16.msra.mxu0 %v4751
    %5299 = vmatpush.bf16.msra.mxu0 %v4744
    %5300 = vmatmul.f32.gmra.mxu0 %v3650
    %v5301 = vpop.f32.mrf.mxu0
    %v5302 = vadd.f32 %v5290, %v5301
    %5303 = vdwg.mxu0
    %5304 = vmatpush.bf16.msra.mxu0 %v4849
    %5305 = vmatpush.bf16.msra.mxu0 %v4842
    %5306 = vmatpush.bf16.msra.mxu0 %v4835
    %5307 = vmatpush.bf16.msra.mxu0 %v4828
    %5308 = vmatpush.bf16.msra.mxu0 %v4821
    %5309 = vmatpush.bf16.msra.mxu0 %v4814
    %5310 = vmatpush.bf16.msra.mxu0 %v4807
    %5311 = vmatpush.bf16.msra.mxu0 %v4800
    %5312 = vmatmul.f32.gmra.mxu0 %v3651
    %v5313 = vpop.f32.mrf.mxu0
    %v5314 = vadd.f32 %v5302, %v5313
    %5315 = vdwg.mxu0
    %5316 = vmatpush.bf16.msra.mxu0 %v4682
    %5317 = vmatpush.bf16.msra.mxu0 %v4675
    %5318 = vmatpush.bf16.msra.mxu0 %v4668
    %5319 = vmatpush.bf16.msra.mxu0 %v4661
    %5320 = vmatpush.bf16.msra.mxu0 %v4654
    %5321 = vmatpush.bf16.msra.mxu0 %v4647
    %5322 = vmatpush.bf16.msra.mxu0 %v4640
    %5323 = vmatpush.bf16.msra.mxu0 %v4633
    %5324 = vmatmul.f32.gmra.mxu0 %v3648
    %v5325 = vpop.f32.mrf.mxu0
    %v5326 = vadd.f32 %v3915, %v5325
    %5327 = vdwg.mxu0
    %5328 = vmatpush.bf16.msra.mxu0 %v4738
    %5329 = vmatpush.bf16.msra.mxu0 %v4731
    %5330 = vmatpush.bf16.msra.mxu0 %v4724
    %5331 = vmatpush.bf16.msra.mxu0 %v4717
    %5332 = vmatpush.bf16.msra.mxu0 %v4710
    %5333 = vmatpush.bf16.msra.mxu0 %v4703
    %5334 = vmatpush.bf16.msra.mxu0 %v4696
    %5335 = vmatpush.bf16.msra.mxu0 %v4689
    %5336 = vmatmul.f32.gmra.mxu0 %v3649
    %v5337 = vpop.f32.mrf.mxu0
    %v5338 = vadd.f32 %v5326, %v5337
    %5339 = vdwg.mxu0
    %5340 = vmatpush.bf16.msra.mxu0 %v4794
    %5341 = vmatpush.bf16.msra.mxu0 %v4787
    %5342 = vmatpush.bf16.msra.mxu0 %v4780
    %5343 = vmatpush.bf16.msra.mxu0 %v4773
    %5344 = vmatpush.bf16.msra.mxu0 %v4766
    %5345 = vmatpush.bf16.msra.mxu0 %v4759
    %5346 = vmatpush.bf16.msra.mxu0 %v4752
    %5347 = vmatpush.bf16.msra.mxu0 %v4745
    %5348 = vmatmul.f32.gmra.mxu0 %v3650
    %v5349 = vpop.f32.mrf.mxu0
    %v5350 = vadd.f32 %v5338, %v5349
    %5351 = vdwg.mxu0
    %5352 = vmatpush.bf16.msra.mxu0 %v4850
    %5353 = vmatpush.bf16.msra.mxu0 %v4843
    %5354 = vmatpush.bf16.msra.mxu0 %v4836
    %5355 = vmatpush.bf16.msra.mxu0 %v4829
    %5356 = vmatpush.bf16.msra.mxu0 %v4822
    %5357 = vmatpush.bf16.msra.mxu0 %v4815
    %5358 = vmatpush.bf16.msra.mxu0 %v4808
    %5359 = vmatpush.bf16.msra.mxu0 %v4801
    %5360 = vmatmul.f32.gmra.mxu0 %v3651
    %v5361 = vpop.f32.mrf.mxu0
    %v5362 = vadd.f32 %v5350, %v5361
    %5363 = vdwg.mxu0
    %5364 = vmatpush.bf16.msra.mxu0 %v4683
    %5365 = vmatpush.bf16.msra.mxu0 %v4676
    %5366 = vmatpush.bf16.msra.mxu0 %v4669
    %5367 = vmatpush.bf16.msra.mxu0 %v4662
    %5368 = vmatpush.bf16.msra.mxu0 %v4655
    %5369 = vmatpush.bf16.msra.mxu0 %v4648
    %5370 = vmatpush.bf16.msra.mxu0 %v4641
    %5371 = vmatpush.bf16.msra.mxu0 %v4634
    %5372 = vmatmul.f32.gmra.mxu0 %v3648
    %v5373 = vpop.f32.mrf.mxu0
    %v5374 = vadd.f32 %v3916, %v5373
    %5375 = vdwg.mxu0
    %5376 = vmatpush.bf16.msra.mxu0 %v4739
    %5377 = vmatpush.bf16.msra.mxu0 %v4732
    %5378 = vmatpush.bf16.msra.mxu0 %v4725
    %5379 = vmatpush.bf16.msra.mxu0 %v4718
    %5380 = vmatpush.bf16.msra.mxu0 %v4711
    %5381 = vmatpush.bf16.msra.mxu0 %v4704
    %5382 = vmatpush.bf16.msra.mxu0 %v4697
    %5383 = vmatpush.bf16.msra.mxu0 %v4690
    %5384 = vmatmul.f32.gmra.mxu0 %v3649
    %v5385 = vpop.f32.mrf.mxu0
    %v5386 = vadd.f32 %v5374, %v5385
    %5387 = vdwg.mxu0
    %5388 = vmatpush.bf16.msra.mxu0 %v4795
    %5389 = vmatpush.bf16.msra.mxu0 %v4788
    %5390 = vmatpush.bf16.msra.mxu0 %v4781
    %5391 = vmatpush.bf16.msra.mxu0 %v4774
    %5392 = vmatpush.bf16.msra.mxu0 %v4767
    %5393 = vmatpush.bf16.msra.mxu0 %v4760
    %5394 = vmatpush.bf16.msra.mxu0 %v4753
    %5395 = vmatpush.bf16.msra.mxu0 %v4746
    %5396 = vmatmul.f32.gmra.mxu0 %v3650
    %v5397 = vpop.f32.mrf.mxu0
    %v5398 = vadd.f32 %v5386, %v5397
    %5399 = vdwg.mxu0
    %5400 = vmatpush.bf16.msra.mxu0 %v4851
    %5401 = vmatpush.bf16.msra.mxu0 %v4844
    %5402 = vmatpush.bf16.msra.mxu0 %v4837
    %5403 = vmatpush.bf16.msra.mxu0 %v4830
    %5404 = vmatpush.bf16.msra.mxu0 %v4823
    %5405 = vmatpush.bf16.msra.mxu0 %v4816
    %5406 = vmatpush.bf16.msra.mxu0 %v4809
    %5407 = vmatpush.bf16.msra.mxu0 %v4802
    %5408 = vmatmul.f32.gmra.mxu0 %v3651
    %v5409 = vpop.f32.mrf.mxu0
    %v5410 = vadd.f32 %v5398, %v5409
    %5411 = vdwg.mxu0
    %v5412 = vxor.u32 %v5122, 2147483648
    %v5413 = vxor.u32 %v5170, 2147483648
    %v5414 = vxor.u32 %v5218, 2147483648
    %v5415 = vxor.u32 %v5266, 2147483648
    %v5416 = vxor.u32 %v5314, 2147483648
    %v5417 = vxor.u32 %v5362, 2147483648
    %v5418 = vxor.u32 %v5410, 2147483648
    %v5419 = vmul.f32 %v5412, 1.442695
    %v5420 = vpow.pop %v5419
    %v5421 = vmul.f32 %v5413, 1.442695
    %v5422 = vpow.pop %v5421
    %v5423 = vmul.f32 %v5414, 1.442695
    %v5424 = vpow.pop %v5423
    %v5425 = vmul.f32 %v5415, 1.442695
    %v5426 = vpow.pop %v5425
    %v5427 = vmul.f32 %v5416, 1.442695
    %v5428 = vpow.pop %v5427
    %v5429 = vmul.f32 %v5417, 1.442695
    %v5430 = vpow.pop %v5429
    %v5431 = vmul.f32 %v5418, 1.442695
    %v5432 = vpow.pop %v5431
    %v5433 = vadd.f32 %v5420, 1.0
    %v5434 = vadd.f32 %v5422, 1.0
    %v5435 = vadd.f32 %v5424, 1.0
    %v5436 = vadd.f32 %v5426, 1.0
    %v5437 = vadd.f32 %v5428, 1.0
    %v5438 = vadd.f32 %v5430, 1.0
    %v5439 = vadd.f32 %v5432, 1.0
    %v5440 = vrcp.pop %v5433
    %v5441 = vmul.f32 %v5433, %v5440
    %v5442 = vsub.f32 1.0, %v5441
    %v5443 = vmul.f32 %v5440, %v5442
    %v5444 = vadd.f32 %v5440, %v5443
    %vm5445 = vweird.f32 %v5433
    %vm5446 = vweird.f32 %v5440
    %vm5447 = vmor %vm5445, %vm5446
    %v5448 = vsel %vm5447, %v5440, %v5444
    %v5449 = vand.u32 2147483647, %v5433
    %vm5450 = vcmp.eq.f32.partialorder %v5449, 8.507059e+37
    %v5451 = vand.u32 %v5433, 2147483648
    %v5452 = vor.u32 1.1754944e-38, %v5451
    %v5453 = vsel %vm5450, %v5452, %v5448
    %v5454 = vmul.f32 1.0, %v5453
    %v5455 = vrcp.pop %v5434
    %v5456 = vmul.f32 %v5434, %v5455
    %v5457 = vsub.f32 1.0, %v5456
    %v5458 = vmul.f32 %v5455, %v5457
    %v5459 = vadd.f32 %v5455, %v5458
    %vm5460 = vweird.f32 %v5434
    %vm5461 = vweird.f32 %v5455
    %vm5462 = vmor %vm5460, %vm5461
    %v5463 = vsel %vm5462, %v5455, %v5459
    %v5464 = vand.u32 2147483647, %v5434
    %vm5465 = vcmp.eq.f32.partialorder %v5464, 8.507059e+37
    %v5466 = vand.u32 %v5434, 2147483648
    %v5467 = vor.u32 1.1754944e-38, %v5466
    %v5468 = vsel %vm5465, %v5467, %v5463
    %v5469 = vmul.f32 1.0, %v5468
    %v5470 = vrcp.pop %v5435
    %v5471 = vmul.f32 %v5435, %v5470
    %v5472 = vsub.f32 1.0, %v5471
    %v5473 = vmul.f32 %v5470, %v5472
    %v5474 = vadd.f32 %v5470, %v5473
    %vm5475 = vweird.f32 %v5435
    %vm5476 = vweird.f32 %v5470
    %vm5477 = vmor %vm5475, %vm5476
    %v5478 = vsel %vm5477, %v5470, %v5474
    %v5479 = vand.u32 2147483647, %v5435
    %vm5480 = vcmp.eq.f32.partialorder %v5479, 8.507059e+37
    %v5481 = vand.u32 %v5435, 2147483648
    %v5482 = vor.u32 1.1754944e-38, %v5481
    %v5483 = vsel %vm5480, %v5482, %v5478
    %v5484 = vmul.f32 1.0, %v5483
    %v5485 = vrcp.pop %v5436
    %v5486 = vmul.f32 %v5436, %v5485
    %v5487 = vsub.f32 1.0, %v5486
    %v5488 = vmul.f32 %v5485, %v5487
    %v5489 = vadd.f32 %v5485, %v5488
    %vm5490 = vweird.f32 %v5436
    %vm5491 = vweird.f32 %v5485
    %vm5492 = vmor %vm5490, %vm5491
    %v5493 = vsel %vm5492, %v5485, %v5489
    %v5494 = vand.u32 2147483647, %v5436
    %vm5495 = vcmp.eq.f32.partialorder %v5494, 8.507059e+37
    %v5496 = vand.u32 %v5436, 2147483648
    %v5497 = vor.u32 1.1754944e-38, %v5496
    %v5498 = vsel %vm5495, %v5497, %v5493
    %v5499 = vmul.f32 1.0, %v5498
    %v5500 = vrcp.pop %v5437
    %v5501 = vmul.f32 %v5437, %v5500
    %v5502 = vsub.f32 1.0, %v5501
    %v5503 = vmul.f32 %v5500, %v5502
    %v5504 = vadd.f32 %v5500, %v5503
    %vm5505 = vweird.f32 %v5437
    %vm5506 = vweird.f32 %v5500
    %vm5507 = vmor %vm5505, %vm5506
    %v5508 = vsel %vm5507, %v5500, %v5504
    %v5509 = vand.u32 2147483647, %v5437
    %vm5510 = vcmp.eq.f32.partialorder %v5509, 8.507059e+37
    %v5511 = vand.u32 %v5437, 2147483648
    %v5512 = vor.u32 1.1754944e-38, %v5511
    %v5513 = vsel %vm5510, %v5512, %v5508
    %v5514 = vmul.f32 1.0, %v5513
    %v5515 = vrcp.pop %v5438
    %v5516 = vmul.f32 %v5438, %v5515
    %v5517 = vsub.f32 1.0, %v5516
    %v5518 = vmul.f32 %v5515, %v5517
    %v5519 = vadd.f32 %v5515, %v5518
    %vm5520 = vweird.f32 %v5438
    %vm5521 = vweird.f32 %v5515
    %vm5522 = vmor %vm5520, %vm5521
    %v5523 = vsel %vm5522, %v5515, %v5519
    %v5524 = vand.u32 2147483647, %v5438
    %vm5525 = vcmp.eq.f32.partialorder %v5524, 8.507059e+37
    %v5526 = vand.u32 %v5438, 2147483648
    %v5527 = vor.u32 1.1754944e-38, %v5526
    %v5528 = vsel %vm5525, %v5527, %v5523
    %v5529 = vmul.f32 1.0, %v5528
    %v5530 = vrcp.pop %v5439
    %v5531 = vmul.f32 %v5439, %v5530
    %v5532 = vsub.f32 1.0, %v5531
    %v5533 = vmul.f32 %v5530, %v5532
    %v5534 = vadd.f32 %v5530, %v5533
    %vm5535 = vweird.f32 %v5439
    %vm5536 = vweird.f32 %v5530
    %vm5537 = vmor %vm5535, %vm5536
    %v5538 = vsel %vm5537, %v5530, %v5534
    %v5539 = vand.u32 2147483647, %v5439
    %vm5540 = vcmp.eq.f32.partialorder %v5539, 8.507059e+37
    %v5541 = vand.u32 %v5439, 2147483648
    %v5542 = vor.u32 1.1754944e-38, %v5541
    %v5543 = vsel %vm5540, %v5542, %v5538
    %v5544 = vmul.f32 1.0, %v5543
    %5545 = vst [vmem:[#allocation23] sm:$0xff] %v5454
    %5546 = vst [vmem:[#allocation23 + $0x8] sm:$0xff] %v5469
    %5547 = vst [vmem:[#allocation23 + $0x10] sm:$0xff] %v5484
    %5548 = vst [vmem:[#allocation23 + $0x18] sm:$0xff] %v5499
    %5549 = vst [vmem:[#allocation23 + $0x20] sm:$0xff] %v5514
    %5550 = vst [vmem:[#allocation23 + $0x28] sm:$0xff] %v5529
    %5551 = vst [vmem:[#allocation23 + $0x30] sm:$0xff] %v5544
    // Predicated region
    $region122: #{tpu_custom_call.1} parent=1 // pred_check
      _
    $region123: #{tpu_custom_call.1} parent=1 // pred_check_branch
      %5553 = sbr.rel (0) target = $region125
    $region124: #{tpu_custom_call.1} parent=1 // pred_region
      %5555 = vsyncadd [#allocation4], 0
      %s5557 = sshll.u32 [#allocation23], 4
      %s5558 = int_to_ptr.vmem [resolvable:$true] %s5557
      %s5559 = sshll.u32 %s17, 4
      %s5560 = int_to_ptr.hbm [resolvable:$true] %s5559
      %5562 = dma.vmem_to_hbm [thread:$0]  %s5558, 896, %s5560, [#allocation4]
    $region125: #{tpu_custom_call.1} parent=1 // pred_fallthru
      _
    // Predicated region
    $region126: #{tpu_custom_call.1} parent=1 // pred_check
      _
    $region127: #{tpu_custom_call.1} parent=1 // pred_check_branch
      %5564 = sbr.rel (0) target = $region129
    $region128: #{tpu_custom_call.1} parent=1 // pred_region
      %5566 = dma.done [#allocation4], 896
    $region129: #{tpu_custom_call.1} parent=1 // pred_fallthru
      _
    %5567 = vsyncpa [#allocation3], 1
    %5568 = vsyncpa [#allocation6], 1
    %5569 = vsyncpa [#allocation9], 1
    %5570 = vsyncpa [#allocation12], 1
    %5571 = vsyncpa [#allocation15], 1
    %5572 = vsyncpa [#allocation18], 1
    %5573 = vsyncpa [#allocation21], 1
    %5574 = vsyncpa [#allocation4], 1

</llo_original>
